<compile_context>
chip_gen: v7x
topology: tpu7x:2x2x1
jax: 0.10.0
libtpu: 0.0.40
codegen_flags: <defaults>
</compile_context>

<pallas_src>
import functools
import math

import jax
import jax.numpy as jnp
from jax.experimental import pallas as pl
from jax.experimental.pallas import tpu as pltpu

# ----------------------------- synthetic config -----------------------------
VOCAB = 64
MAX_POS = 16
BERT_HIDDEN = 32          # stand-in for DistilBERT's 768
N_HEADS = 2
HEAD_DIM = BERT_HIDDEN // N_HEADS
FFN_DIM = 64
N_LAYERS = 2
LN_EPS = 1e-12

EMBEDDING_DIM = 8         # breed / herd-year embedding dim (unused in logits, as in PyTorch)
HIDDEN_DIM = 16           # self.fc output dim
NUM_LABELS = 2
OUT_PAD = 128             # lane-dense padded classifier output width

BATCH = 2
SEQ = 8
NUM_CHUNKS = 2


# ------------------------------- kernel helpers ------------------------------
def _ln(x2, g, b, eps=LN_EPS):
    mu = jnp.mean(x2, axis=-1, keepdims=True)
    var = jnp.mean((x2 - mu) ** 2, axis=-1, keepdims=True)
    return (x2 - mu) * jax.lax.rsqrt(var + eps) * g + b


# --------------------------- fused forward kernel -----------------------------
def fused_model_kernel(tok_ref, word_emb_ref, pos_ref, emb_ln_ref,
                       w_qkv_ref, b_qkv_ref, w_o_ref,
                       w_ffn1_ref, b_ffn1_ref, w_ffn2_ref, vec_ref,
                       fc_w_ref, fc_b_ref, cls_w_ref, cls_b_ref,
                       o_ref, cls_acc_ref,
                       *, n_heads, n_layers, num_chunks, batch, seq):
    c = pl.program_id(0)
    B, S = batch, seq
    N = B * S
    V, H = word_emb_ref.shape
    hd = H // n_heads

    @pl.when(c == 0)
    def _init():
        cls_acc_ref[...] = jnp.zeros_like(cls_acc_ref)
        o_ref[...] = jnp.zeros_like(o_ref)

    # --- embedding: one-hot MXU gather + position add + embedding LayerNorm ---
    tok = tok_ref[0]                                                   # (N, 1) int32
    onehot = (tok == jax.lax.broadcasted_iota(jnp.int32, (N, V), 1)).astype(jnp.float32)
    x = jnp.dot(onehot, word_emb_ref[...],
                preferred_element_type=jnp.float32) + pos_ref[...]     # (N, H)
    x = _ln(x, emb_ln_ref[0:1, :], emb_ln_ref[1:2, :])

    # --- transformer layers (static unroll; all weights VMEM-resident) ---
    for l in range(n_layers):
        w_qkv = w_qkv_ref[l]        # (H, 3H)  (wq pre-scaled by 1/sqrt(hd))
        b_qkv = b_qkv_ref[l]        # (1, 3H)  (bq pre-scaled by 1/sqrt(hd))
        wo = w_o_ref[l]             # (H, H)
        vec = vec_ref[l]            # (6, H): [bo, b_ffn2, ln1_g, ln1_b, ln2_g, ln2_b]

        qkv = jnp.dot(x, w_qkv, preferred_element_type=jnp.float32) + b_qkv   # (N, 3H)

        attn = jnp.zeros((N, H), jnp.float32)
        for h in range(n_heads):
            qh = qkv[:, h * hd:(h + 1) * hd].reshape(B, S, hd)
            kh = qkv[:, H + h * hd:H + (h + 1) * hd].reshape(B, S, hd)
            vh = qkv[:, 2 * H + h * hd:2 * H + (h + 1) * hd].reshape(B, S, hd)
            s = jnp.einsum('bqd,bkd->bqk', qh, kh,
                           preferred_element_type=jnp.float32)          # scale folded into wq
            p = jax.nn.softmax(s, axis=-1)
            ctx = jnp.einsum('bqk,bkd->bqd', p, vh,
                             preferred_element_type=jnp.float32).reshape(N, hd)
            # per-head output projection accumulated directly -> no concat / relayout
            attn = attn + jnp.dot(ctx, wo[h * hd:(h + 1) * hd, :],
                                  preferred_element_type=jnp.float32)
        attn = attn + vec[0:1, :]

        h1 = _ln(x + attn, vec[2:3, :], vec[3:4, :])
        ffn = jax.nn.gelu(jnp.dot(h1, w_ffn1_ref[l], preferred_element_type=jnp.float32)
                          + b_ffn1_ref[l], approximate=True)
        ffn = jnp.dot(ffn, w_ffn2_ref[l], preferred_element_type=jnp.float32) + vec[1:2, :]
        x = _ln(h1 + ffn, vec[4:5, :], vec[5:6, :])

    # --- accumulate CLS token of this chunk ---
    cls = x.reshape(B, S, H)[:, 0, :]                                  # (B, H)
    cls_acc_ref[...] = cls_acc_ref[...] + cls

    # --- last chunk: mean over chunks -> dropout(eval, identity) -> fc -> classifier ---
    @pl.when(c == num_chunks - 1)
    def _finalize():
        pooled = cls_acc_ref[...] * (1.0 / num_chunks)                 # (B, H)
        hidden = jnp.dot(pooled, fc_w_ref[...],
                         preferred_element_type=jnp.float32) + fc_b_ref[...]
        logits = jnp.dot(hidden, cls_w_ref[...],
                         preferred_element_type=jnp.float32) + cls_b_ref[...]
        o_ref[...] = logits.astype(o_ref.dtype)                        # lane-dense (B, 128)


# ------------------------------ pallas_call glue ------------------------------
def _const_spec(arr):
    nd = arr.ndim
    return pl.BlockSpec(arr.shape, lambda c, _nd=nd: (0,) * _nd)


@jax.jit
def custom_bert_forward(packed, snp_tokens, breed_ids, herd_year_ids):
    # snp_tokens: (NUM_CHUNKS, B, S) int32 token ids per chunk.
    # TODO(synk): the HF DistilBertTokenizer has no Pallas equivalent; token ids are
    #             supplied directly instead of raw strings.
    C, B, S = snp_tokens.shape
    tok = snp_tokens.reshape(C, B * S, 1)

    kernel = functools.partial(fused_model_kernel, n_heads=N_HEADS, n_layers=N_LAYERS,
                               num_chunks=C, batch=B, seq=S)

    weight_inputs = (packed['word_emb'], packed['pos_emb'], packed['emb_ln'],
                     packed['w_qkv'], packed['b_qkv'], packed['w_o'],
                     packed['w_ffn1'], packed['b_ffn1'], packed['w_ffn2'], packed['vec'],
                     packed['fc_w'], packed['fc_b'], packed['cls_w_pad'], packed['cls_b_pad'])

    grid_spec = pltpu.PrefetchScalarGridSpec(
        num_scalar_prefetch=0,
        grid=(C,),
        in_specs=[pl.BlockSpec((1, B * S, 1), lambda c: (c, 0, 0))]     # per-chunk token ids
                 + [_const_spec(w) for w in weight_inputs],             # weights: DMA'd once
        out_specs=pl.BlockSpec((B, OUT_PAD), lambda c: (0, 0)),
        scratch_shapes=[pltpu.VMEM((B, BERT_HIDDEN), jnp.float32)],     # CLS accumulator
    )

    logits_pad = pl.pallas_call(
        kernel,
        grid_spec=grid_spec,
        out_shape=jax.ShapeDtypeStruct((B, OUT_PAD), jnp.float32),
        compiler_params=pltpu.CompilerParams(dimension_semantics=("arbitrary",)),
    )(tok, *weight_inputs)

    # Computed (as in the PyTorch forward) but never used in the logits; DCE'd under jit.
    _breed = packed['breed_emb'][breed_ids]
    _herd = packed['herd_year_emb'][herd_year_ids]

    return logits_pad[:, :NUM_LABELS]


# -------------------------------- parameters ---------------------------------
def init_params(key):
    keys = iter(jax.random.split(key, 256))

    def nrm(shape, scale=0.02):
        return scale * jax.random.normal(next(keys), shape, dtype=jnp.float32)

    def layer_params():
        H, F = BERT_HIDDEN, FFN_DIM
        return dict(
            wq=nrm((H, H)), bq=jnp.zeros((1, H), jnp.float32),
            wk=nrm((H, H)), bk=jnp.zeros((1, H), jnp.float32),
            wv=nrm((H, H)), bv=jnp.zeros((1, H), jnp.float32),
            wo=nrm((H, H)), bo=jnp.zeros((1, H), jnp.float32),
            ln1_g=jnp.ones((1, H), jnp.float32), ln1_b=jnp.zeros((1, H), jnp.float32),
            w1=nrm((H, F)), b1=jnp.zeros((1, F), jnp.float32),
            w2=nrm((F, H)), b2=jnp.zeros((1, H), jnp.float32),
            ln2_g=jnp.ones((1, H), jnp.float32), ln2_b=jnp.zeros((1, H), jnp.float32),
        )

    bert = dict(
        word_emb=nrm((VOCAB, BERT_HIDDEN)),
        pos_emb=nrm((MAX_POS, BERT_HIDDEN)),
        emb_ln_g=jnp.ones((1, BERT_HIDDEN), jnp.float32),
        emb_ln_b=jnp.zeros((1, BERT_HIDDEN), jnp.float32),
        layers=[layer_params() for _ in range(N_LAYERS)],
    )

    return dict(
        bert=bert,
        fc_w=nrm((BERT_HIDDEN, HIDDEN_DIM)), fc_b=jnp.zeros((1, HIDDEN_DIM), jnp.float32),
        cls_w=nrm((HIDDEN_DIM, NUM_LABELS)), cls_b=jnp.zeros((1, NUM_LABELS), jnp.float32),
        breed_emb=nrm((10, EMBEDDING_DIM)),
        herd_year_emb=nrm((40, EMBEDDING_DIM)),
        # Note: the PyTorch module also defines nn.LayerNorm(hidden_size + 2*embedding_dim)
        # but never applies it in forward(), so it is intentionally not used here.
    )


def pack_params(params):
    """Stack per-layer weights into (N_LAYERS, ...) blobs, fold attention scale into Wq/bq,
    pre-broadcast positional embeddings, pad the classifier to a lane-dense 128-wide slab."""
    bert = params['bert']
    L = bert['layers']
    scale = 1.0 / math.sqrt(HEAD_DIM)

    w_qkv = jnp.stack([jnp.concatenate([l['wq'] * scale, l['wk'], l['wv']], axis=1) for l in L])
    b_qkv = jnp.stack([jnp.concatenate([l['bq'] * scale, l['bk'], l['bv']], axis=1) for l in L])
    w_o = jnp.stack([l['wo'] for l in L])
    w_ffn1 = jnp.stack([l['w1'] for l in L])
    b_ffn1 = jnp.stack([l['b1'] for l in L])
    w_ffn2 = jnp.stack([l['w2'] for l in L])
    vec = jnp.stack([jnp.concatenate([l['bo'], l['b2'], l['ln1_g'], l['ln1_b'],
                                      l['ln2_g'], l['ln2_b']], axis=0) for l in L])

    emb_ln = jnp.concatenate([bert['emb_ln_g'], bert['emb_ln_b']], axis=0)   # (2, H)
    pos = jnp.tile(bert['pos_emb'][:SEQ], (BATCH, 1))                        # (B*S, H)

    cls_w_pad = jnp.zeros((HIDDEN_DIM, OUT_PAD), jnp.float32).at[:, :NUM_LABELS].set(params['cls_w'])
    cls_b_pad = jnp.zeros((1, OUT_PAD), jnp.float32).at[:, :NUM_LABELS].set(params['cls_b'])

    return dict(word_emb=bert['word_emb'], pos_emb=pos, emb_ln=emb_ln,
                w_qkv=w_qkv, b_qkv=b_qkv, w_o=w_o,
                w_ffn1=w_ffn1, b_ffn1=b_ffn1, w_ffn2=w_ffn2, vec=vec,
                fc_w=params['fc_w'], fc_b=params['fc_b'],
                cls_w_pad=cls_w_pad, cls_b_pad=cls_b_pad,
                breed_emb=params['breed_emb'], herd_year_emb=params['herd_year_emb'])


# ---------------------------- pure-JAX reference ------------------------------
def ref_forward(params, snp_tokens, breed_ids, herd_year_ids):
    bert = params['bert']

    def ln(x, g, b):
        mu = jnp.mean(x, -1, keepdims=True)
        var = jnp.mean((x - mu) ** 2, -1, keepdims=True)
        return (x - mu) * jax.lax.rsqrt(var + LN_EPS) * g + b

    cls_outputs = []
    for ci in range(snp_tokens.shape[0]):
        tok = snp_tokens[ci]
        S = tok.shape[1]
        x = bert['word_emb'][tok] + bert['pos_emb'][None, :S, :]
        x = ln(x, bert['emb_ln_g'], bert['emb_ln_b'])
        for Lp in bert['layers']:
            B, S, H = x.shape
            hd = H // N_HEADS
            q = x @ Lp['wq'] + Lp['bq']
            k = x @ Lp['wk'] + Lp['bk']
            v = x @ Lp['wv'] + Lp['bv']
            heads = []
            for h in range(N_HEADS):
                qh = q[:, :, h * hd:(h + 1) * hd]
                kh = k[:, :, h * hd:(h + 1) * hd]
                vh = v[:, :, h * hd:(h + 1) * hd]
                s = jnp.einsum('bqd,bkd->bqk', qh, kh) / math.sqrt(hd)
                p = jax.nn.softmax(s, axis=-1)
                heads.append(jnp.einsum('bqk,bkd->bqd', p, vh))
            ctx = jnp.concatenate(heads, axis=-1)
            attn_out = ctx @ Lp['wo'] + Lp['bo']
            h1 = ln(x + attn_out, Lp['ln1_g'], Lp['ln1_b'])
            ffn = jax.nn.gelu(h1 @ Lp['w1'] + Lp['b1'], approximate=True) @ Lp['w2'] + Lp['b2']
            x = ln(h1 + ffn, Lp['ln2_g'], Lp['ln2_b'])
        cls_outputs.append(x[:, 0, :])
    pooled = jnp.mean(jnp.stack(cls_outputs, axis=0), axis=0)
    hidden = pooled @ params['fc_w'] + params['fc_b']
    return hidden @ params['cls_w'] + params['cls_b']


# ----------------------------------- main -------------------------------------
if __name__ == "__main__":
    key = jax.random.PRNGKey(0)
    k_par, k_tok, k_breed, k_herd = jax.random.split(key, 4)

    params = init_params(k_par)
    packed = pack_params(params)

    snp_tokens = jax.random.randint(k_tok, (NUM_CHUNKS, BATCH, SEQ), 0, VOCAB, dtype=jnp.int32)
    breed_ids = jax.random.randint(k_breed, (BATCH,), 0, 10, dtype=jnp.int32)
    herd_year_ids = jax.random.randint(k_herd, (BATCH,), 0, 40, dtype=jnp.int32)

    logits = custom_bert_forward(packed, snp_tokens, breed_ids, herd_year_ids)
    logits = jax.block_until_ready(logits)

    ref = ref_forward(params, snp_tokens, breed_ids, herd_year_ids)
    assert logits.shape == (BATCH, NUM_LABELS)
    assert jnp.allclose(logits, ref, rtol=1e-3, atol=1e-3), (logits, ref)

    print("KERNEL_OK")
</pallas_src>

<mosaic_0001>
module attributes {stable_mosaic.version = 11 : i64} {
  func.func @fused_model_kernel(%arg0: i32, %arg1: memref<1x16x1xi32, #tpu.memory_space<vmem>>, %arg2: memref<64x32xf32, #tpu.memory_space<vmem>>, %arg3: memref<16x32xf32, #tpu.memory_space<vmem>>, %arg4: memref<2x32xf32, #tpu.memory_space<vmem>>, %arg5: memref<2x32x96xf32, #tpu.memory_space<vmem>>, %arg6: memref<2x1x96xf32, #tpu.memory_space<vmem>>, %arg7: memref<2x32x32xf32, #tpu.memory_space<vmem>>, %arg8: memref<2x32x64xf32, #tpu.memory_space<vmem>>, %arg9: memref<2x1x64xf32, #tpu.memory_space<vmem>>, %arg10: memref<2x64x32xf32, #tpu.memory_space<vmem>>, %arg11: memref<2x6x32xf32, #tpu.memory_space<vmem>>, %arg12: memref<32x16xf32, #tpu.memory_space<vmem>>, %arg13: memref<1x16xf32, #tpu.memory_space<vmem>>, %arg14: memref<16x128xf32, #tpu.memory_space<vmem>>, %arg15: memref<1x128xf32, #tpu.memory_space<vmem>>, %arg16: memref<2x128xf32, #tpu.memory_space<vmem>>, %arg17: memref<2x32xf32, #tpu.memory_space<vmem>>) attributes {dimension_semantics = [#tpu.dimension_semantics<arbitrary>], iteration_bounds = array<i64: 2>, scalar_prefetch = 0 : i64, scratch_operands = 1 : i64, tpu.core_type = #tpu.core_type<tc>, window_params = [{transform_indices = @transform_0, window_bounds = array<i64: 1, 16, 1>}, {pipeline_mode = #tpu.pipeline_mode<synchronous>, transform_indices = @transform_1, window_bounds = array<i64: 64, 32>}, {pipeline_mode = #tpu.pipeline_mode<synchronous>, transform_indices = @transform_2, window_bounds = array<i64: 16, 32>}, {pipeline_mode = #tpu.pipeline_mode<synchronous>, transform_indices = @transform_3, window_bounds = array<i64: 2, 32>}, {pipeline_mode = #tpu.pipeline_mode<synchronous>, transform_indices = @transform_4, window_bounds = array<i64: 2, 32, 96>}, {pipeline_mode = #tpu.pipeline_mode<synchronous>, transform_indices = @transform_5, window_bounds = array<i64: 2, 1, 96>}, {pipeline_mode = #tpu.pipeline_mode<synchronous>, transform_indices = @transform_6, window_bounds = array<i64: 2, 32, 32>}, {pipeline_mode = #tpu.pipeline_mode<synchronous>, transform_indices = @transform_7, window_bounds = array<i64: 2, 32, 64>}, {pipeline_mode = #tpu.pipeline_mode<synchronous>, transform_indices = @transform_8, window_bounds = array<i64: 2, 1, 64>}, {pipeline_mode = #tpu.pipeline_mode<synchronous>, transform_indices = @transform_9, window_bounds = array<i64: 2, 64, 32>}, {pipeline_mode = #tpu.pipeline_mode<synchronous>, transform_indices = @transform_10, window_bounds = array<i64: 2, 6, 32>}, {pipeline_mode = #tpu.pipeline_mode<synchronous>, transform_indices = @transform_11, window_bounds = array<i64: 32, 16>}, {pipeline_mode = #tpu.pipeline_mode<synchronous>, transform_indices = @transform_12, window_bounds = array<i64: 1, 16>}, {pipeline_mode = #tpu.pipeline_mode<synchronous>, transform_indices = @transform_13, window_bounds = array<i64: 16, 128>}, {pipeline_mode = #tpu.pipeline_mode<synchronous>, transform_indices = @transform_14, window_bounds = array<i64: 1, 128>}, {pipeline_mode = #tpu.pipeline_mode<synchronous>, transform_indices = @transform_15, window_bounds = array<i64: 2, 128>}]} {
    %c0_i32 = arith.constant 0 : i32
    %0 = arith.cmpi eq, %arg0, %c0_i32 : i32
    %1 = arith.extui %0 : i1 to i32
    %c0_i32_0 = arith.constant 0 : i32
    %2 = arith.cmpi ne, %1, %c0_i32_0 : i32
    scf.if %2 {
      %cst_122 = arith.constant 0.000000e+00 : f32
      %321 = vector.broadcast %cst_122 : f32 to vector<2x32xf32>
      %c0_123 = arith.constant 0 : index
      %c0_124 = arith.constant 0 : index
      %322 = vector.load %arg17[%c0_123, %c0_124] : memref<2x32xf32, #tpu.memory_space<vmem>>, vector<2x32xf32>
      tpu.vector_store %arg17[%c0_123, %c0_124], %321 {strides = array<i32>} : memref<2x32xf32, #tpu.memory_space<vmem>>, vector<2x32xf32>,
      %cst_125 = arith.constant 0.000000e+00 : f32
      %323 = vector.broadcast %cst_125 : f32 to vector<2x128xf32>
      %c0_126 = arith.constant 0 : index
      %c0_127 = arith.constant 0 : index
      %324 = vector.load %arg16[%c0_126, %c0_127] : memref<2x128xf32, #tpu.memory_space<vmem>>, vector<2x128xf32>
      tpu.vector_store %arg16[%c0_126, %c0_127], %323 {strides = array<i32>} : memref<2x128xf32, #tpu.memory_space<vmem>>, vector<2x128xf32>,
    } else {
    }
    %c0 = arith.constant 0 : index
    %c0_1 = arith.constant 0 : index
    %c0_2 = arith.constant 0 : index
    %3 = vector.load %arg1[%c0, %c0_1, %c0_2] : memref<1x16x1xi32, #tpu.memory_space<vmem>>, vector<1x16x1xi32>
    %4 = vector.shape_cast %3 : vector<1x16x1xi32> to vector<16x1xi32>
    %5 = tpu.iota {dimensions = array<i32: 1>} : vector<16x64xi32>
    %6 = vector.broadcast %4 : vector<16x1xi32> to vector<16x64xi32>
    %7 = arith.cmpi eq, %6, %5 : vector<16x64xi32>
    %8 = arith.extui %7 : vector<16x64xi1> to vector<16x64xi32>
    %9 = arith.sitofp %8 : vector<16x64xi32> to vector<16x64xf32>
    %c0_3 = arith.constant 0 : index
    %c0_4 = arith.constant 0 : index
    %10 = vector.load %arg2[%c0_3, %c0_4] : memref<64x32xf32, #tpu.memory_space<vmem>>, vector<64x32xf32>
    %cst = arith.constant dense<0.000000e+00> : vector<16x32xf32>
    %11 = tpu.matmul %9, %10, %cst {dimension_numbers = #tpu.dot_dimension_numbers<[1], [0], [0], [1], [0, 0, 1, 1], [], []>} : vector<16x64xf32>, vector<64x32xf32>, vector<16x32xf32> -> vector<16x32xf32>
    %c0_5 = arith.constant 0 : index
    %c0_6 = arith.constant 0 : index
    %12 = vector.load %arg3[%c0_5, %c0_6] : memref<16x32xf32, #tpu.memory_space<vmem>>, vector<16x32xf32>
    %13 = arith.addf %11, %12 : vector<16x32xf32>
    %c0_7 = arith.constant 0 : index
    %c0_8 = arith.constant 0 : index
    %14 = vector.load %arg4[%c0_7, %c0_8] : memref<2x32xf32, #tpu.memory_space<vmem>>, vector<1x32xf32>
    %c1 = arith.constant 1 : index
    %c0_9 = arith.constant 0 : index
    %15 = vector.load %arg4[%c1, %c0_9] : memref<2x32xf32, #tpu.memory_space<vmem>>, vector<1x32xf32>
    %cst_10 = arith.constant dense<0.000000e+00> : vector<16xf32>
    %16 = vector.multi_reduction <add>, %13, %cst_10 [1] : vector<16x32xf32> to vector<16xf32>
    %17 = vector.shape_cast %16 : vector<16xf32> to vector<16x1xf32>
    %cst_11 = arith.constant 3.200000e+01 : f32
    %18 = vector.broadcast %cst_11 : f32 to vector<16x1xf32>
    %19 = arith.divf %17, %18 : vector<16x1xf32>
    %20 = vector.broadcast %19 : vector<16x1xf32> to vector<16x32xf32>
    %21 = arith.subf %13, %20 : vector<16x32xf32>
    %22 = arith.mulf %21, %21 : vector<16x32xf32>
    %cst_12 = arith.constant dense<0.000000e+00> : vector<16xf32>
    %23 = vector.multi_reduction <add>, %22, %cst_12 [1] : vector<16x32xf32> to vector<16xf32>
    %24 = vector.shape_cast %23 : vector<16xf32> to vector<16x1xf32>
    %cst_13 = arith.constant 3.200000e+01 : f32
    %25 = vector.broadcast %cst_13 : f32 to vector<16x1xf32>
    %26 = arith.divf %24, %25 : vector<16x1xf32>
    %27 = vector.broadcast %19 : vector<16x1xf32> to vector<16x32xf32>
    %28 = arith.subf %13, %27 : vector<16x32xf32>
    %cst_14 = arith.constant 9.99999996E-13 : f32
    %29 = vector.broadcast %cst_14 : f32 to vector<16x1xf32>
    %30 = arith.addf %26, %29 : vector<16x1xf32>
    %31 = math.rsqrt %30 : vector<16x1xf32>
    %32 = vector.broadcast %31 : vector<16x1xf32> to vector<16x32xf32>
    %33 = arith.mulf %28, %32 : vector<16x32xf32>
    %34 = vector.broadcast %14 : vector<1x32xf32> to vector<16x32xf32>
    %35 = arith.mulf %33, %34 : vector<16x32xf32>
    %36 = vector.broadcast %15 : vector<1x32xf32> to vector<16x32xf32>
    %37 = arith.addf %35, %36 : vector<16x32xf32>
    %c0_15 = arith.constant 0 : index
    %c0_16 = arith.constant 0 : index
    %c0_17 = arith.constant 0 : index
    %38 = vector.load %arg5[%c0_15, %c0_16, %c0_17] : memref<2x32x96xf32, #tpu.memory_space<vmem>>, vector<1x32x96xf32>
    %39 = vector.shape_cast %38 : vector<1x32x96xf32> to vector<32x96xf32>
    %c0_18 = arith.constant 0 : index
    %c0_19 = arith.constant 0 : index
    %c0_20 = arith.constant 0 : index
    %40 = vector.load %arg6[%c0_18, %c0_19, %c0_20] : memref<2x1x96xf32, #tpu.memory_space<vmem>>, vector<1x1x96xf32>
    %41 = vector.shape_cast %40 : vector<1x1x96xf32> to vector<1x96xf32>
    %c0_21 = arith.constant 0 : index
    %c0_22 = arith.constant 0 : index
    %c0_23 = arith.constant 0 : index
    %42 = vector.load %arg7[%c0_21, %c0_22, %c0_23] : memref<2x32x32xf32, #tpu.memory_space<vmem>>, vector<1x32x32xf32>
    %43 = vector.shape_cast %42 : vector<1x32x32xf32> to vector<32x32xf32>
    %c0_24 = arith.constant 0 : index
    %c0_25 = arith.constant 0 : index
    %c0_26 = arith.constant 0 : index
    %44 = vector.load %arg11[%c0_24, %c0_25, %c0_26] : memref<2x6x32xf32, #tpu.memory_space<vmem>>, vector<1x6x32xf32>
    %45 = vector.shape_cast %44 : vector<1x6x32xf32> to vector<6x32xf32>
    %cst_27 = arith.constant dense<0.000000e+00> : vector<16x96xf32>
    %46 = tpu.matmul %37, %39, %cst_27 {dimension_numbers = #tpu.dot_dimension_numbers<[1], [0], [0], [1], [0, 0, 1, 1], [], []>} : vector<16x32xf32>, vector<32x96xf32>, vector<16x96xf32> -> vector<16x96xf32>
    %47 = vector.broadcast %41 : vector<1x96xf32> to vector<16x96xf32>
    %48 = arith.addf %46, %47 : vector<16x96xf32>
    %cst_28 = arith.constant 0.000000e+00 : f32
    %49 = vector.broadcast %cst_28 : f32 to vector<16x32xf32>
    %50 = vector.extract_strided_slice %48 {offsets = [0, 0], sizes = [16, 16], strides = [1, 1]} : vector<16x96xf32> to vector<16x16xf32>
    %51 = vector.shape_cast %50 : vector<16x16xf32> to vector<2x8x16xf32>
    %52 = vector.extract_strided_slice %48 {offsets = [0, 32], sizes = [16, 16], strides = [1, 1]} : vector<16x96xf32> to vector<16x16xf32>
    %53 = vector.shape_cast %52 : vector<16x16xf32> to vector<2x8x16xf32>
    %54 = vector.extract_strided_slice %48 {offsets = [0, 64], sizes = [16, 16], strides = [1, 1]} : vector<16x96xf32> to vector<16x16xf32>
    %55 = vector.shape_cast %54 : vector<16x16xf32> to vector<2x8x16xf32>
    "tpu.trace_start"() <{level = 10 : i32, message = "bqd,bkd->bqk"}> : () -> ()
    %cst_29 = arith.constant dense<0.000000e+00> : vector<2x8x8xf32>
    %56 = tpu.matmul %51, %53, %cst_29 {dimension_numbers = #tpu.dot_dimension_numbers<[2], [2], [1], [1], [0, 0, 0, 1, 1, 1], [0], [0]>} : vector<2x8x16xf32>, vector<2x8x16xf32>, vector<2x8x8xf32> -> vector<2x8x8xf32>
    "tpu.trace_stop"() : () -> ()
    %cst_30 = arith.constant dense<0xFF800000> : vector<2x8xf32>
    %57 = vector.multi_reduction <maximumf>, %56, %cst_30 [2] : vector<2x8x8xf32> to vector<2x8xf32>
    %cst_31 = arith.constant 0xFF800000 : f32
    %58 = vector.broadcast %cst_31 : f32 to vector<2x8xf32>
    %59 = arith.maximumf %58, %57 : vector<2x8xf32>
    %60 = vector.shape_cast %59 : vector<2x8xf32> to vector<2x8x1xf32>
    %61 = vector.broadcast %60 : vector<2x8x1xf32> to vector<2x8x8xf32>
    %62 = arith.subf %56, %61 : vector<2x8x8xf32>
    %63 = math.exp %62 : vector<2x8x8xf32>
    %cst_32 = arith.constant dense<0.000000e+00> : vector<2x8xf32>
    %64 = vector.multi_reduction <add>, %63, %cst_32 [2] : vector<2x8x8xf32> to vector<2x8xf32>
    %65 = vector.shape_cast %64 : vector<2x8xf32> to vector<2x8x1xf32>
    %66 = vector.broadcast %65 : vector<2x8x1xf32> to vector<2x8x8xf32>
    %67 = arith.divf %63, %66 : vector<2x8x8xf32>
    "tpu.trace_start"() <{level = 10 : i32, message = "bqk,bkd->bqd"}> : () -> ()
    %cst_33 = arith.constant dense<0.000000e+00> : vector<2x8x16xf32>
    %68 = tpu.matmul %67, %55, %cst_33 {dimension_numbers = #tpu.dot_dimension_numbers<[2], [1], [1], [2], [0, 0, 0, 1, 1, 2], [0], [0]>} : vector<2x8x8xf32>, vector<2x8x16xf32>, vector<2x8x16xf32> -> vector<2x8x16xf32>
    "tpu.trace_stop"() : () -> ()
    %69 = vector.shape_cast %68 : vector<2x8x16xf32> to vector<16x16xf32>
    %70 = vector.extract_strided_slice %43 {offsets = [0, 0], sizes = [16, 32], strides = [1, 1]} : vector<32x32xf32> to vector<16x32xf32>
    %cst_34 = arith.constant dense<0.000000e+00> : vector<16x32xf32>
    %71 = tpu.matmul %69, %70, %cst_34 {dimension_numbers = #tpu.dot_dimension_numbers<[1], [0], [0], [1], [0, 0, 1, 1], [], []>} : vector<16x16xf32>, vector<16x32xf32>, vector<16x32xf32> -> vector<16x32xf32>
    %72 = arith.addf %49, %71 : vector<16x32xf32>
    %73 = vector.extract_strided_slice %48 {offsets = [0, 16], sizes = [16, 16], strides = [1, 1]} : vector<16x96xf32> to vector<16x16xf32>
    %74 = vector.shape_cast %73 : vector<16x16xf32> to vector<2x8x16xf32>
    %75 = vector.extract_strided_slice %48 {offsets = [0, 48], sizes = [16, 16], strides = [1, 1]} : vector<16x96xf32> to vector<16x16xf32>
    %76 = vector.shape_cast %75 : vector<16x16xf32> to vector<2x8x16xf32>
    %77 = vector.extract_strided_slice %48 {offsets = [0, 80], sizes = [16, 16], strides = [1, 1]} : vector<16x96xf32> to vector<16x16xf32>
    %78 = vector.shape_cast %77 : vector<16x16xf32> to vector<2x8x16xf32>
    "tpu.trace_start"() <{level = 10 : i32, message = "bqd,bkd->bqk"}> : () -> ()
    %cst_35 = arith.constant dense<0.000000e+00> : vector<2x8x8xf32>
    %79 = tpu.matmul %74, %76, %cst_35 {dimension_numbers = #tpu.dot_dimension_numbers<[2], [2], [1], [1], [0, 0, 0, 1, 1, 1], [0], [0]>} : vector<2x8x16xf32>, vector<2x8x16xf32>, vector<2x8x8xf32> -> vector<2x8x8xf32>
    "tpu.trace_stop"() : () -> ()
    %cst_36 = arith.constant dense<0xFF800000> : vector<2x8xf32>
    %80 = vector.multi_reduction <maximumf>, %79, %cst_36 [2] : vector<2x8x8xf32> to vector<2x8xf32>
    %cst_37 = arith.constant 0xFF800000 : f32
    %81 = vector.broadcast %cst_37 : f32 to vector<2x8xf32>
    %82 = arith.maximumf %81, %80 : vector<2x8xf32>
    %83 = vector.shape_cast %82 : vector<2x8xf32> to vector<2x8x1xf32>
    %84 = vector.broadcast %83 : vector<2x8x1xf32> to vector<2x8x8xf32>
    %85 = arith.subf %79, %84 : vector<2x8x8xf32>
    %86 = math.exp %85 : vector<2x8x8xf32>
    %cst_38 = arith.constant dense<0.000000e+00> : vector<2x8xf32>
    %87 = vector.multi_reduction <add>, %86, %cst_38 [2] : vector<2x8x8xf32> to vector<2x8xf32>
    %88 = vector.shape_cast %87 : vector<2x8xf32> to vector<2x8x1xf32>
    %89 = vector.broadcast %88 : vector<2x8x1xf32> to vector<2x8x8xf32>
    %90 = arith.divf %86, %89 : vector<2x8x8xf32>
    "tpu.trace_start"() <{level = 10 : i32, message = "bqk,bkd->bqd"}> : () -> ()
    %cst_39 = arith.constant dense<0.000000e+00> : vector<2x8x16xf32>
    %91 = tpu.matmul %90, %78, %cst_39 {dimension_numbers = #tpu.dot_dimension_numbers<[2], [1], [1], [2], [0, 0, 0, 1, 1, 2], [0], [0]>} : vector<2x8x8xf32>, vector<2x8x16xf32>, vector<2x8x16xf32> -> vector<2x8x16xf32>
    "tpu.trace_stop"() : () -> ()
    %92 = vector.shape_cast %91 : vector<2x8x16xf32> to vector<16x16xf32>
    %93 = vector.extract_strided_slice %43 {offsets = [16, 0], sizes = [16, 32], strides = [1, 1]} : vector<32x32xf32> to vector<16x32xf32>
    %cst_40 = arith.constant dense<0.000000e+00> : vector<16x32xf32>
    %94 = tpu.matmul %92, %93, %cst_40 {dimension_numbers = #tpu.dot_dimension_numbers<[1], [0], [0], [1], [0, 0, 1, 1], [], []>} : vector<16x16xf32>, vector<16x32xf32>, vector<16x32xf32> -> vector<16x32xf32>
    %95 = arith.addf %72, %94 : vector<16x32xf32>
    %96 = vector.extract_strided_slice %45 {offsets = [0, 0], sizes = [1, 32], strides = [1, 1]} : vector<6x32xf32> to vector<1x32xf32>
    %97 = vector.broadcast %96 : vector<1x32xf32> to vector<16x32xf32>
    %98 = arith.addf %95, %97 : vector<16x32xf32>
    %99 = arith.addf %37, %98 : vector<16x32xf32>
    %100 = vector.extract_strided_slice %45 {offsets = [2, 0], sizes = [1, 32], strides = [1, 1]} : vector<6x32xf32> to vector<1x32xf32>
    %101 = vector.extract_strided_slice %45 {offsets = [3, 0], sizes = [1, 32], strides = [1, 1]} : vector<6x32xf32> to vector<1x32xf32>
    %cst_41 = arith.constant dense<0.000000e+00> : vector<16xf32>
    %102 = vector.multi_reduction <add>, %99, %cst_41 [1] : vector<16x32xf32> to vector<16xf32>
    %103 = vector.shape_cast %102 : vector<16xf32> to vector<16x1xf32>
    %cst_42 = arith.constant 3.200000e+01 : f32
    %104 = vector.broadcast %cst_42 : f32 to vector<16x1xf32>
    %105 = arith.divf %103, %104 : vector<16x1xf32>
    %106 = vector.broadcast %105 : vector<16x1xf32> to vector<16x32xf32>
    %107 = arith.subf %99, %106 : vector<16x32xf32>
    %108 = arith.mulf %107, %107 : vector<16x32xf32>
    %cst_43 = arith.constant dense<0.000000e+00> : vector<16xf32>
    %109 = vector.multi_reduction <add>, %108, %cst_43 [1] : vector<16x32xf32> to vector<16xf32>
    %110 = vector.shape_cast %109 : vector<16xf32> to vector<16x1xf32>
    %cst_44 = arith.constant 3.200000e+01 : f32
    %111 = vector.broadcast %cst_44 : f32 to vector<16x1xf32>
    %112 = arith.divf %110, %111 : vector<16x1xf32>
    %113 = vector.broadcast %105 : vector<16x1xf32> to vector<16x32xf32>
    %114 = arith.subf %99, %113 : vector<16x32xf32>
    %cst_45 = arith.constant 9.99999996E-13 : f32
    %115 = vector.broadcast %cst_45 : f32 to vector<16x1xf32>
    %116 = arith.addf %112, %115 : vector<16x1xf32>
    %117 = math.rsqrt %116 : vector<16x1xf32>
    %118 = vector.broadcast %117 : vector<16x1xf32> to vector<16x32xf32>
    %119 = arith.mulf %114, %118 : vector<16x32xf32>
    %120 = vector.broadcast %100 : vector<1x32xf32> to vector<16x32xf32>
    %121 = arith.mulf %119, %120 : vector<16x32xf32>
    %122 = vector.broadcast %101 : vector<1x32xf32> to vector<16x32xf32>
    %123 = arith.addf %121, %122 : vector<16x32xf32>
    %c0_46 = arith.constant 0 : index
    %c0_47 = arith.constant 0 : index
    %c0_48 = arith.constant 0 : index
    %124 = vector.load %arg8[%c0_46, %c0_47, %c0_48] : memref<2x32x64xf32, #tpu.memory_space<vmem>>, vector<1x32x64xf32>
    %125 = vector.shape_cast %124 : vector<1x32x64xf32> to vector<32x64xf32>
    %cst_49 = arith.constant dense<0.000000e+00> : vector<16x64xf32>
    %126 = tpu.matmul %123, %125, %cst_49 {dimension_numbers = #tpu.dot_dimension_numbers<[1], [0], [0], [1], [0, 0, 1, 1], [], []>} : vector<16x32xf32>, vector<32x64xf32>, vector<16x64xf32> -> vector<16x64xf32>
    %c0_50 = arith.constant 0 : index
    %c0_51 = arith.constant 0 : index
    %c0_52 = arith.constant 0 : index
    %127 = vector.load %arg9[%c0_50, %c0_51, %c0_52] : memref<2x1x64xf32, #tpu.memory_space<vmem>>, vector<1x1x64xf32>
    %128 = vector.shape_cast %127 : vector<1x1x64xf32> to vector<1x64xf32>
    %129 = vector.broadcast %128 : vector<1x64xf32> to vector<16x64xf32>
    %130 = arith.addf %126, %129 : vector<16x64xf32>
    %131 = arith.mulf %130, %130 : vector<16x64xf32>
    %132 = arith.mulf %130, %131 : vector<16x64xf32>
    %cst_53 = arith.constant 4.471500e-02 : f32
    %133 = vector.broadcast %cst_53 : f32 to vector<16x64xf32>
    %134 = arith.mulf %133, %132 : vector<16x64xf32>
    %135 = arith.addf %130, %134 : vector<16x64xf32>
    %cst_54 = arith.constant 0.797884583 : f32
    %136 = vector.broadcast %cst_54 : f32 to vector<16x64xf32>
    %137 = arith.mulf %136, %135 : vector<16x64xf32>
    %138 = math.tanh %137 : vector<16x64xf32>
    %cst_55 = arith.constant 1.000000e+00 : f32
    %139 = vector.broadcast %cst_55 : f32 to vector<16x64xf32>
    %140 = arith.addf %139, %138 : vector<16x64xf32>
    %cst_56 = arith.constant 5.000000e-01 : f32
    %141 = vector.broadcast %cst_56 : f32 to vector<16x64xf32>
    %142 = arith.mulf %141, %140 : vector<16x64xf32>
    %143 = arith.mulf %130, %142 : vector<16x64xf32>
    %c0_57 = arith.constant 0 : index
    %c0_58 = arith.constant 0 : index
    %c0_59 = arith.constant 0 : index
    %144 = vector.load %arg10[%c0_57, %c0_58, %c0_59] : memref<2x64x32xf32, #tpu.memory_space<vmem>>, vector<1x64x32xf32>
    %145 = vector.shape_cast %144 : vector<1x64x32xf32> to vector<64x32xf32>
    %cst_60 = arith.constant dense<0.000000e+00> : vector<16x32xf32>
    %146 = tpu.matmul %143, %145, %cst_60 {dimension_numbers = #tpu.dot_dimension_numbers<[1], [0], [0], [1], [0, 0, 1, 1], [], []>} : vector<16x64xf32>, vector<64x32xf32>, vector<16x32xf32> -> vector<16x32xf32>
    %147 = vector.extract_strided_slice %45 {offsets = [1, 0], sizes = [1, 32], strides = [1, 1]} : vector<6x32xf32> to vector<1x32xf32>
    %148 = vector.broadcast %147 : vector<1x32xf32> to vector<16x32xf32>
    %149 = arith.addf %146, %148 : vector<16x32xf32>
    %150 = arith.addf %123, %149 : vector<16x32xf32>
    %151 = vector.extract_strided_slice %45 {offsets = [4, 0], sizes = [1, 32], strides = [1, 1]} : vector<6x32xf32> to vector<1x32xf32>
    %152 = vector.extract_strided_slice %45 {offsets = [5, 0], sizes = [1, 32], strides = [1, 1]} : vector<6x32xf32> to vector<1x32xf32>
    %cst_61 = arith.constant dense<0.000000e+00> : vector<16xf32>
    %153 = vector.multi_reduction <add>, %150, %cst_61 [1] : vector<16x32xf32> to vector<16xf32>
    %154 = vector.shape_cast %153 : vector<16xf32> to vector<16x1xf32>
    %cst_62 = arith.constant 3.200000e+01 : f32
    %155 = vector.broadcast %cst_62 : f32 to vector<16x1xf32>
    %156 = arith.divf %154, %155 : vector<16x1xf32>
    %157 = vector.broadcast %156 : vector<16x1xf32> to vector<16x32xf32>
    %158 = arith.subf %150, %157 : vector<16x32xf32>
    %159 = arith.mulf %158, %158 : vector<16x32xf32>
    %cst_63 = arith.constant dense<0.000000e+00> : vector<16xf32>
    %160 = vector.multi_reduction <add>, %159, %cst_63 [1] : vector<16x32xf32> to vector<16xf32>
    %161 = vector.shape_cast %160 : vector<16xf32> to vector<16x1xf32>
    %cst_64 = arith.constant 3.200000e+01 : f32
    %162 = vector.broadcast %cst_64 : f32 to vector<16x1xf32>
    %163 = arith.divf %161, %162 : vector<16x1xf32>
    %164 = vector.broadcast %156 : vector<16x1xf32> to vector<16x32xf32>
    %165 = arith.subf %150, %164 : vector<16x32xf32>
    %cst_65 = arith.constant 9.99999996E-13 : f32
    %166 = vector.broadcast %cst_65 : f32 to vector<16x1xf32>
    %167 = arith.addf %163, %166 : vector<16x1xf32>
    %168 = math.rsqrt %167 : vector<16x1xf32>
    %169 = vector.broadcast %168 : vector<16x1xf32> to vector<16x32xf32>
    %170 = arith.mulf %165, %169 : vector<16x32xf32>
    %171 = vector.broadcast %151 : vector<1x32xf32> to vector<16x32xf32>
    %172 = arith.mulf %170, %171 : vector<16x32xf32>
    %173 = vector.broadcast %152 : vector<1x32xf32> to vector<16x32xf32>
    %174 = arith.addf %172, %173 : vector<16x32xf32>
    %c1_66 = arith.constant 1 : index
    %c0_67 = arith.constant 0 : index
    %c0_68 = arith.constant 0 : index
    %175 = vector.load %arg5[%c1_66, %c0_67, %c0_68] : memref<2x32x96xf32, #tpu.memory_space<vmem>>, vector<1x32x96xf32>
    %176 = vector.shape_cast %175 : vector<1x32x96xf32> to vector<32x96xf32>
    %c1_69 = arith.constant 1 : index
    %c0_70 = arith.constant 0 : index
    %c0_71 = arith.constant 0 : index
    %177 = vector.load %arg6[%c1_69, %c0_70, %c0_71] : memref<2x1x96xf32, #tpu.memory_space<vmem>>, vector<1x1x96xf32>
    %178 = vector.shape_cast %177 : vector<1x1x96xf32> to vector<1x96xf32>
    %c1_72 = arith.constant 1 : index
    %c0_73 = arith.constant 0 : index
    %c0_74 = arith.constant 0 : index
    %179 = vector.load %arg7[%c1_72, %c0_73, %c0_74] : memref<2x32x32xf32, #tpu.memory_space<vmem>>, vector<1x32x32xf32>
    %180 = vector.shape_cast %179 : vector<1x32x32xf32> to vector<32x32xf32>
    %c1_75 = arith.constant 1 : index
    %c0_76 = arith.constant 0 : index
    %c0_77 = arith.constant 0 : index
    %181 = vector.load %arg11[%c1_75, %c0_76, %c0_77] : memref<2x6x32xf32, #tpu.memory_space<vmem>>, vector<1x6x32xf32>
    %182 = vector.shape_cast %181 : vector<1x6x32xf32> to vector<6x32xf32>
    %cst_78 = arith.constant dense<0.000000e+00> : vector<16x96xf32>
    %183 = tpu.matmul %174, %176, %cst_78 {dimension_numbers = #tpu.dot_dimension_numbers<[1], [0], [0], [1], [0, 0, 1, 1], [], []>} : vector<16x32xf32>, vector<32x96xf32>, vector<16x96xf32> -> vector<16x96xf32>
    %184 = vector.broadcast %178 : vector<1x96xf32> to vector<16x96xf32>
    %185 = arith.addf %183, %184 : vector<16x96xf32>
    %cst_79 = arith.constant 0.000000e+00 : f32
    %186 = vector.broadcast %cst_79 : f32 to vector<16x32xf32>
    %187 = vector.extract_strided_slice %185 {offsets = [0, 0], sizes = [16, 16], strides = [1, 1]} : vector<16x96xf32> to vector<16x16xf32>
    %188 = vector.shape_cast %187 : vector<16x16xf32> to vector<2x8x16xf32>
    %189 = vector.extract_strided_slice %185 {offsets = [0, 32], sizes = [16, 16], strides = [1, 1]} : vector<16x96xf32> to vector<16x16xf32>
    %190 = vector.shape_cast %189 : vector<16x16xf32> to vector<2x8x16xf32>
    %191 = vector.extract_strided_slice %185 {offsets = [0, 64], sizes = [16, 16], strides = [1, 1]} : vector<16x96xf32> to vector<16x16xf32>
    %192 = vector.shape_cast %191 : vector<16x16xf32> to vector<2x8x16xf32>
    "tpu.trace_start"() <{level = 10 : i32, message = "bqd,bkd->bqk"}> : () -> ()
    %cst_80 = arith.constant dense<0.000000e+00> : vector<2x8x8xf32>
    %193 = tpu.matmul %188, %190, %cst_80 {dimension_numbers = #tpu.dot_dimension_numbers<[2], [2], [1], [1], [0, 0, 0, 1, 1, 1], [0], [0]>} : vector<2x8x16xf32>, vector<2x8x16xf32>, vector<2x8x8xf32> -> vector<2x8x8xf32>
    "tpu.trace_stop"() : () -> ()
    %cst_81 = arith.constant dense<0xFF800000> : vector<2x8xf32>
    %194 = vector.multi_reduction <maximumf>, %193, %cst_81 [2] : vector<2x8x8xf32> to vector<2x8xf32>
    %cst_82 = arith.constant 0xFF800000 : f32
    %195 = vector.broadcast %cst_82 : f32 to vector<2x8xf32>
    %196 = arith.maximumf %195, %194 : vector<2x8xf32>
    %197 = vector.shape_cast %196 : vector<2x8xf32> to vector<2x8x1xf32>
    %198 = vector.broadcast %197 : vector<2x8x1xf32> to vector<2x8x8xf32>
    %199 = arith.subf %193, %198 : vector<2x8x8xf32>
    %200 = math.exp %199 : vector<2x8x8xf32>
    %cst_83 = arith.constant dense<0.000000e+00> : vector<2x8xf32>
    %201 = vector.multi_reduction <add>, %200, %cst_83 [2] : vector<2x8x8xf32> to vector<2x8xf32>
    %202 = vector.shape_cast %201 : vector<2x8xf32> to vector<2x8x1xf32>
    %203 = vector.broadcast %202 : vector<2x8x1xf32> to vector<2x8x8xf32>
    %204 = arith.divf %200, %203 : vector<2x8x8xf32>
    "tpu.trace_start"() <{level = 10 : i32, message = "bqk,bkd->bqd"}> : () -> ()
    %cst_84 = arith.constant dense<0.000000e+00> : vector<2x8x16xf32>
    %205 = tpu.matmul %204, %192, %cst_84 {dimension_numbers = #tpu.dot_dimension_numbers<[2], [1], [1], [2], [0, 0, 0, 1, 1, 2], [0], [0]>} : vector<2x8x8xf32>, vector<2x8x16xf32>, vector<2x8x16xf32> -> vector<2x8x16xf32>
    "tpu.trace_stop"() : () -> ()
    %206 = vector.shape_cast %205 : vector<2x8x16xf32> to vector<16x16xf32>
    %207 = vector.extract_strided_slice %180 {offsets = [0, 0], sizes = [16, 32], strides = [1, 1]} : vector<32x32xf32> to vector<16x32xf32>
    %cst_85 = arith.constant dense<0.000000e+00> : vector<16x32xf32>
    %208 = tpu.matmul %206, %207, %cst_85 {dimension_numbers = #tpu.dot_dimension_numbers<[1], [0], [0], [1], [0, 0, 1, 1], [], []>} : vector<16x16xf32>, vector<16x32xf32>, vector<16x32xf32> -> vector<16x32xf32>
    %209 = arith.addf %186, %208 : vector<16x32xf32>
    %210 = vector.extract_strided_slice %185 {offsets = [0, 16], sizes = [16, 16], strides = [1, 1]} : vector<16x96xf32> to vector<16x16xf32>
    %211 = vector.shape_cast %210 : vector<16x16xf32> to vector<2x8x16xf32>
    %212 = vector.extract_strided_slice %185 {offsets = [0, 48], sizes = [16, 16], strides = [1, 1]} : vector<16x96xf32> to vector<16x16xf32>
    %213 = vector.shape_cast %212 : vector<16x16xf32> to vector<2x8x16xf32>
    %214 = vector.extract_strided_slice %185 {offsets = [0, 80], sizes = [16, 16], strides = [1, 1]} : vector<16x96xf32> to vector<16x16xf32>
    %215 = vector.shape_cast %214 : vector<16x16xf32> to vector<2x8x16xf32>
    "tpu.trace_start"() <{level = 10 : i32, message = "bqd,bkd->bqk"}> : () -> ()
    %cst_86 = arith.constant dense<0.000000e+00> : vector<2x8x8xf32>
    %216 = tpu.matmul %211, %213, %cst_86 {dimension_numbers = #tpu.dot_dimension_numbers<[2], [2], [1], [1], [0, 0, 0, 1, 1, 1], [0], [0]>} : vector<2x8x16xf32>, vector<2x8x16xf32>, vector<2x8x8xf32> -> vector<2x8x8xf32>
    "tpu.trace_stop"() : () -> ()
    %cst_87 = arith.constant dense<0xFF800000> : vector<2x8xf32>
    %217 = vector.multi_reduction <maximumf>, %216, %cst_87 [2] : vector<2x8x8xf32> to vector<2x8xf32>
    %cst_88 = arith.constant 0xFF800000 : f32
    %218 = vector.broadcast %cst_88 : f32 to vector<2x8xf32>
    %219 = arith.maximumf %218, %217 : vector<2x8xf32>
    %220 = vector.shape_cast %219 : vector<2x8xf32> to vector<2x8x1xf32>
    %221 = vector.broadcast %220 : vector<2x8x1xf32> to vector<2x8x8xf32>
    %222 = arith.subf %216, %221 : vector<2x8x8xf32>
    %223 = math.exp %222 : vector<2x8x8xf32>
    %cst_89 = arith.constant dense<0.000000e+00> : vector<2x8xf32>
    %224 = vector.multi_reduction <add>, %223, %cst_89 [2] : vector<2x8x8xf32> to vector<2x8xf32>
    %225 = vector.shape_cast %224 : vector<2x8xf32> to vector<2x8x1xf32>
    %226 = vector.broadcast %225 : vector<2x8x1xf32> to vector<2x8x8xf32>
    %227 = arith.divf %223, %226 : vector<2x8x8xf32>
    "tpu.trace_start"() <{level = 10 : i32, message = "bqk,bkd->bqd"}> : () -> ()
    %cst_90 = arith.constant dense<0.000000e+00> : vector<2x8x16xf32>
    %228 = tpu.matmul %227, %215, %cst_90 {dimension_numbers = #tpu.dot_dimension_numbers<[2], [1], [1], [2], [0, 0, 0, 1, 1, 2], [0], [0]>} : vector<2x8x8xf32>, vector<2x8x16xf32>, vector<2x8x16xf32> -> vector<2x8x16xf32>
    "tpu.trace_stop"() : () -> ()
    %229 = vector.shape_cast %228 : vector<2x8x16xf32> to vector<16x16xf32>
    %230 = vector.extract_strided_slice %180 {offsets = [16, 0], sizes = [16, 32], strides = [1, 1]} : vector<32x32xf32> to vector<16x32xf32>
    %cst_91 = arith.constant dense<0.000000e+00> : vector<16x32xf32>
    %231 = tpu.matmul %229, %230, %cst_91 {dimension_numbers = #tpu.dot_dimension_numbers<[1], [0], [0], [1], [0, 0, 1, 1], [], []>} : vector<16x16xf32>, vector<16x32xf32>, vector<16x32xf32> -> vector<16x32xf32>
    %232 = arith.addf %209, %231 : vector<16x32xf32>
    %233 = vector.extract_strided_slice %182 {offsets = [0, 0], sizes = [1, 32], strides = [1, 1]} : vector<6x32xf32> to vector<1x32xf32>
    %234 = vector.broadcast %233 : vector<1x32xf32> to vector<16x32xf32>
    %235 = arith.addf %232, %234 : vector<16x32xf32>
    %236 = arith.addf %174, %235 : vector<16x32xf32>
    %237 = vector.extract_strided_slice %182 {offsets = [2, 0], sizes = [1, 32], strides = [1, 1]} : vector<6x32xf32> to vector<1x32xf32>
    %238 = vector.extract_strided_slice %182 {offsets = [3, 0], sizes = [1, 32], strides = [1, 1]} : vector<6x32xf32> to vector<1x32xf32>
    %cst_92 = arith.constant dense<0.000000e+00> : vector<16xf32>
    %239 = vector.multi_reduction <add>, %236, %cst_92 [1] : vector<16x32xf32> to vector<16xf32>
    %240 = vector.shape_cast %239 : vector<16xf32> to vector<16x1xf32>
    %cst_93 = arith.constant 3.200000e+01 : f32
    %241 = vector.broadcast %cst_93 : f32 to vector<16x1xf32>
    %242 = arith.divf %240, %241 : vector<16x1xf32>
    %243 = vector.broadcast %242 : vector<16x1xf32> to vector<16x32xf32>
    %244 = arith.subf %236, %243 : vector<16x32xf32>
    %245 = arith.mulf %244, %244 : vector<16x32xf32>
    %cst_94 = arith.constant dense<0.000000e+00> : vector<16xf32>
    %246 = vector.multi_reduction <add>, %245, %cst_94 [1] : vector<16x32xf32> to vector<16xf32>
    %247 = vector.shape_cast %246 : vector<16xf32> to vector<16x1xf32>
    %cst_95 = arith.constant 3.200000e+01 : f32
    %248 = vector.broadcast %cst_95 : f32 to vector<16x1xf32>
    %249 = arith.divf %247, %248 : vector<16x1xf32>
    %250 = vector.broadcast %242 : vector<16x1xf32> to vector<16x32xf32>
    %251 = arith.subf %236, %250 : vector<16x32xf32>
    %cst_96 = arith.constant 9.99999996E-13 : f32
    %252 = vector.broadcast %cst_96 : f32 to vector<16x1xf32>
    %253 = arith.addf %249, %252 : vector<16x1xf32>
    %254 = math.rsqrt %253 : vector<16x1xf32>
    %255 = vector.broadcast %254 : vector<16x1xf32> to vector<16x32xf32>
    %256 = arith.mulf %251, %255 : vector<16x32xf32>
    %257 = vector.broadcast %237 : vector<1x32xf32> to vector<16x32xf32>
    %258 = arith.mulf %256, %257 : vector<16x32xf32>
    %259 = vector.broadcast %238 : vector<1x32xf32> to vector<16x32xf32>
    %260 = arith.addf %258, %259 : vector<16x32xf32>
    %c1_97 = arith.constant 1 : index
    %c0_98 = arith.constant 0 : index
    %c0_99 = arith.constant 0 : index
    %261 = vector.load %arg8[%c1_97, %c0_98, %c0_99] : memref<2x32x64xf32, #tpu.memory_space<vmem>>, vector<1x32x64xf32>
    %262 = vector.shape_cast %261 : vector<1x32x64xf32> to vector<32x64xf32>
    %cst_100 = arith.constant dense<0.000000e+00> : vector<16x64xf32>
    %263 = tpu.matmul %260, %262, %cst_100 {dimension_numbers = #tpu.dot_dimension_numbers<[1], [0], [0], [1], [0, 0, 1, 1], [], []>} : vector<16x32xf32>, vector<32x64xf32>, vector<16x64xf32> -> vector<16x64xf32>
    %c1_101 = arith.constant 1 : index
    %c0_102 = arith.constant 0 : index
    %c0_103 = arith.constant 0 : index
    %264 = vector.load %arg9[%c1_101, %c0_102, %c0_103] : memref<2x1x64xf32, #tpu.memory_space<vmem>>, vector<1x1x64xf32>
    %265 = vector.shape_cast %264 : vector<1x1x64xf32> to vector<1x64xf32>
    %266 = vector.broadcast %265 : vector<1x64xf32> to vector<16x64xf32>
    %267 = arith.addf %263, %266 : vector<16x64xf32>
    %268 = arith.mulf %267, %267 : vector<16x64xf32>
    %269 = arith.mulf %267, %268 : vector<16x64xf32>
    %cst_104 = arith.constant 4.471500e-02 : f32
    %270 = vector.broadcast %cst_104 : f32 to vector<16x64xf32>
    %271 = arith.mulf %270, %269 : vector<16x64xf32>
    %272 = arith.addf %267, %271 : vector<16x64xf32>
    %cst_105 = arith.constant 0.797884583 : f32
    %273 = vector.broadcast %cst_105 : f32 to vector<16x64xf32>
    %274 = arith.mulf %273, %272 : vector<16x64xf32>
    %275 = math.tanh %274 : vector<16x64xf32>
    %cst_106 = arith.constant 1.000000e+00 : f32
    %276 = vector.broadcast %cst_106 : f32 to vector<16x64xf32>
    %277 = arith.addf %276, %275 : vector<16x64xf32>
    %cst_107 = arith.constant 5.000000e-01 : f32
    %278 = vector.broadcast %cst_107 : f32 to vector<16x64xf32>
    %279 = arith.mulf %278, %277 : vector<16x64xf32>
    %280 = arith.mulf %267, %279 : vector<16x64xf32>
    %c1_108 = arith.constant 1 : index
    %c0_109 = arith.constant 0 : index
    %c0_110 = arith.constant 0 : index
    %281 = vector.load %arg10[%c1_108, %c0_109, %c0_110] : memref<2x64x32xf32, #tpu.memory_space<vmem>>, vector<1x64x32xf32>
    %282 = vector.shape_cast %281 : vector<1x64x32xf32> to vector<64x32xf32>
    %cst_111 = arith.constant dense<0.000000e+00> : vector<16x32xf32>
    %283 = tpu.matmul %280, %282, %cst_111 {dimension_numbers = #tpu.dot_dimension_numbers<[1], [0], [0], [1], [0, 0, 1, 1], [], []>} : vector<16x64xf32>, vector<64x32xf32>, vector<16x32xf32> -> vector<16x32xf32>
    %284 = vector.extract_strided_slice %182 {offsets = [1, 0], sizes = [1, 32], strides = [1, 1]} : vector<6x32xf32> to vector<1x32xf32>
    %285 = vector.broadcast %284 : vector<1x32xf32> to vector<16x32xf32>
    %286 = arith.addf %283, %285 : vector<16x32xf32>
    %287 = arith.addf %260, %286 : vector<16x32xf32>
    %288 = vector.extract_strided_slice %182 {offsets = [4, 0], sizes = [1, 32], strides = [1, 1]} : vector<6x32xf32> to vector<1x32xf32>
    %289 = vector.extract_strided_slice %182 {offsets = [5, 0], sizes = [1, 32], strides = [1, 1]} : vector<6x32xf32> to vector<1x32xf32>
    %cst_112 = arith.constant dense<0.000000e+00> : vector<16xf32>
    %290 = vector.multi_reduction <add>, %287, %cst_112 [1] : vector<16x32xf32> to vector<16xf32>
    %291 = vector.shape_cast %290 : vector<16xf32> to vector<16x1xf32>
    %cst_113 = arith.constant 3.200000e+01 : f32
    %292 = vector.broadcast %cst_113 : f32 to vector<16x1xf32>
    %293 = arith.divf %291, %292 : vector<16x1xf32>
    %294 = vector.broadcast %293 : vector<16x1xf32> to vector<16x32xf32>
    %295 = arith.subf %287, %294 : vector<16x32xf32>
    %296 = arith.mulf %295, %295 : vector<16x32xf32>
    %cst_114 = arith.constant dense<0.000000e+00> : vector<16xf32>
    %297 = vector.multi_reduction <add>, %296, %cst_114 [1] : vector<16x32xf32> to vector<16xf32>
    %298 = vector.shape_cast %297 : vector<16xf32> to vector<16x1xf32>
    %cst_115 = arith.constant 3.200000e+01 : f32
    %299 = vector.broadcast %cst_115 : f32 to vector<16x1xf32>
    %300 = arith.divf %298, %299 : vector<16x1xf32>
    %301 = vector.broadcast %293 : vector<16x1xf32> to vector<16x32xf32>
    %302 = arith.subf %287, %301 : vector<16x32xf32>
    %cst_116 = arith.constant 9.99999996E-13 : f32
    %303 = vector.broadcast %cst_116 : f32 to vector<16x1xf32>
    %304 = arith.addf %300, %303 : vector<16x1xf32>
    %305 = math.rsqrt %304 : vector<16x1xf32>
    %306 = vector.broadcast %305 : vector<16x1xf32> to vector<16x32xf32>
    %307 = arith.mulf %302, %306 : vector<16x32xf32>
    %308 = vector.broadcast %288 : vector<1x32xf32> to vector<16x32xf32>
    %309 = arith.mulf %307, %308 : vector<16x32xf32>
    %310 = vector.broadcast %289 : vector<1x32xf32> to vector<16x32xf32>
    %311 = arith.addf %309, %310 : vector<16x32xf32>
    %312 = vector.shape_cast %311 : vector<16x32xf32> to vector<2x8x32xf32>
    %313 = vector.extract_strided_slice %312 {offsets = [0, 0, 0], sizes = [2, 1, 32], strides = [1, 1, 1]} : vector<2x8x32xf32> to vector<2x1x32xf32>
    %314 = vector.shape_cast %313 : vector<2x1x32xf32> to vector<2x32xf32>
    %c0_117 = arith.constant 0 : index
    %c0_118 = arith.constant 0 : index
    %315 = vector.load %arg17[%c0_117, %c0_118] : memref<2x32xf32, #tpu.memory_space<vmem>>, vector<2x32xf32>
    %316 = arith.addf %315, %314 : vector<2x32xf32>
    %c0_119 = arith.constant 0 : index
    %c0_120 = arith.constant 0 : index
    %317 = vector.load %arg17[%c0_119, %c0_120] : memref<2x32xf32, #tpu.memory_space<vmem>>, vector<2x32xf32>
    tpu.vector_store %arg17[%c0_119, %c0_120], %316 {strides = array<i32>} : memref<2x32xf32, #tpu.memory_space<vmem>>, vector<2x32xf32>,
    %c1_i32 = arith.constant 1 : i32
    %318 = arith.cmpi eq, %arg0, %c1_i32 : i32
    %319 = arith.extui %318 : i1 to i32
    %c0_i32_121 = arith.constant 0 : i32
    %320 = arith.cmpi ne, %319, %c0_i32_121 : i32
    scf.if %320 {
      %c0_122 = arith.constant 0 : index
      %c0_123 = arith.constant 0 : index
      %321 = vector.load %arg17[%c0_122, %c0_123] : memref<2x32xf32, #tpu.memory_space<vmem>>, vector<2x32xf32>
      %cst_124 = arith.constant 5.000000e-01 : f32
      %322 = vector.broadcast %cst_124 : f32 to vector<2x32xf32>
      %323 = arith.mulf %321, %322 : vector<2x32xf32>
      %c0_125 = arith.constant 0 : index
      %c0_126 = arith.constant 0 : index
      %324 = vector.load %arg12[%c0_125, %c0_126] : memref<32x16xf32, #tpu.memory_space<vmem>>, vector<32x16xf32>
      %cst_127 = arith.constant dense<0.000000e+00> : vector<2x16xf32>
      %325 = tpu.matmul %323, %324, %cst_127 {dimension_numbers = #tpu.dot_dimension_numbers<[1], [0], [0], [1], [0, 0, 1, 1], [], []>} : vector<2x32xf32>, vector<32x16xf32>, vector<2x16xf32> -> vector<2x16xf32>
      %c0_128 = arith.constant 0 : index
      %c0_129 = arith.constant 0 : index
      %326 = vector.load %arg13[%c0_128, %c0_129] : memref<1x16xf32, #tpu.memory_space<vmem>>, vector<1x16xf32>
      %327 = vector.broadcast %326 : vector<1x16xf32> to vector<2x16xf32>
      %328 = arith.addf %325, %327 : vector<2x16xf32>
      %c0_130 = arith.constant 0 : index
      %c0_131 = arith.constant 0 : index
      %329 = vector.load %arg14[%c0_130, %c0_131] : memref<16x128xf32, #tpu.memory_space<vmem>>, vector<16x128xf32>
      %cst_132 = arith.constant dense<0.000000e+00> : vector<2x128xf32>
      %330 = tpu.matmul %328, %329, %cst_132 {dimension_numbers = #tpu.dot_dimension_numbers<[1], [0], [0], [1], [0, 0, 1, 1], [], []>} : vector<2x16xf32>, vector<16x128xf32>, vector<2x128xf32> -> vector<2x128xf32>
      %c0_133 = arith.constant 0 : index
      %c0_134 = arith.constant 0 : index
      %331 = vector.load %arg15[%c0_133, %c0_134] : memref<1x128xf32, #tpu.memory_space<vmem>>, vector<1x128xf32>
      %332 = vector.broadcast %331 : vector<1x128xf32> to vector<2x128xf32>
      %333 = arith.addf %330, %332 : vector<2x128xf32>
      %c0_135 = arith.constant 0 : index
      %c0_136 = arith.constant 0 : index
      %334 = vector.load %arg16[%c0_135, %c0_136] : memref<2x128xf32, #tpu.memory_space<vmem>>, vector<2x128xf32>
      tpu.vector_store %arg16[%c0_135, %c0_136], %333 {strides = array<i32>} : memref<2x128xf32, #tpu.memory_space<vmem>>, vector<2x128xf32>,
    } else {
    }
    return
  }
  func.func @transform_0(%arg0: i32) -> (i32, i32, i32) {
    %c0_i32 = arith.constant 0 : i32
    %c0_i32_0 = arith.constant 0 : i32
    %c0_i32_1 = arith.constant 0 : i32
    return %arg0, %c0_i32, %c0_i32_0 : i32, i32, i32
  }
  func.func @transform_1(%arg0: i32) -> (i32, i32) {
    %c0_i32 = arith.constant 0 : i32
    %c0_i32_0 = arith.constant 0 : i32
    %c0_i32_1 = arith.constant 0 : i32
    return %c0_i32, %c0_i32_0 : i32, i32
  }
  func.func @transform_2(%arg0: i32) -> (i32, i32) {
    %c0_i32 = arith.constant 0 : i32
    %c0_i32_0 = arith.constant 0 : i32
    %c0_i32_1 = arith.constant 0 : i32
    return %c0_i32, %c0_i32_0 : i32, i32
  }
  func.func @transform_3(%arg0: i32) -> (i32, i32) {
    %c0_i32 = arith.constant 0 : i32
    %c0_i32_0 = arith.constant 0 : i32
    %c0_i32_1 = arith.constant 0 : i32
    return %c0_i32, %c0_i32_0 : i32, i32
  }
  func.func @transform_4(%arg0: i32) -> (i32, i32, i32) {
    %c0_i32 = arith.constant 0 : i32
    %c0_i32_0 = arith.constant 0 : i32
    %c0_i32_1 = arith.constant 0 : i32
    %c0_i32_2 = arith.constant 0 : i32
    return %c0_i32, %c0_i32_0, %c0_i32_1 : i32, i32, i32
  }
  func.func @transform_5(%arg0: i32) -> (i32, i32, i32) {
    %c0_i32 = arith.constant 0 : i32
    %c0_i32_0 = arith.constant 0 : i32
    %c0_i32_1 = arith.constant 0 : i32
    %c0_i32_2 = arith.constant 0 : i32
    return %c0_i32, %c0_i32_0, %c0_i32_1 : i32, i32, i32
  }
  func.func @transform_6(%arg0: i32) -> (i32, i32, i32) {
    %c0_i32 = arith.constant 0 : i32
    %c0_i32_0 = arith.constant 0 : i32
    %c0_i32_1 = arith.constant 0 : i32
    %c0_i32_2 = arith.constant 0 : i32
    return %c0_i32, %c0_i32_0, %c0_i32_1 : i32, i32, i32
  }
  func.func @transform_7(%arg0: i32) -> (i32, i32, i32) {
    %c0_i32 = arith.constant 0 : i32
    %c0_i32_0 = arith.constant 0 : i32
    %c0_i32_1 = arith.constant 0 : i32
    %c0_i32_2 = arith.constant 0 : i32
    return %c0_i32, %c0_i32_0, %c0_i32_1 : i32, i32, i32
  }
  func.func @transform_8(%arg0: i32) -> (i32, i32, i32) {
    %c0_i32 = arith.constant 0 : i32
    %c0_i32_0 = arith.constant 0 : i32
    %c0_i32_1 = arith.constant 0 : i32
    %c0_i32_2 = arith.constant 0 : i32
    return %c0_i32, %c0_i32_0, %c0_i32_1 : i32, i32, i32
  }
  func.func @transform_9(%arg0: i32) -> (i32, i32, i32) {
    %c0_i32 = arith.constant 0 : i32
    %c0_i32_0 = arith.constant 0 : i32
    %c0_i32_1 = arith.constant 0 : i32
    %c0_i32_2 = arith.constant 0 : i32
    return %c0_i32, %c0_i32_0, %c0_i32_1 : i32, i32, i32
  }
  func.func @transform_10(%arg0: i32) -> (i32, i32, i32) {
    %c0_i32 = arith.constant 0 : i32
    %c0_i32_0 = arith.constant 0 : i32
    %c0_i32_1 = arith.constant 0 : i32
    %c0_i32_2 = arith.constant 0 : i32
    return %c0_i32, %c0_i32_0, %c0_i32_1 : i32, i32, i32
  }
  func.func @transform_11(%arg0: i32) -> (i32, i32) {
    %c0_i32 = arith.constant 0 : i32
    %c0_i32_0 = arith.constant 0 : i32
    %c0_i32_1 = arith.constant 0 : i32
    return %c0_i32, %c0_i32_0 : i32, i32
  }
  func.func @transform_12(%arg0: i32) -> (i32, i32) {
    %c0_i32 = arith.constant 0 : i32
    %c0_i32_0 = arith.constant 0 : i32
    %c0_i32_1 = arith.constant 0 : i32
    return %c0_i32, %c0_i32_0 : i32, i32
  }
  func.func @transform_13(%arg0: i32) -> (i32, i32) {
    %c0_i32 = arith.constant 0 : i32
    %c0_i32_0 = arith.constant 0 : i32
    %c0_i32_1 = arith.constant 0 : i32
    return %c0_i32, %c0_i32_0 : i32, i32
  }
  func.func @transform_14(%arg0: i32) -> (i32, i32) {
    %c0_i32 = arith.constant 0 : i32
    %c0_i32_0 = arith.constant 0 : i32
    %c0_i32_1 = arith.constant 0 : i32
    return %c0_i32, %c0_i32_0 : i32, i32
  }
  func.func @transform_15(%arg0: i32) -> (i32, i32) {
    %c0_i32 = arith.constant 0 : i32
    %c0_i32_0 = arith.constant 0 : i32
    %c0_i32_1 = arith.constant 0 : i32
    return %c0_i32, %c0_i32_0 : i32, i32
  }
}

</mosaic_0001>

<llo_original>
// kernel: custom_bert_forward.1
$region0: #{custom_bert_forward.1}
  #allocation0 [shape = 'u32[]', space=smem, size = 0x4, offset = 0x4, fixed_abs, tag = 'smem constant byte address 0x4 - core index']
  #allocation1 [shape = 'u32[144,128]{1,0:T(1,128)}', space=vmem, size = 0x12000, scoped, tag = 'internal scratch']
  #allocation2 [shape = 'f32[2,32]{1,0:T(2,128)}', space=vmem, size = 0x400, scoped, tag = 'scratch operand']
  %s0 = inlined_call_operand.vmem [shape: s32[2,16,1], index: 0, kind: input, shape index: {}]
  %s1 = inlined_call_operand.vmem [shape: f32[64,32], index: 1, kind: input, shape index: {}]
  %s2 = inlined_call_operand.vmem [shape: f32[16,32], index: 2, kind: input, shape index: {}]
  %s3 = inlined_call_operand.vmem [shape: f32[2,32], index: 3, kind: input, shape index: {}]
  %s4 = inlined_call_operand.vmem [shape: f32[2,32,96], index: 4, kind: input, shape index: {}]
  %s5 = inlined_call_operand.vmem [shape: f32[2,1,96], index: 5, kind: input, shape index: {}]
  %s6 = inlined_call_operand.vmem [shape: f32[2,32,32], index: 6, kind: input, shape index: {}]
  %s7 = inlined_call_operand.vmem [shape: f32[2,32,64], index: 7, kind: input, shape index: {}]
  %s8 = inlined_call_operand.vmem [shape: f32[2,1,64], index: 8, kind: input, shape index: {}]
  %s9 = inlined_call_operand.vmem [shape: f32[2,64,32], index: 9, kind: input, shape index: {}]
  %s10 = inlined_call_operand.vmem [shape: f32[2,6,32], index: 10, kind: input, shape index: {}]
  %s11 = inlined_call_operand.vmem [shape: f32[32,16], index: 11, kind: input, shape index: {}]
  %s12 = inlined_call_operand.vmem [shape: f32[1,16], index: 12, kind: input, shape index: {}]
  %s13 = inlined_call_operand.vmem [shape: f32[16,128], index: 13, kind: input, shape index: {}]
  %s14 = inlined_call_operand.vmem [shape: f32[1,128], index: 14, kind: input, shape index: {}]
  %s15 = inlined_call_operand.hbm [shape: f32[2,128], index: 15, kind: output, shape index: {}]
  %s16 = sld [smem:[#allocation0]]
  $region101: #{custom_bert_forward.1} parent=0
    _
  %s18 = ssub.s32 1, %s16
  %s19 = scalar_select 0, %s18, %s16
  $region1: #{custom_bert_forward.1} parent=0
    #allocation3 [shape = 'u8[1024]{0}', space=vmem, size = 0x400, scoped, tag = 'output window, operand 0, single buffered']
    #allocation4 [shape = 's32[2]{0}', space=sflag, size = 0x8, scoped, tag = 'scoped memory for custom_bert_forward.1']
    %20 = vsyncpa [#allocation4], 0
    loop: start=0, step=1, limit=4
    $region2: #{custom_bert_forward.1} parent=1 // loop_pre_header
      _
    $region3: #{custom_bert_forward.1} parent=1 // loop_header
      %s22 = sphi 0, %s26
      %p23 = scmp.ge.s32.totalorder %s22, 4
      %s32 = sphi 0, %s34
      %s35 = sphi 0, %s32
      %s36 = sphi 0, %s35
      %s52 = sphi 0, %s36
      %s56 = sphi 0, %s56
      %s58 = sphi 0, %s56
      %s59 = sphi 0, %s58
      %s73 = sphi 0, %s59
      %s77 = sphi 0, %s77
      %s79 = sphi 0, %s77
      %s80 = sphi 0, %s79
      %s94 = sphi 0, %s80
      %s98 = sphi 0, %s98
      %s100 = sphi 0, %s98
      %s101 = sphi 0, %s100
      %s115 = sphi 0, %s101
      %s119 = sphi 0, %s119
      %s121 = sphi 0, %s119
      %s122 = sphi 0, %s121
      %s136 = sphi 0, %s122
      %s140 = sphi 0, %s140
      %s142 = sphi 0, %s140
      %s143 = sphi 0, %s142
      %s157 = sphi 0, %s143
      %s161 = sphi 0, %s161
      %s163 = sphi 0, %s161
      %s164 = sphi 0, %s163
      %s178 = sphi 0, %s164
      %s182 = sphi 0, %s182
      %s184 = sphi 0, %s182
      %s185 = sphi 0, %s184
      %s199 = sphi 0, %s185
      %s203 = sphi 0, %s203
      %s205 = sphi 0, %s203
      %s206 = sphi 0, %s205
      %s220 = sphi 0, %s206
      %s224 = sphi 0, %s224
      %s226 = sphi 0, %s224
      %s227 = sphi 0, %s226
      %s241 = sphi 0, %s227
      %s245 = sphi 0, %s245
      %s247 = sphi 0, %s245
      %s248 = sphi 0, %s247
      %s262 = sphi 0, %s248
      %s266 = sphi 0, %s266
      %s268 = sphi 0, %s266
      %s269 = sphi 0, %s268
      %s283 = sphi 0, %s269
      %s287 = sphi 0, %s287
      %s289 = sphi 0, %s287
      %s290 = sphi 0, %s289
      %s304 = sphi 0, %s290
      %s308 = sphi 0, %s308
      %s310 = sphi 0, %s308
      %s311 = sphi 0, %s310
      %s325 = sphi 0, %s311
      %s329 = sphi 0, %s329
      %s331 = sphi 0, %s329
      %s332 = sphi 0, %s331
      %s346 = sphi 0, %s332
      %s350 = sphi 0, %s350
      %s352 = sphi 0, %s350
      %s353 = sphi 0, %s352
      %s367 = sphi 0, %s353
    $region4: #{custom_bert_forward.1} parent=1 // loop_header_branch
      %25 = sbr.rel (%p23) target = $region8
    $region5: #{custom_bert_forward.1} parent=1 // loop_body
      %s27 = ssub.s32 %s22, 1
      %s28 = ssub.s32 %s22, 2
      %s29 = sadd.s32 %s22, 1
      %s30 = ssub.s32 %s22, %s29
      %p31 = scmp.eq.s32.totalorder %s30, 0
      %s33 = sadd.s32 %s32, 1
      %s34 = scalar_select %p31, %s32, %s33
      %p37 = pneg %p31
      %p38 = scmp.eq.s32.totalorder %s22, 1
      %p39 = por %p37, %p38
      %p40 = scmp.ne.s32.totalorder %s32, %s35
      %p41 = scmp.eq.s32.totalorder %s22, 0
      %p42 = por %p40, %p41
      %p43 = scmp.ne.s32.totalorder %s32, %s35
      %p44 = scmp.eq.s32.totalorder %s27, 1
      %p45 = por %p43, %p44
      %p46 = scmp.ne.s32.totalorder %s35, %s36
      %p47 = scmp.eq.s32.totalorder %s27, 0
      %p48 = por %p46, %p47
      %p49 = scmp.ne.s32.totalorder %s35, %s36
      %p50 = scmp.eq.s32.totalorder %s28, 1
      %p51 = por %p49, %p50
      %p53 = scmp.ne.s32.totalorder %s36, %s52
      %p54 = scmp.eq.s32.totalorder %s28, 0
      %p55 = por %p53, %p54
      %s57 = sadd.s32 %s56, 1
      %p60 = scmp.eq.s32.totalorder %s22, 1
      %p61 = scmp.ne.s32.totalorder %s56, %s58
      %p62 = scmp.eq.s32.totalorder %s22, 0
      %p63 = por %p61, %p62
      %p64 = scmp.ne.s32.totalorder %s56, %s58
      %p65 = scmp.eq.s32.totalorder %s27, 1
      %p66 = por %p64, %p65
      %p67 = scmp.ne.s32.totalorder %s58, %s59
      %p68 = scmp.eq.s32.totalorder %s27, 0
      %p69 = por %p67, %p68
      %p70 = scmp.ne.s32.totalorder %s58, %s59
      %p71 = scmp.eq.s32.totalorder %s28, 1
      %p72 = por %p70, %p71
      %p74 = scmp.ne.s32.totalorder %s59, %s73
      %p75 = scmp.eq.s32.totalorder %s28, 0
      %p76 = por %p74, %p75
      %s78 = sadd.s32 %s77, 1
      %p81 = scmp.eq.s32.totalorder %s22, 1
      %p82 = scmp.ne.s32.totalorder %s77, %s79
      %p83 = scmp.eq.s32.totalorder %s22, 0
      %p84 = por %p82, %p83
      %p85 = scmp.ne.s32.totalorder %s77, %s79
      %p86 = scmp.eq.s32.totalorder %s27, 1
      %p87 = por %p85, %p86
      %p88 = scmp.ne.s32.totalorder %s79, %s80
      %p89 = scmp.eq.s32.totalorder %s27, 0
      %p90 = por %p88, %p89
      %p91 = scmp.ne.s32.totalorder %s79, %s80
      %p92 = scmp.eq.s32.totalorder %s28, 1
      %p93 = por %p91, %p92
      %p95 = scmp.ne.s32.totalorder %s80, %s94
      %p96 = scmp.eq.s32.totalorder %s28, 0
      %p97 = por %p95, %p96
      %s99 = sadd.s32 %s98, 1
      %p102 = scmp.eq.s32.totalorder %s22, 1
      %p103 = scmp.ne.s32.totalorder %s98, %s100
      %p104 = scmp.eq.s32.totalorder %s22, 0
      %p105 = por %p103, %p104
      %p106 = scmp.ne.s32.totalorder %s98, %s100
      %p107 = scmp.eq.s32.totalorder %s27, 1
      %p108 = por %p106, %p107
      %p109 = scmp.ne.s32.totalorder %s100, %s101
      %p110 = scmp.eq.s32.totalorder %s27, 0
      %p111 = por %p109, %p110
      %p112 = scmp.ne.s32.totalorder %s100, %s101
      %p113 = scmp.eq.s32.totalorder %s28, 1
      %p114 = por %p112, %p113
      %p116 = scmp.ne.s32.totalorder %s101, %s115
      %p117 = scmp.eq.s32.totalorder %s28, 0
      %p118 = por %p116, %p117
      %s120 = sadd.s32 %s119, 1
      %p123 = scmp.eq.s32.totalorder %s22, 1
      %p124 = scmp.ne.s32.totalorder %s119, %s121
      %p125 = scmp.eq.s32.totalorder %s22, 0
      %p126 = por %p124, %p125
      %p127 = scmp.ne.s32.totalorder %s119, %s121
      %p128 = scmp.eq.s32.totalorder %s27, 1
      %p129 = por %p127, %p128
      %p130 = scmp.ne.s32.totalorder %s121, %s122
      %p131 = scmp.eq.s32.totalorder %s27, 0
      %p132 = por %p130, %p131
      %p133 = scmp.ne.s32.totalorder %s121, %s122
      %p134 = scmp.eq.s32.totalorder %s28, 1
      %p135 = por %p133, %p134
      %p137 = scmp.ne.s32.totalorder %s122, %s136
      %p138 = scmp.eq.s32.totalorder %s28, 0
      %p139 = por %p137, %p138
      %s141 = sadd.s32 %s140, 1
      %p144 = scmp.eq.s32.totalorder %s22, 1
      %p145 = scmp.ne.s32.totalorder %s140, %s142
      %p146 = scmp.eq.s32.totalorder %s22, 0
      %p147 = por %p145, %p146
      %p148 = scmp.ne.s32.totalorder %s140, %s142
      %p149 = scmp.eq.s32.totalorder %s27, 1
      %p150 = por %p148, %p149
      %p151 = scmp.ne.s32.totalorder %s142, %s143
      %p152 = scmp.eq.s32.totalorder %s27, 0
      %p153 = por %p151, %p152
      %p154 = scmp.ne.s32.totalorder %s142, %s143
      %p155 = scmp.eq.s32.totalorder %s28, 1
      %p156 = por %p154, %p155
      %p158 = scmp.ne.s32.totalorder %s143, %s157
      %p159 = scmp.eq.s32.totalorder %s28, 0
      %p160 = por %p158, %p159
      %s162 = sadd.s32 %s161, 1
      %p165 = scmp.eq.s32.totalorder %s22, 1
      %p166 = scmp.ne.s32.totalorder %s161, %s163
      %p167 = scmp.eq.s32.totalorder %s22, 0
      %p168 = por %p166, %p167
      %p169 = scmp.ne.s32.totalorder %s161, %s163
      %p170 = scmp.eq.s32.totalorder %s27, 1
      %p171 = por %p169, %p170
      %p172 = scmp.ne.s32.totalorder %s163, %s164
      %p173 = scmp.eq.s32.totalorder %s27, 0
      %p174 = por %p172, %p173
      %p175 = scmp.ne.s32.totalorder %s163, %s164
      %p176 = scmp.eq.s32.totalorder %s28, 1
      %p177 = por %p175, %p176
      %p179 = scmp.ne.s32.totalorder %s164, %s178
      %p180 = scmp.eq.s32.totalorder %s28, 0
      %p181 = por %p179, %p180
      %s183 = sadd.s32 %s182, 1
      %p186 = scmp.eq.s32.totalorder %s22, 1
      %p187 = scmp.ne.s32.totalorder %s182, %s184
      %p188 = scmp.eq.s32.totalorder %s22, 0
      %p189 = por %p187, %p188
      %p190 = scmp.ne.s32.totalorder %s182, %s184
      %p191 = scmp.eq.s32.totalorder %s27, 1
      %p192 = por %p190, %p191
      %p193 = scmp.ne.s32.totalorder %s184, %s185
      %p194 = scmp.eq.s32.totalorder %s27, 0
      %p195 = por %p193, %p194
      %p196 = scmp.ne.s32.totalorder %s184, %s185
      %p197 = scmp.eq.s32.totalorder %s28, 1
      %p198 = por %p196, %p197
      %p200 = scmp.ne.s32.totalorder %s185, %s199
      %p201 = scmp.eq.s32.totalorder %s28, 0
      %p202 = por %p200, %p201
      %s204 = sadd.s32 %s203, 1
      %p207 = scmp.eq.s32.totalorder %s22, 1
      %p208 = scmp.ne.s32.totalorder %s203, %s205
      %p209 = scmp.eq.s32.totalorder %s22, 0
      %p210 = por %p208, %p209
      %p211 = scmp.ne.s32.totalorder %s203, %s205
      %p212 = scmp.eq.s32.totalorder %s27, 1
      %p213 = por %p211, %p212
      %p214 = scmp.ne.s32.totalorder %s205, %s206
      %p215 = scmp.eq.s32.totalorder %s27, 0
      %p216 = por %p214, %p215
      %p217 = scmp.ne.s32.totalorder %s205, %s206
      %p218 = scmp.eq.s32.totalorder %s28, 1
      %p219 = por %p217, %p218
      %p221 = scmp.ne.s32.totalorder %s206, %s220
      %p222 = scmp.eq.s32.totalorder %s28, 0
      %p223 = por %p221, %p222
      %s225 = sadd.s32 %s224, 1
      %p228 = scmp.eq.s32.totalorder %s22, 1
      %p229 = scmp.ne.s32.totalorder %s224, %s226
      %p230 = scmp.eq.s32.totalorder %s22, 0
      %p231 = por %p229, %p230
      %p232 = scmp.ne.s32.totalorder %s224, %s226
      %p233 = scmp.eq.s32.totalorder %s27, 1
      %p234 = por %p232, %p233
      %p235 = scmp.ne.s32.totalorder %s226, %s227
      %p236 = scmp.eq.s32.totalorder %s27, 0
      %p237 = por %p235, %p236
      %p238 = scmp.ne.s32.totalorder %s226, %s227
      %p239 = scmp.eq.s32.totalorder %s28, 1
      %p240 = por %p238, %p239
      %p242 = scmp.ne.s32.totalorder %s227, %s241
      %p243 = scmp.eq.s32.totalorder %s28, 0
      %p244 = por %p242, %p243
      %s246 = sadd.s32 %s245, 1
      %p249 = scmp.eq.s32.totalorder %s22, 1
      %p250 = scmp.ne.s32.totalorder %s245, %s247
      %p251 = scmp.eq.s32.totalorder %s22, 0
      %p252 = por %p250, %p251
      %p253 = scmp.ne.s32.totalorder %s245, %s247
      %p254 = scmp.eq.s32.totalorder %s27, 1
      %p255 = por %p253, %p254
      %p256 = scmp.ne.s32.totalorder %s247, %s248
      %p257 = scmp.eq.s32.totalorder %s27, 0
      %p258 = por %p256, %p257
      %p259 = scmp.ne.s32.totalorder %s247, %s248
      %p260 = scmp.eq.s32.totalorder %s28, 1
      %p261 = por %p259, %p260
      %p263 = scmp.ne.s32.totalorder %s248, %s262
      %p264 = scmp.eq.s32.totalorder %s28, 0
      %p265 = por %p263, %p264
      %s267 = sadd.s32 %s266, 1
      %p270 = scmp.eq.s32.totalorder %s22, 1
      %p271 = scmp.ne.s32.totalorder %s266, %s268
      %p272 = scmp.eq.s32.totalorder %s22, 0
      %p273 = por %p271, %p272
      %p274 = scmp.ne.s32.totalorder %s266, %s268
      %p275 = scmp.eq.s32.totalorder %s27, 1
      %p276 = por %p274, %p275
      %p277 = scmp.ne.s32.totalorder %s268, %s269
      %p278 = scmp.eq.s32.totalorder %s27, 0
      %p279 = por %p277, %p278
      %p280 = scmp.ne.s32.totalorder %s268, %s269
      %p281 = scmp.eq.s32.totalorder %s28, 1
      %p282 = por %p280, %p281
      %p284 = scmp.ne.s32.totalorder %s269, %s283
      %p285 = scmp.eq.s32.totalorder %s28, 0
      %p286 = por %p284, %p285
      %s288 = sadd.s32 %s287, 1
      %p291 = scmp.eq.s32.totalorder %s22, 1
      %p292 = scmp.ne.s32.totalorder %s287, %s289
      %p293 = scmp.eq.s32.totalorder %s22, 0
      %p294 = por %p292, %p293
      %p295 = scmp.ne.s32.totalorder %s287, %s289
      %p296 = scmp.eq.s32.totalorder %s27, 1
      %p297 = por %p295, %p296
      %p298 = scmp.ne.s32.totalorder %s289, %s290
      %p299 = scmp.eq.s32.totalorder %s27, 0
      %p300 = por %p298, %p299
      %p301 = scmp.ne.s32.totalorder %s289, %s290
      %p302 = scmp.eq.s32.totalorder %s28, 1
      %p303 = por %p301, %p302
      %p305 = scmp.ne.s32.totalorder %s290, %s304
      %p306 = scmp.eq.s32.totalorder %s28, 0
      %p307 = por %p305, %p306
      %s309 = sadd.s32 %s308, 1
      %p312 = scmp.eq.s32.totalorder %s22, 1
      %p313 = scmp.ne.s32.totalorder %s308, %s310
      %p314 = scmp.eq.s32.totalorder %s22, 0
      %p315 = por %p313, %p314
      %p316 = scmp.ne.s32.totalorder %s308, %s310
      %p317 = scmp.eq.s32.totalorder %s27, 1
      %p318 = por %p316, %p317
      %p319 = scmp.ne.s32.totalorder %s310, %s311
      %p320 = scmp.eq.s32.totalorder %s27, 0
      %p321 = por %p319, %p320
      %p322 = scmp.ne.s32.totalorder %s310, %s311
      %p323 = scmp.eq.s32.totalorder %s28, 1
      %p324 = por %p322, %p323
      %p326 = scmp.ne.s32.totalorder %s311, %s325
      %p327 = scmp.eq.s32.totalorder %s28, 0
      %p328 = por %p326, %p327
      %s330 = sadd.s32 %s329, 1
      %p333 = scmp.eq.s32.totalorder %s22, 1
      %p334 = scmp.ne.s32.totalorder %s329, %s331
      %p335 = scmp.eq.s32.totalorder %s22, 0
      %p336 = por %p334, %p335
      %p337 = scmp.ne.s32.totalorder %s329, %s331
      %p338 = scmp.eq.s32.totalorder %s27, 1
      %p339 = por %p337, %p338
      %p340 = scmp.ne.s32.totalorder %s331, %s332
      %p341 = scmp.eq.s32.totalorder %s27, 0
      %p342 = por %p340, %p341
      %p343 = scmp.ne.s32.totalorder %s331, %s332
      %p344 = scmp.eq.s32.totalorder %s28, 1
      %p345 = por %p343, %p344
      %p347 = scmp.ne.s32.totalorder %s332, %s346
      %p348 = scmp.eq.s32.totalorder %s28, 0
      %p349 = por %p347, %p348
      %s351 = sadd.s32 %s350, 1
      %p354 = scmp.eq.s32.totalorder %s22, 1
      %p355 = scmp.ne.s32.totalorder %s350, %s352
      %p356 = scmp.eq.s32.totalorder %s22, 0
      %p357 = por %p355, %p356
      %p358 = scmp.ne.s32.totalorder %s350, %s352
      %p359 = scmp.eq.s32.totalorder %s27, 1
      %p360 = por %p358, %p359
      %p361 = scmp.ne.s32.totalorder %s352, %s353
      %p362 = scmp.eq.s32.totalorder %s27, 0
      %p363 = por %p361, %p362
      %p364 = scmp.ne.s32.totalorder %s352, %s353
      %p365 = scmp.eq.s32.totalorder %s28, 1
      %p366 = por %p364, %p365
      %p368 = scmp.ne.s32.totalorder %s353, %s367
      %p369 = scmp.eq.s32.totalorder %s28, 0
      %p370 = por %p368, %p369
      %p371 = scmp.le.s32.totalorder 1, %s22
      %p372 = scmp.lt.s32.totalorder %s22, 3
      %p373 = pnand %p371, %p372
      %p374 = pneg %p373
      // Predicated region
      $region9: #{custom_bert_forward.1} parent=5 // pred_check
        _
      $region10: #{custom_bert_forward.1} parent=5 // pred_check_branch
        %376 = sbr.rel (%p373) target = $region12
      $region11: #{custom_bert_forward.1} parent=5 // pred_region
        %s377 = ssub.s32 %s22, 1
        // Predicated region
        $region13: #{custom_bert_forward.1} parent=11 // pred_check
          %p378 = pneg %p69
        $region14: #{custom_bert_forward.1} parent=11 // pred_check_branch
          %380 = sbr.rel (%p378) target = $region16
        $region15: #{custom_bert_forward.1} parent=11 // pred_region
          _
        $region16: #{custom_bert_forward.1} parent=11 // pred_fallthru
          _
        // Predicated region
        $region17: #{custom_bert_forward.1} parent=11 // pred_check
          %p381 = pneg %p90
        $region18: #{custom_bert_forward.1} parent=11 // pred_check_branch
          %383 = sbr.rel (%p381) target = $region20
        $region19: #{custom_bert_forward.1} parent=11 // pred_region
          _
        $region20: #{custom_bert_forward.1} parent=11 // pred_fallthru
          _
        // Predicated region
        $region21: #{custom_bert_forward.1} parent=11 // pred_check
          %p384 = pneg %p111
        $region22: #{custom_bert_forward.1} parent=11 // pred_check_branch
          %386 = sbr.rel (%p384) target = $region24
        $region23: #{custom_bert_forward.1} parent=11 // pred_region
          _
        $region24: #{custom_bert_forward.1} parent=11 // pred_fallthru
          _
        // Predicated region
        $region25: #{custom_bert_forward.1} parent=11 // pred_check
          %p387 = pneg %p132
        $region26: #{custom_bert_forward.1} parent=11 // pred_check_branch
          %389 = sbr.rel (%p387) target = $region28
        $region27: #{custom_bert_forward.1} parent=11 // pred_region
          _
        $region28: #{custom_bert_forward.1} parent=11 // pred_fallthru
          _
        // Predicated region
        $region29: #{custom_bert_forward.1} parent=11 // pred_check
          %p390 = pneg %p153
        $region30: #{custom_bert_forward.1} parent=11 // pred_check_branch
          %392 = sbr.rel (%p390) target = $region32
        $region31: #{custom_bert_forward.1} parent=11 // pred_region
          _
        $region32: #{custom_bert_forward.1} parent=11 // pred_fallthru
          _
        // Predicated region
        $region33: #{custom_bert_forward.1} parent=11 // pred_check
          %p393 = pneg %p174
        $region34: #{custom_bert_forward.1} parent=11 // pred_check_branch
          %395 = sbr.rel (%p393) target = $region36
        $region35: #{custom_bert_forward.1} parent=11 // pred_region
          _
        $region36: #{custom_bert_forward.1} parent=11 // pred_fallthru
          _
        // Predicated region
        $region37: #{custom_bert_forward.1} parent=11 // pred_check
          %p396 = pneg %p195
        $region38: #{custom_bert_forward.1} parent=11 // pred_check_branch
          %398 = sbr.rel (%p396) target = $region40
        $region39: #{custom_bert_forward.1} parent=11 // pred_region
          _
        $region40: #{custom_bert_forward.1} parent=11 // pred_fallthru
          _
        // Predicated region
        $region41: #{custom_bert_forward.1} parent=11 // pred_check
          %p399 = pneg %p216
        $region42: #{custom_bert_forward.1} parent=11 // pred_check_branch
          %401 = sbr.rel (%p399) target = $region44
        $region43: #{custom_bert_forward.1} parent=11 // pred_region
          _
        $region44: #{custom_bert_forward.1} parent=11 // pred_fallthru
          _
        // Predicated region
        $region45: #{custom_bert_forward.1} parent=11 // pred_check
          %p402 = pneg %p237
        $region46: #{custom_bert_forward.1} parent=11 // pred_check_branch
          %404 = sbr.rel (%p402) target = $region48
        $region47: #{custom_bert_forward.1} parent=11 // pred_region
          _
        $region48: #{custom_bert_forward.1} parent=11 // pred_fallthru
          _
        // Predicated region
        $region49: #{custom_bert_forward.1} parent=11 // pred_check
          %p405 = pneg %p258
        $region50: #{custom_bert_forward.1} parent=11 // pred_check_branch
          %407 = sbr.rel (%p405) target = $region52
        $region51: #{custom_bert_forward.1} parent=11 // pred_region
          _
        $region52: #{custom_bert_forward.1} parent=11 // pred_fallthru
          _
        // Predicated region
        $region53: #{custom_bert_forward.1} parent=11 // pred_check
          %p408 = pneg %p279
        $region54: #{custom_bert_forward.1} parent=11 // pred_check_branch
          %410 = sbr.rel (%p408) target = $region56
        $region55: #{custom_bert_forward.1} parent=11 // pred_region
          _
        $region56: #{custom_bert_forward.1} parent=11 // pred_fallthru
          _
        // Predicated region
        $region57: #{custom_bert_forward.1} parent=11 // pred_check
          %p411 = pneg %p300
        $region58: #{custom_bert_forward.1} parent=11 // pred_check_branch
          %413 = sbr.rel (%p411) target = $region60
        $region59: #{custom_bert_forward.1} parent=11 // pred_region
          _
        $region60: #{custom_bert_forward.1} parent=11 // pred_fallthru
          _
        // Predicated region
        $region61: #{custom_bert_forward.1} parent=11 // pred_check
          %p414 = pneg %p321
        $region62: #{custom_bert_forward.1} parent=11 // pred_check_branch
          %416 = sbr.rel (%p414) target = $region64
        $region63: #{custom_bert_forward.1} parent=11 // pred_region
          _
        $region64: #{custom_bert_forward.1} parent=11 // pred_fallthru
          _
        // Predicated region
        $region65: #{custom_bert_forward.1} parent=11 // pred_check
          %p417 = pneg %p342
        $region66: #{custom_bert_forward.1} parent=11 // pred_check_branch
          %419 = sbr.rel (%p417) target = $region68
        $region67: #{custom_bert_forward.1} parent=11 // pred_region
          _
        $region68: #{custom_bert_forward.1} parent=11 // pred_fallthru
          _
      $region12: #{custom_bert_forward.1} parent=5 // pred_fallthru
        _
      %p420 = scmp.lt.s32.totalorder %s22, 2
      // Predicated region
      $region69: #{custom_bert_forward.1} parent=5 // pred_check
        %p421 = pneg %p420
      $region70: #{custom_bert_forward.1} parent=5 // pred_check_branch
        %423 = sbr.rel (%p421) target = $region72
      $region71: #{custom_bert_forward.1} parent=5 // pred_region
        // Predicated region
        $region73: #{custom_bert_forward.1} parent=71 // pred_check
          %p424 = pneg %p42
        $region74: #{custom_bert_forward.1} parent=71 // pred_check_branch
          %426 = sbr.rel (%p424) target = $region76
        $region75: #{custom_bert_forward.1} parent=71 // pred_region
          %p427 = scmp.lt.s32.totalorder %s22, 1
          %s428 = scalar_select %p427, %s22, 1
          %s429 = smul.addr %s428, 2
          %s430 = smul.addr %s429, 8
          %s431 = scalar_lea.vmem %s0, %s430
        $region76: #{custom_bert_forward.1} parent=71 // pred_fallthru
          _
      $region72: #{custom_bert_forward.1} parent=5 // pred_fallthru
        _
      %p432 = scmp.le.s32.totalorder 1, %s22
      %p433 = scmp.lt.s32.totalorder %s22, 3
      %p434 = pnand %p432, %p433
      %p435 = pneg %p434
      // Predicated region
      $region77: #{custom_bert_forward.1} parent=5 // pred_check
        _
      $region78: #{custom_bert_forward.1} parent=5 // pred_check_branch
        %437 = sbr.rel (%p434) target = $region80
      $region79: #{custom_bert_forward.1} parent=5 // pred_region
        %s438 = ssub.s32 %s22, 1
        %p439 = scmp.lt.s32.totalorder %s27, 1
        %s440 = scalar_select %p439, %s27, 1
        %s441 = smul.addr %s440, 2
        %s442 = smul.addr %s441, 8
        %s443 = scalar_lea.vmem %s0, %s442
        %p444 = pneg %p48
        %p445 = pneg %p45
        %p446 = pneg %p69
        %p447 = pneg %p66
        %p448 = pneg %p90
        %p449 = pneg %p87
        %p450 = pneg %p111
        %p451 = pneg %p108
        %p452 = pneg %p132
        %p453 = pneg %p129
        %p454 = pneg %p153
        %p455 = pneg %p150
        %p456 = pneg %p174
        %p457 = pneg %p171
        %p458 = pneg %p195
        %p459 = pneg %p192
        %p460 = pneg %p216
        %p461 = pneg %p213
        %p462 = pneg %p237
        %p463 = pneg %p234
        %p464 = pneg %p258
        %p465 = pneg %p255
        %p466 = pneg %p279
        %p467 = pneg %p276
        %p468 = pneg %p300
        %p469 = pneg %p297
        %p470 = pneg %p321
        %p471 = pneg %p318
        %p472 = pneg %p342
        %p473 = pneg %p339
        %p474 = pneg %p363
        %p475 = pneg %p360
        %p476 = scmp.lt.s32.totalorder %s27, 1
        %s477 = scalar_select %p476, %s27, 1
        %s478 = smul.addr %s477, 2
        %s479 = smul.addr %s478, 8
        %s480 = scalar_lea.vmem %s0, %s479
        %p481 = scmp.eq.s32.totalorder %s27, 0
        // Predicated region
        $region81: #{custom_bert_forward.1} parent=79 // pred_check
          %p482 = pneg %p481
        $region82: #{custom_bert_forward.1} parent=79 // pred_check_branch
          %484 = sbr.rel (%p482) target = $region84
        $region83: #{custom_bert_forward.1} parent=79 // pred_region
          %vm485 = vcmask 254976
          %486 = vst.msk [vmem:[#allocation2] sm:$0x3] %vm485, 0.0
          %487 = vst [vmem:[#allocation3] sm:$0x3] 0.0
        $region84: #{custom_bert_forward.1} parent=79 // pred_fallthru
          _
        %v488 = vld [vmem:[%s480] sm:$0xff]
        %v489 = vld [vmem:[%s480 + $0x8] sm:$0xff]
        %v490 = vlaneseq
        %v491 = vand.u32 %v490, 127
        %492 = vset.pattern.permute.xlu0 0
        %493 = vperm.xlu0 %492, %v488
        %v494 = vpop.permute.xlu0 %493
        %495 = vset.pattern.permute.xlu0 0
        %496 = vperm.xlu0 %495, %v489
        %v497 = vpop.permute.xlu0 %496
        %vm498 = vcmp.eq.s32.totalorder %v494, %v491
        %vm499 = vcmp.eq.s32.totalorder %v497, %v491
        %v500 = vsel %vm498, 1, 0
        %v501 = vsel %vm499, 1, 0
        %v502 = vcvt.s32.f32 %v500
        %v503 = vcvt.s32.f32 %v501
        %v504 = vld [vmem:[%s1] sm:$0xff]
        %v505 = vld [vmem:[%s1 + $0x8] sm:$0xff]
        %v506 = vld [vmem:[%s1 + $0x10] sm:$0xff]
        %v507 = vld [vmem:[%s1 + $0x18] sm:$0xff]
        %v508 = vld [vmem:[%s1 + $0x20] sm:$0xff]
        %v509 = vld [vmem:[%s1 + $0x28] sm:$0xff]
        %v510 = vld [vmem:[%s1 + $0x30] sm:$0xff]
        %v511 = vld [vmem:[%s1 + $0x38] sm:$0xff]
        %v512 = vld [vmem:[%s2] sm:$0xff]
        %v513 = vld [vmem:[%s2 + $0x8] sm:$0xff]
        %vm514 = vcmask 523264
        %v516 = vsel %vm514, %v502, 0
        %v519 = vsel %vm514, %v503, 0
        %521 = vmatprep.subr.mxu0 0.0
        %522 = vmatpush1.msra.mxu0 %v504
        %523 = vmatprep.subr.mxu0 0.0
        %524 = vmatpush1.msra.mxu0 %v505
        %525 = vmatprep.subr.mxu0 0.0
        %526 = vmatpush1.msra.mxu0 %v506
        %527 = vmatprep.subr.mxu0 0.0
        %528 = vmatpush1.msra.mxu0 %v507
        %529 = vmatprep.subr.mxu0 0.0
        %530 = vmatpush1.msra.mxu0 %v508
        %531 = vmatprep.subr.mxu0 0.0
        %532 = vmatpush1.msra.mxu0 %v509
        %533 = vmatprep.subr.mxu0 0.0
        %534 = vmatpush1.msra.mxu0 %v510
        %535 = vmatprep.subr.mxu0 0.0
        %536 = vmatpush1.msra.mxu0 %v511
        %537 = vmatprep.subr.mxu0 0.0
        %538 = vmatpush1.msra.mxu0 0.0
        %539 = vmatprep.subr.mxu0 0.0
        %540 = vmatpush1.msra.mxu0 0.0
        %541 = vmatprep.subr.mxu0 0.0
        %542 = vmatpush1.msra.mxu0 0.0
        %543 = vmatprep.subr.mxu0 0.0
        %544 = vmatpush1.msra.mxu0 0.0
        %545 = vmatprep.subr.mxu0 0.0
        %546 = vmatpush1.msra.mxu0 0.0
        %547 = vmatprep.subr.mxu0 0.0
        %548 = vmatpush1.msra.mxu0 0.0
        %549 = vmatprep.subr.mxu0 0.0
        %550 = vmatpush1.msra.mxu0 0.0
        %551 = vmatprep.subr.mxu0 0.0
        %552 = vmatpush1.msra.mxu0 0.0
        %553 = vmatprep.subr.mxu0 0.0
        %554 = vmatpush1.msra.mxu0 0.0
        %555 = vmatprep.subr.mxu0 0.0
        %556 = vmatpush1.msra.mxu0 0.0
        %557 = vmatprep.subr.mxu0 0.0
        %558 = vmatpush1.msra.mxu0 0.0
        %559 = vmatprep.subr.mxu0 0.0
        %560 = vmatpush1.msra.mxu0 0.0
        %561 = vmatprep.subr.mxu0 0.0
        %562 = vmatpush1.msra.mxu0 0.0
        %563 = vmatprep.subr.mxu0 0.0
        %564 = vmatpush1.msra.mxu0 0.0
        %565 = vmatprep.subr.mxu0 0.0
        %566 = vmatpush1.msra.mxu0 0.0
        %567 = vmatprep.subr.mxu0 0.0
        %568 = vmatpush1.msra.mxu0 0.0
        %569 = vmatprep.subr.mxu0 0.0
        %570 = vmatpush1.msra.mxu0 0.0
        %571 = vmatprep.subr.mxu0 0.0
        %572 = vmatpush1.msra.mxu0 0.0
        %573 = vmatprep.subr.mxu0 0.0
        %574 = vmatpush1.msra.mxu0 0.0
        %575 = vmatprep.subr.mxu0 0.0
        %576 = vmatpush1.msra.mxu0 0.0
        %577 = vmatprep.subr.mxu0 0.0
        %578 = vmatpush1.msra.mxu0 0.0
        %579 = vmatprep.subr.mxu0 0.0
        %580 = vmatpush1.msra.mxu0 0.0
        %581 = vmatprep.subr.mxu0 0.0
        %582 = vmatpush1.msra.mxu0 0.0
        %583 = vmatprep.subr.mxu0 0.0
        %584 = vmatpush1.msra.mxu0 0.0
        %585 = vmatprep.mubr.f32.mxu0 0.0
        %586 = vmatmul.mubr.f32.gmra.mrb[0].mxu0 %v516
        %v587 = vpop.f32.mrb[0].mxu0
        %v588 = vadd.f32 %v512, %v587
        %v589 = vpop.f32.mrb[0].mxu0
        %590 = vmatprep.mubr.f32.mxu0 0.0
        %591 = vmatmul.mubr.f32.gmra.mrb[0].mxu0 %v519
        %v592 = vpop.f32.mrb[0].mxu0
        %v593 = vadd.f32 %v513, %v592
        %v594 = vpop.f32.mrb[0].mxu0
        %595 = vdwg.mxu0
        %v596 = vld [vmem:[%s3] sm:$0x1]
        %v597 = vld [vmem:[%s3 + $0x1] sm:$0x1]
        %vm598 = vcmask 261120
        %v599 = vsel %vm598, %v588, 0.0
        %600 = vadd.xlane.f32.xlu0 %v599
        %v601 = vpop.xlane.xlu0 %600
        %v602 = vsel %vm598, %v593, 0.0
        %603 = vadd.xlane.f32.xlu0 %v602
        %v604 = vpop.xlane.xlu0 %603
        %v605 = vrcp.pop 32.0
        %v606 = vmul.f32 %v601, %v605
        %v607 = vmul.f32 %v604, %v605
        %v608 = vsub.f32 %v588, %v606
        %v609 = vsub.f32 %v593, %v607
        %v610 = vmul.f32 %v608, %v608
        %v611 = vmul.f32 %v609, %v609
        %v612 = vsel %vm598, %v610, 0.0
        %613 = vadd.xlane.f32.xlu0 %v612
        %v614 = vpop.xlane.xlu0 %613
        %v615 = vsel %vm598, %v611, 0.0
        %616 = vadd.xlane.f32.xlu0 %v615
        %v617 = vpop.xlane.xlu0 %616
        %v618 = vmul.f32 %v614, %v605
        %v619 = vmul.f32 %v617, %v605
        %v620 = vadd.f32 %v618, 1e-12
        %v621 = vadd.f32 %v619, 1e-12
        %v622 = vrsqrt.pop %v620
        %v623 = vrsqrt.pop %v621
        %v624 = vmul.f32 %v608, %v622
        %v625 = vmul.f32 %v609, %v623
        %v626 = vlaneseq
        %v627 = vshrl.u32 %v626, 7
        %v628 = vsub.s32 0, %v627
        %v629 = vrot.slane %v596, %v628
        %v630 = vmul.f32 %v624, %v629
        %v631 = vmul.f32 %v625, %v629
        %v632 = vlaneseq
        %v633 = vshrl.u32 %v632, 7
        %v634 = vsub.s32 0, %v633
        %v635 = vrot.slane %v597, %v634
        %v636 = vadd.f32 %v630, %v635
        %v637 = vadd.f32 %v631, %v635
        %v638 = vld [vmem:[%s4] sm:$0xff]
        %v639 = vld [vmem:[%s4 + $0x8] sm:$0xff]
        %v640 = vld [vmem:[%s4 + $0x10] sm:$0xff]
        %v641 = vld [vmem:[%s4 + $0x18] sm:$0xff]
        %v642 = vld [vmem:[%s5] sm:$0x1]
        %v643 = vld [vmem:[%s6] sm:$0xff]
        %v644 = vld [vmem:[%s6 + $0x8] sm:$0xff]
        %v645 = vld [vmem:[%s6 + $0x10] sm:$0xff]
        %v646 = vld [vmem:[%s6 + $0x18] sm:$0xff]
        %v647 = vld [vmem:[%s10] sm:$0x3f]
        %v649 = vlaneseq
        %v650 = vshrl.u32 %v649, 7
        %v651 = vsub.s32 0, %v650
        %v652 = vrot.slane %v642, %v651
        %v655 = vsel %vm598, %v636, 0
        %v658 = vsel %vm598, %v637, 0
        %660 = vmatprep.subr.mxu0 0.0
        %661 = vmatpush1.msra.mxu0 %v638
        %662 = vmatprep.subr.mxu0 0.0
        %663 = vmatpush1.msra.mxu0 %v639
        %664 = vmatprep.subr.mxu0 0.0
        %665 = vmatpush1.msra.mxu0 %v640
        %666 = vmatprep.subr.mxu0 0.0
        %667 = vmatpush1.msra.mxu0 %v641
        %668 = vmatprep.subr.mxu0 0.0
        %669 = vmatpush1.msra.mxu0 0.0
        %670 = vmatprep.subr.mxu0 0.0
        %671 = vmatpush1.msra.mxu0 0.0
        %672 = vmatprep.subr.mxu0 0.0
        %673 = vmatpush1.msra.mxu0 0.0
        %674 = vmatprep.subr.mxu0 0.0
        %675 = vmatpush1.msra.mxu0 0.0
        %676 = vmatprep.subr.mxu0 0.0
        %677 = vmatpush1.msra.mxu0 0.0
        %678 = vmatprep.subr.mxu0 0.0
        %679 = vmatpush1.msra.mxu0 0.0
        %680 = vmatprep.subr.mxu0 0.0
        %681 = vmatpush1.msra.mxu0 0.0
        %682 = vmatprep.subr.mxu0 0.0
        %683 = vmatpush1.msra.mxu0 0.0
        %684 = vmatprep.subr.mxu0 0.0
        %685 = vmatpush1.msra.mxu0 0.0
        %686 = vmatprep.subr.mxu0 0.0
        %687 = vmatpush1.msra.mxu0 0.0
        %688 = vmatprep.subr.mxu0 0.0
        %689 = vmatpush1.msra.mxu0 0.0
        %690 = vmatprep.subr.mxu0 0.0
        %691 = vmatpush1.msra.mxu0 0.0
        %692 = vmatprep.subr.mxu0 0.0
        %693 = vmatpush1.msra.mxu0 0.0
        %694 = vmatprep.subr.mxu0 0.0
        %695 = vmatpush1.msra.mxu0 0.0
        %696 = vmatprep.subr.mxu0 0.0
        %697 = vmatpush1.msra.mxu0 0.0
        %698 = vmatprep.subr.mxu0 0.0
        %699 = vmatpush1.msra.mxu0 0.0
        %700 = vmatprep.subr.mxu0 0.0
        %701 = vmatpush1.msra.mxu0 0.0
        %702 = vmatprep.subr.mxu0 0.0
        %703 = vmatpush1.msra.mxu0 0.0
        %704 = vmatprep.subr.mxu0 0.0
        %705 = vmatpush1.msra.mxu0 0.0
        %706 = vmatprep.subr.mxu0 0.0
        %707 = vmatpush1.msra.mxu0 0.0
        %708 = vmatprep.subr.mxu0 0.0
        %709 = vmatpush1.msra.mxu0 0.0
        %710 = vmatprep.subr.mxu0 0.0
        %711 = vmatpush1.msra.mxu0 0.0
        %712 = vmatprep.subr.mxu0 0.0
        %713 = vmatpush1.msra.mxu0 0.0
        %714 = vmatprep.subr.mxu0 0.0
        %715 = vmatpush1.msra.mxu0 0.0
        %716 = vmatprep.subr.mxu0 0.0
        %717 = vmatpush1.msra.mxu0 0.0
        %718 = vmatprep.subr.mxu0 0.0
        %719 = vmatpush1.msra.mxu0 0.0
        %720 = vmatprep.subr.mxu0 0.0
        %721 = vmatpush1.msra.mxu0 0.0
        %722 = vmatprep.subr.mxu0 0.0
        %723 = vmatpush1.msra.mxu0 0.0
        %724 = vmatprep.mubr.f32.mxu0 0.0
        %725 = vmatmul.mubr.f32.gmra.mrb[0].mxu0 %v655
        %v726 = vpop.f32.mrb[0].mxu0
        %v727 = vadd.f32 %v652, %v726
        %v728 = vpop.f32.mrb[0].mxu0
        %729 = vmatprep.mubr.f32.mxu0 0.0
        %730 = vmatmul.mubr.f32.gmra.mrb[0].mxu0 %v658
        %v731 = vpop.f32.mrb[0].mxu0
        %v732 = vadd.f32 %v652, %v731
        %v733 = vpop.f32.mrb[0].mxu0
        %734 = vdwg.mxu0
        %736 = vrot.lane.b32.xlu0 %v727, 96
        %v737 = vpop.permute.xlu0 %736
        %vm738 = vcmask 130048
        %v739 = vsel %vm738, %v727, 0
        %v741 = vsel %vm738, %v737, 0
        %743 = vmatprep.subr.mxu0 0.0
        %744 = vmatpush1.xpose.msra.mxu0 %v741
        %745 = vmatprep.subr.mxu0 0.0
        %746 = vmatpush1.xpose.msra.mxu0 0.0
        %747 = vmatprep.subr.mxu0 0.0
        %748 = vmatpush1.xpose.msra.mxu0 0.0
        %749 = vmatprep.subr.mxu0 0.0
        %750 = vmatpush1.xpose.msra.mxu0 0.0
        %751 = vmatprep.subr.mxu0 0.0
        %752 = vmatpush1.xpose.msra.mxu0 0.0
        %753 = vmatprep.subr.mxu0 0.0
        %754 = vmatpush1.xpose.msra.mxu0 0.0
        %755 = vmatprep.subr.mxu0 0.0
        %756 = vmatpush1.xpose.msra.mxu0 0.0
        %757 = vmatprep.subr.mxu0 0.0
        %758 = vmatpush1.xpose.msra.mxu0 0.0
        %759 = vmatprep.subr.mxu0 0.0
        %760 = vmatpush1.xpose.msra.mxu0 0.0
        %761 = vmatprep.subr.mxu0 0.0
        %762 = vmatpush1.xpose.msra.mxu0 0.0
        %763 = vmatprep.subr.mxu0 0.0
        %764 = vmatpush1.xpose.msra.mxu0 0.0
        %765 = vmatprep.subr.mxu0 0.0
        %766 = vmatpush1.xpose.msra.mxu0 0.0
        %767 = vmatprep.subr.mxu0 0.0
        %768 = vmatpush1.xpose.msra.mxu0 0.0
        %769 = vmatprep.subr.mxu0 0.0
        %770 = vmatpush1.xpose.msra.mxu0 0.0
        %771 = vmatprep.subr.mxu0 0.0
        %772 = vmatpush1.xpose.msra.mxu0 0.0
        %773 = vmatprep.subr.mxu0 0.0
        %774 = vmatpush1.xpose.msra.mxu0 0.0
        %775 = vmatprep.subr.mxu0 0.0
        %776 = vmatpush1.xpose.msra.mxu0 0.0
        %777 = vmatprep.subr.mxu0 0.0
        %778 = vmatpush1.xpose.msra.mxu0 0.0
        %779 = vmatprep.subr.mxu0 0.0
        %780 = vmatpush1.xpose.msra.mxu0 0.0
        %781 = vmatprep.subr.mxu0 0.0
        %782 = vmatpush1.xpose.msra.mxu0 0.0
        %783 = vmatprep.subr.mxu0 0.0
        %784 = vmatpush1.xpose.msra.mxu0 0.0
        %785 = vmatprep.subr.mxu0 0.0
        %786 = vmatpush1.xpose.msra.mxu0 0.0
        %787 = vmatprep.subr.mxu0 0.0
        %788 = vmatpush1.xpose.msra.mxu0 0.0
        %789 = vmatprep.subr.mxu0 0.0
        %790 = vmatpush1.xpose.msra.mxu0 0.0
        %791 = vmatprep.subr.mxu0 0.0
        %792 = vmatpush1.xpose.msra.mxu0 0.0
        %793 = vmatprep.subr.mxu0 0.0
        %794 = vmatpush1.xpose.msra.mxu0 0.0
        %795 = vmatprep.subr.mxu0 0.0
        %796 = vmatpush1.xpose.msra.mxu0 0.0
        %797 = vmatprep.subr.mxu0 0.0
        %798 = vmatpush1.xpose.msra.mxu0 0.0
        %799 = vmatprep.subr.mxu0 0.0
        %800 = vmatpush1.xpose.msra.mxu0 0.0
        %801 = vmatprep.subr.mxu0 0.0
        %802 = vmatpush1.xpose.msra.mxu0 0.0
        %803 = vmatprep.subr.mxu0 0.0
        %804 = vmatpush1.xpose.msra.mxu0 0.0
        %805 = vmatprep.subr.mxu0 0.0
        %806 = vmatpush1.xpose.msra.mxu0 0.0
        %807 = vmatprep.mubr.f32.mxu0 0.0
        %808 = vmatmul.mubr.f32.gmra.mrb[0].mxu0 %v739
        %v809 = vpop.f32.mrb[0].mxu0
        %v810 = vadd.f32 0.0, %v809
        %v811 = vpop.f32.mrb[0].mxu0
        %812 = vdwg.mxu0
        %814 = vrot.lane.b32.xlu0 %v732, 96
        %v815 = vpop.permute.xlu0 %814
        %v816 = vsel %vm738, %v732, 0
        %v818 = vsel %vm738, %v815, 0
        %820 = vmatprep.subr.mxu0 0.0
        %821 = vmatpush1.xpose.msra.mxu0 %v818
        %822 = vmatprep.subr.mxu0 0.0
        %823 = vmatpush1.xpose.msra.mxu0 0.0
        %824 = vmatprep.subr.mxu0 0.0
        %825 = vmatpush1.xpose.msra.mxu0 0.0
        %826 = vmatprep.subr.mxu0 0.0
        %827 = vmatpush1.xpose.msra.mxu0 0.0
        %828 = vmatprep.subr.mxu0 0.0
        %829 = vmatpush1.xpose.msra.mxu0 0.0
        %830 = vmatprep.subr.mxu0 0.0
        %831 = vmatpush1.xpose.msra.mxu0 0.0
        %832 = vmatprep.subr.mxu0 0.0
        %833 = vmatpush1.xpose.msra.mxu0 0.0
        %834 = vmatprep.subr.mxu0 0.0
        %835 = vmatpush1.xpose.msra.mxu0 0.0
        %836 = vmatprep.subr.mxu0 0.0
        %837 = vmatpush1.xpose.msra.mxu0 0.0
        %838 = vmatprep.subr.mxu0 0.0
        %839 = vmatpush1.xpose.msra.mxu0 0.0
        %840 = vmatprep.subr.mxu0 0.0
        %841 = vmatpush1.xpose.msra.mxu0 0.0
        %842 = vmatprep.subr.mxu0 0.0
        %843 = vmatpush1.xpose.msra.mxu0 0.0
        %844 = vmatprep.subr.mxu0 0.0
        %845 = vmatpush1.xpose.msra.mxu0 0.0
        %846 = vmatprep.subr.mxu0 0.0
        %847 = vmatpush1.xpose.msra.mxu0 0.0
        %848 = vmatprep.subr.mxu0 0.0
        %849 = vmatpush1.xpose.msra.mxu0 0.0
        %850 = vmatprep.subr.mxu0 0.0
        %851 = vmatpush1.xpose.msra.mxu0 0.0
        %852 = vmatprep.subr.mxu0 0.0
        %853 = vmatpush1.xpose.msra.mxu0 0.0
        %854 = vmatprep.subr.mxu0 0.0
        %855 = vmatpush1.xpose.msra.mxu0 0.0
        %856 = vmatprep.subr.mxu0 0.0
        %857 = vmatpush1.xpose.msra.mxu0 0.0
        %858 = vmatprep.subr.mxu0 0.0
        %859 = vmatpush1.xpose.msra.mxu0 0.0
        %860 = vmatprep.subr.mxu0 0.0
        %861 = vmatpush1.xpose.msra.mxu0 0.0
        %862 = vmatprep.subr.mxu0 0.0
        %863 = vmatpush1.xpose.msra.mxu0 0.0
        %864 = vmatprep.subr.mxu0 0.0
        %865 = vmatpush1.xpose.msra.mxu0 0.0
        %866 = vmatprep.subr.mxu0 0.0
        %867 = vmatpush1.xpose.msra.mxu0 0.0
        %868 = vmatprep.subr.mxu0 0.0
        %869 = vmatpush1.xpose.msra.mxu0 0.0
        %870 = vmatprep.subr.mxu0 0.0
        %871 = vmatpush1.xpose.msra.mxu0 0.0
        %872 = vmatprep.subr.mxu0 0.0
        %873 = vmatpush1.xpose.msra.mxu0 0.0
        %874 = vmatprep.subr.mxu0 0.0
        %875 = vmatpush1.xpose.msra.mxu0 0.0
        %876 = vmatprep.subr.mxu0 0.0
        %877 = vmatpush1.xpose.msra.mxu0 0.0
        %878 = vmatprep.subr.mxu0 0.0
        %879 = vmatpush1.xpose.msra.mxu0 0.0
        %880 = vmatprep.subr.mxu0 0.0
        %881 = vmatpush1.xpose.msra.mxu0 0.0
        %882 = vmatprep.subr.mxu0 0.0
        %883 = vmatpush1.xpose.msra.mxu0 0.0
        %884 = vmatprep.mubr.f32.mxu0 0.0
        %885 = vmatmul.mubr.f32.gmra.mrb[0].mxu0 %v816
        %v886 = vpop.f32.mrb[0].mxu0
        %v887 = vadd.f32 0.0, %v886
        %v888 = vpop.f32.mrb[0].mxu0
        %889 = vdwg.mxu0
        %vm890 = vcmask 64512
        %v891 = vsel %vm890, %v810, -inf
        %892 = vmax.xlane.f32.xlu0 %v891
        %v893 = vpop.xlane.xlu0 %892
        %v894 = vsel %vm890, %v887, -inf
        %895 = vmax.xlane.f32.xlu0 %v894
        %v896 = vpop.xlane.xlu0 %895
        %v897 = vsub.f32 %v810, %v893
        %v898 = vsub.f32 %v887, %v896
        %v899 = vmul.f32 %v897, 1.442695
        %v900 = vpow.pop %v899
        %v901 = vmul.f32 %v898, 1.442695
        %v902 = vpow.pop %v901
        %v903 = vsel %vm890, %v900, 0.0
        %904 = vadd.xlane.f32.xlu0 %v903
        %v905 = vpop.xlane.xlu0 %904
        %v906 = vsel %vm890, %v902, 0.0
        %907 = vadd.xlane.f32.xlu0 %v906
        %v908 = vpop.xlane.xlu0 %907
        %v909 = vrcp.pop %v905
        %v910 = vmul.f32 %v900, %v909
        %v911 = vrcp.pop %v908
        %v912 = vmul.f32 %v902, %v911
        %913 = vrot.lane.b32.xlu0 %v727, 64
        %v914 = vpop.permute.xlu0 %913
        %v917 = vsel %vm890, %v910, 0
        %919 = vmatprep.subr.mxu0 0.0
        %920 = vmatpush1.msra.mxu0 %v914
        %921 = vmatprep.subr.mxu0 0.0
        %922 = vmatpush1.msra.mxu0 0.0
        %923 = vmatprep.subr.mxu0 0.0
        %924 = vmatpush1.msra.mxu0 0.0
        %925 = vmatprep.subr.mxu0 0.0
        %926 = vmatpush1.msra.mxu0 0.0
        %927 = vmatprep.subr.mxu0 0.0
        %928 = vmatpush1.msra.mxu0 0.0
        %929 = vmatprep.subr.mxu0 0.0
        %930 = vmatpush1.msra.mxu0 0.0
        %931 = vmatprep.subr.mxu0 0.0
        %932 = vmatpush1.msra.mxu0 0.0
        %933 = vmatprep.subr.mxu0 0.0
        %934 = vmatpush1.msra.mxu0 0.0
        %935 = vmatprep.subr.mxu0 0.0
        %936 = vmatpush1.msra.mxu0 0.0
        %937 = vmatprep.subr.mxu0 0.0
        %938 = vmatpush1.msra.mxu0 0.0
        %939 = vmatprep.subr.mxu0 0.0
        %940 = vmatpush1.msra.mxu0 0.0
        %941 = vmatprep.subr.mxu0 0.0
        %942 = vmatpush1.msra.mxu0 0.0
        %943 = vmatprep.subr.mxu0 0.0
        %944 = vmatpush1.msra.mxu0 0.0
        %945 = vmatprep.subr.mxu0 0.0
        %946 = vmatpush1.msra.mxu0 0.0
        %947 = vmatprep.subr.mxu0 0.0
        %948 = vmatpush1.msra.mxu0 0.0
        %949 = vmatprep.subr.mxu0 0.0
        %950 = vmatpush1.msra.mxu0 0.0
        %951 = vmatprep.subr.mxu0 0.0
        %952 = vmatpush1.msra.mxu0 0.0
        %953 = vmatprep.subr.mxu0 0.0
        %954 = vmatpush1.msra.mxu0 0.0
        %955 = vmatprep.subr.mxu0 0.0
        %956 = vmatpush1.msra.mxu0 0.0
        %957 = vmatprep.subr.mxu0 0.0
        %958 = vmatpush1.msra.mxu0 0.0
        %959 = vmatprep.subr.mxu0 0.0
        %960 = vmatpush1.msra.mxu0 0.0
        %961 = vmatprep.subr.mxu0 0.0
        %962 = vmatpush1.msra.mxu0 0.0
        %963 = vmatprep.subr.mxu0 0.0
        %964 = vmatpush1.msra.mxu0 0.0
        %965 = vmatprep.subr.mxu0 0.0
        %966 = vmatpush1.msra.mxu0 0.0
        %967 = vmatprep.subr.mxu0 0.0
        %968 = vmatpush1.msra.mxu0 0.0
        %969 = vmatprep.subr.mxu0 0.0
        %970 = vmatpush1.msra.mxu0 0.0
        %971 = vmatprep.subr.mxu0 0.0
        %972 = vmatpush1.msra.mxu0 0.0
        %973 = vmatprep.subr.mxu0 0.0
        %974 = vmatpush1.msra.mxu0 0.0
        %975 = vmatprep.subr.mxu0 0.0
        %976 = vmatpush1.msra.mxu0 0.0
        %977 = vmatprep.subr.mxu0 0.0
        %978 = vmatpush1.msra.mxu0 0.0
        %979 = vmatprep.subr.mxu0 0.0
        %980 = vmatpush1.msra.mxu0 0.0
        %981 = vmatprep.subr.mxu0 0.0
        %982 = vmatpush1.msra.mxu0 0.0
        %983 = vmatprep.mubr.f32.mxu0 0.0
        %984 = vmatmul.mubr.f32.gmra.mrb[0].mxu0 %v917
        %v985 = vpop.f32.mrb[0].mxu0
        %v986 = vadd.f32 0.0, %v985
        %v987 = vpop.f32.mrb[0].mxu0
        %988 = vdwg.mxu0
        %989 = vrot.lane.b32.xlu0 %v732, 64
        %v990 = vpop.permute.xlu0 %989
        %v993 = vsel %vm890, %v912, 0
        %995 = vmatprep.subr.mxu0 0.0
        %996 = vmatpush1.msra.mxu0 %v990
        %997 = vmatprep.subr.mxu0 0.0
        %998 = vmatpush1.msra.mxu0 0.0
        %999 = vmatprep.subr.mxu0 0.0
        %1000 = vmatpush1.msra.mxu0 0.0
        %1001 = vmatprep.subr.mxu0 0.0
        %1002 = vmatpush1.msra.mxu0 0.0
        %1003 = vmatprep.subr.mxu0 0.0
        %1004 = vmatpush1.msra.mxu0 0.0
        %1005 = vmatprep.subr.mxu0 0.0
        %1006 = vmatpush1.msra.mxu0 0.0
        %1007 = vmatprep.subr.mxu0 0.0
        %1008 = vmatpush1.msra.mxu0 0.0
        %1009 = vmatprep.subr.mxu0 0.0
        %1010 = vmatpush1.msra.mxu0 0.0
        %1011 = vmatprep.subr.mxu0 0.0
        %1012 = vmatpush1.msra.mxu0 0.0
        %1013 = vmatprep.subr.mxu0 0.0
        %1014 = vmatpush1.msra.mxu0 0.0
        %1015 = vmatprep.subr.mxu0 0.0
        %1016 = vmatpush1.msra.mxu0 0.0
        %1017 = vmatprep.subr.mxu0 0.0
        %1018 = vmatpush1.msra.mxu0 0.0
        %1019 = vmatprep.subr.mxu0 0.0
        %1020 = vmatpush1.msra.mxu0 0.0
        %1021 = vmatprep.subr.mxu0 0.0
        %1022 = vmatpush1.msra.mxu0 0.0
        %1023 = vmatprep.subr.mxu0 0.0
        %1024 = vmatpush1.msra.mxu0 0.0
        %1025 = vmatprep.subr.mxu0 0.0
        %1026 = vmatpush1.msra.mxu0 0.0
        %1027 = vmatprep.subr.mxu0 0.0
        %1028 = vmatpush1.msra.mxu0 0.0
        %1029 = vmatprep.subr.mxu0 0.0
        %1030 = vmatpush1.msra.mxu0 0.0
        %1031 = vmatprep.subr.mxu0 0.0
        %1032 = vmatpush1.msra.mxu0 0.0
        %1033 = vmatprep.subr.mxu0 0.0
        %1034 = vmatpush1.msra.mxu0 0.0
        %1035 = vmatprep.subr.mxu0 0.0
        %1036 = vmatpush1.msra.mxu0 0.0
        %1037 = vmatprep.subr.mxu0 0.0
        %1038 = vmatpush1.msra.mxu0 0.0
        %1039 = vmatprep.subr.mxu0 0.0
        %1040 = vmatpush1.msra.mxu0 0.0
        %1041 = vmatprep.subr.mxu0 0.0
        %1042 = vmatpush1.msra.mxu0 0.0
        %1043 = vmatprep.subr.mxu0 0.0
        %1044 = vmatpush1.msra.mxu0 0.0
        %1045 = vmatprep.subr.mxu0 0.0
        %1046 = vmatpush1.msra.mxu0 0.0
        %1047 = vmatprep.subr.mxu0 0.0
        %1048 = vmatpush1.msra.mxu0 0.0
        %1049 = vmatprep.subr.mxu0 0.0
        %1050 = vmatpush1.msra.mxu0 0.0
        %1051 = vmatprep.subr.mxu0 0.0
        %1052 = vmatpush1.msra.mxu0 0.0
        %1053 = vmatprep.subr.mxu0 0.0
        %1054 = vmatpush1.msra.mxu0 0.0
        %1055 = vmatprep.subr.mxu0 0.0
        %1056 = vmatpush1.msra.mxu0 0.0
        %1057 = vmatprep.subr.mxu0 0.0
        %1058 = vmatpush1.msra.mxu0 0.0
        %1059 = vmatprep.mubr.f32.mxu0 0.0
        %1060 = vmatmul.mubr.f32.gmra.mrb[0].mxu0 %v993
        %v1061 = vpop.f32.mrb[0].mxu0
        %v1062 = vadd.f32 0.0, %v1061
        %v1063 = vpop.f32.mrb[0].mxu0
        %1064 = vdwg.mxu0
        %1065 = vrot.lane.b32.xlu0 %v727, 112
        %v1066 = vpop.permute.xlu0 %1065
        %1067 = vrot.lane.b32.xlu0 %v727, 80
        %v1068 = vpop.permute.xlu0 %1067
        %v1069 = vsel %vm738, %v1066, 0
        %v1071 = vsel %vm738, %v1068, 0
        %1073 = vmatprep.subr.mxu0 0.0
        %1074 = vmatpush1.xpose.msra.mxu0 %v1071
        %1075 = vmatprep.subr.mxu0 0.0
        %1076 = vmatpush1.xpose.msra.mxu0 0.0
        %1077 = vmatprep.subr.mxu0 0.0
        %1078 = vmatpush1.xpose.msra.mxu0 0.0
        %1079 = vmatprep.subr.mxu0 0.0
        %1080 = vmatpush1.xpose.msra.mxu0 0.0
        %1081 = vmatprep.subr.mxu0 0.0
        %1082 = vmatpush1.xpose.msra.mxu0 0.0
        %1083 = vmatprep.subr.mxu0 0.0
        %1084 = vmatpush1.xpose.msra.mxu0 0.0
        %1085 = vmatprep.subr.mxu0 0.0
        %1086 = vmatpush1.xpose.msra.mxu0 0.0
        %1087 = vmatprep.subr.mxu0 0.0
        %1088 = vmatpush1.xpose.msra.mxu0 0.0
        %1089 = vmatprep.subr.mxu0 0.0
        %1090 = vmatpush1.xpose.msra.mxu0 0.0
        %1091 = vmatprep.subr.mxu0 0.0
        %1092 = vmatpush1.xpose.msra.mxu0 0.0
        %1093 = vmatprep.subr.mxu0 0.0
        %1094 = vmatpush1.xpose.msra.mxu0 0.0
        %1095 = vmatprep.subr.mxu0 0.0
        %1096 = vmatpush1.xpose.msra.mxu0 0.0
        %1097 = vmatprep.subr.mxu0 0.0
        %1098 = vmatpush1.xpose.msra.mxu0 0.0
        %1099 = vmatprep.subr.mxu0 0.0
        %1100 = vmatpush1.xpose.msra.mxu0 0.0
        %1101 = vmatprep.subr.mxu0 0.0
        %1102 = vmatpush1.xpose.msra.mxu0 0.0
        %1103 = vmatprep.subr.mxu0 0.0
        %1104 = vmatpush1.xpose.msra.mxu0 0.0
        %1105 = vmatprep.subr.mxu0 0.0
        %1106 = vmatpush1.xpose.msra.mxu0 0.0
        %1107 = vmatprep.subr.mxu0 0.0
        %1108 = vmatpush1.xpose.msra.mxu0 0.0
        %1109 = vmatprep.subr.mxu0 0.0
        %1110 = vmatpush1.xpose.msra.mxu0 0.0
        %1111 = vmatprep.subr.mxu0 0.0
        %1112 = vmatpush1.xpose.msra.mxu0 0.0
        %1113 = vmatprep.subr.mxu0 0.0
        %1114 = vmatpush1.xpose.msra.mxu0 0.0
        %1115 = vmatprep.subr.mxu0 0.0
        %1116 = vmatpush1.xpose.msra.mxu0 0.0
        %1117 = vmatprep.subr.mxu0 0.0
        %1118 = vmatpush1.xpose.msra.mxu0 0.0
        %1119 = vmatprep.subr.mxu0 0.0
        %1120 = vmatpush1.xpose.msra.mxu0 0.0
        %1121 = vmatprep.subr.mxu0 0.0
        %1122 = vmatpush1.xpose.msra.mxu0 0.0
        %1123 = vmatprep.subr.mxu0 0.0
        %1124 = vmatpush1.xpose.msra.mxu0 0.0
        %1125 = vmatprep.subr.mxu0 0.0
        %1126 = vmatpush1.xpose.msra.mxu0 0.0
        %1127 = vmatprep.subr.mxu0 0.0
        %1128 = vmatpush1.xpose.msra.mxu0 0.0
        %1129 = vmatprep.subr.mxu0 0.0
        %1130 = vmatpush1.xpose.msra.mxu0 0.0
        %1131 = vmatprep.subr.mxu0 0.0
        %1132 = vmatpush1.xpose.msra.mxu0 0.0
        %1133 = vmatprep.subr.mxu0 0.0
        %1134 = vmatpush1.xpose.msra.mxu0 0.0
        %1135 = vmatprep.subr.mxu0 0.0
        %1136 = vmatpush1.xpose.msra.mxu0 0.0
        %1137 = vmatprep.mubr.f32.mxu0 0.0
        %1138 = vmatmul.mubr.f32.gmra.mrb[0].mxu0 %v1069
        %v1139 = vpop.f32.mrb[0].mxu0
        %v1140 = vadd.f32 0.0, %v1139
        %v1141 = vpop.f32.mrb[0].mxu0
        %1142 = vdwg.mxu0
        %1143 = vrot.lane.b32.xlu0 %v732, 112
        %v1144 = vpop.permute.xlu0 %1143
        %1145 = vrot.lane.b32.xlu0 %v732, 80
        %v1146 = vpop.permute.xlu0 %1145
        %v1147 = vsel %vm738, %v1144, 0
        %v1149 = vsel %vm738, %v1146, 0
        %1151 = vmatprep.subr.mxu0 0.0
        %1152 = vmatpush1.xpose.msra.mxu0 %v1149
        %1153 = vmatprep.subr.mxu0 0.0
        %1154 = vmatpush1.xpose.msra.mxu0 0.0
        %1155 = vmatprep.subr.mxu0 0.0
        %1156 = vmatpush1.xpose.msra.mxu0 0.0
        %1157 = vmatprep.subr.mxu0 0.0
        %1158 = vmatpush1.xpose.msra.mxu0 0.0
        %1159 = vmatprep.subr.mxu0 0.0
        %1160 = vmatpush1.xpose.msra.mxu0 0.0
        %1161 = vmatprep.subr.mxu0 0.0
        %1162 = vmatpush1.xpose.msra.mxu0 0.0
        %1163 = vmatprep.subr.mxu0 0.0
        %1164 = vmatpush1.xpose.msra.mxu0 0.0
        %1165 = vmatprep.subr.mxu0 0.0
        %1166 = vmatpush1.xpose.msra.mxu0 0.0
        %1167 = vmatprep.subr.mxu0 0.0
        %1168 = vmatpush1.xpose.msra.mxu0 0.0
        %1169 = vmatprep.subr.mxu0 0.0
        %1170 = vmatpush1.xpose.msra.mxu0 0.0
        %1171 = vmatprep.subr.mxu0 0.0
        %1172 = vmatpush1.xpose.msra.mxu0 0.0
        %1173 = vmatprep.subr.mxu0 0.0
        %1174 = vmatpush1.xpose.msra.mxu0 0.0
        %1175 = vmatprep.subr.mxu0 0.0
        %1176 = vmatpush1.xpose.msra.mxu0 0.0
        %1177 = vmatprep.subr.mxu0 0.0
        %1178 = vmatpush1.xpose.msra.mxu0 0.0
        %1179 = vmatprep.subr.mxu0 0.0
        %1180 = vmatpush1.xpose.msra.mxu0 0.0
        %1181 = vmatprep.subr.mxu0 0.0
        %1182 = vmatpush1.xpose.msra.mxu0 0.0
        %1183 = vmatprep.subr.mxu0 0.0
        %1184 = vmatpush1.xpose.msra.mxu0 0.0
        %1185 = vmatprep.subr.mxu0 0.0
        %1186 = vmatpush1.xpose.msra.mxu0 0.0
        %1187 = vmatprep.subr.mxu0 0.0
        %1188 = vmatpush1.xpose.msra.mxu0 0.0
        %1189 = vmatprep.subr.mxu0 0.0
        %1190 = vmatpush1.xpose.msra.mxu0 0.0
        %1191 = vmatprep.subr.mxu0 0.0
        %1192 = vmatpush1.xpose.msra.mxu0 0.0
        %1193 = vmatprep.subr.mxu0 0.0
        %1194 = vmatpush1.xpose.msra.mxu0 0.0
        %1195 = vmatprep.subr.mxu0 0.0
        %1196 = vmatpush1.xpose.msra.mxu0 0.0
        %1197 = vmatprep.subr.mxu0 0.0
        %1198 = vmatpush1.xpose.msra.mxu0 0.0
        %1199 = vmatprep.subr.mxu0 0.0
        %1200 = vmatpush1.xpose.msra.mxu0 0.0
        %1201 = vmatprep.subr.mxu0 0.0
        %1202 = vmatpush1.xpose.msra.mxu0 0.0
        %1203 = vmatprep.subr.mxu0 0.0
        %1204 = vmatpush1.xpose.msra.mxu0 0.0
        %1205 = vmatprep.subr.mxu0 0.0
        %1206 = vmatpush1.xpose.msra.mxu0 0.0
        %1207 = vmatprep.subr.mxu0 0.0
        %1208 = vmatpush1.xpose.msra.mxu0 0.0
        %1209 = vmatprep.subr.mxu0 0.0
        %1210 = vmatpush1.xpose.msra.mxu0 0.0
        %1211 = vmatprep.subr.mxu0 0.0
        %1212 = vmatpush1.xpose.msra.mxu0 0.0
        %1213 = vmatprep.subr.mxu0 0.0
        %1214 = vmatpush1.xpose.msra.mxu0 0.0
        %1215 = vmatprep.mubr.f32.mxu0 0.0
        %1216 = vmatmul.mubr.f32.gmra.mrb[0].mxu0 %v1147
        %v1217 = vpop.f32.mrb[0].mxu0
        %v1218 = vadd.f32 0.0, %v1217
        %v1219 = vpop.f32.mrb[0].mxu0
        %1220 = vdwg.mxu0
        %v1221 = vsel %vm890, %v1140, -inf
        %1222 = vmax.xlane.f32.xlu0 %v1221
        %v1223 = vpop.xlane.xlu0 %1222
        %v1224 = vsel %vm890, %v1218, -inf
        %1225 = vmax.xlane.f32.xlu0 %v1224
        %v1226 = vpop.xlane.xlu0 %1225
        %v1227 = vsub.f32 %v1140, %v1223
        %v1228 = vsub.f32 %v1218, %v1226
        %v1229 = vmul.f32 %v1227, 1.442695
        %v1230 = vpow.pop %v1229
        %v1231 = vmul.f32 %v1228, 1.442695
        %v1232 = vpow.pop %v1231
        %v1233 = vsel %vm890, %v1230, 0.0
        %1234 = vadd.xlane.f32.xlu0 %v1233
        %v1235 = vpop.xlane.xlu0 %1234
        %v1236 = vsel %vm890, %v1232, 0.0
        %1237 = vadd.xlane.f32.xlu0 %v1236
        %v1238 = vpop.xlane.xlu0 %1237
        %v1239 = vrcp.pop %v1235
        %v1240 = vmul.f32 %v1230, %v1239
        %v1241 = vrcp.pop %v1238
        %v1242 = vmul.f32 %v1232, %v1241
        %1243 = vrot.lane.b32.xlu0 %v727, 48
        %v1244 = vpop.permute.xlu0 %1243
        %v1247 = vsel %vm890, %v1240, 0
        %1249 = vmatprep.subr.mxu0 0.0
        %1250 = vmatpush1.msra.mxu0 %v1244
        %1251 = vmatprep.subr.mxu0 0.0
        %1252 = vmatpush1.msra.mxu0 0.0
        %1253 = vmatprep.subr.mxu0 0.0
        %1254 = vmatpush1.msra.mxu0 0.0
        %1255 = vmatprep.subr.mxu0 0.0
        %1256 = vmatpush1.msra.mxu0 0.0
        %1257 = vmatprep.subr.mxu0 0.0
        %1258 = vmatpush1.msra.mxu0 0.0
        %1259 = vmatprep.subr.mxu0 0.0
        %1260 = vmatpush1.msra.mxu0 0.0
        %1261 = vmatprep.subr.mxu0 0.0
        %1262 = vmatpush1.msra.mxu0 0.0
        %1263 = vmatprep.subr.mxu0 0.0
        %1264 = vmatpush1.msra.mxu0 0.0
        %1265 = vmatprep.subr.mxu0 0.0
        %1266 = vmatpush1.msra.mxu0 0.0
        %1267 = vmatprep.subr.mxu0 0.0
        %1268 = vmatpush1.msra.mxu0 0.0
        %1269 = vmatprep.subr.mxu0 0.0
        %1270 = vmatpush1.msra.mxu0 0.0
        %1271 = vmatprep.subr.mxu0 0.0
        %1272 = vmatpush1.msra.mxu0 0.0
        %1273 = vmatprep.subr.mxu0 0.0
        %1274 = vmatpush1.msra.mxu0 0.0
        %1275 = vmatprep.subr.mxu0 0.0
        %1276 = vmatpush1.msra.mxu0 0.0
        %1277 = vmatprep.subr.mxu0 0.0
        %1278 = vmatpush1.msra.mxu0 0.0
        %1279 = vmatprep.subr.mxu0 0.0
        %1280 = vmatpush1.msra.mxu0 0.0
        %1281 = vmatprep.subr.mxu0 0.0
        %1282 = vmatpush1.msra.mxu0 0.0
        %1283 = vmatprep.subr.mxu0 0.0
        %1284 = vmatpush1.msra.mxu0 0.0
        %1285 = vmatprep.subr.mxu0 0.0
        %1286 = vmatpush1.msra.mxu0 0.0
        %1287 = vmatprep.subr.mxu0 0.0
        %1288 = vmatpush1.msra.mxu0 0.0
        %1289 = vmatprep.subr.mxu0 0.0
        %1290 = vmatpush1.msra.mxu0 0.0
        %1291 = vmatprep.subr.mxu0 0.0
        %1292 = vmatpush1.msra.mxu0 0.0
        %1293 = vmatprep.subr.mxu0 0.0
        %1294 = vmatpush1.msra.mxu0 0.0
        %1295 = vmatprep.subr.mxu0 0.0
        %1296 = vmatpush1.msra.mxu0 0.0
        %1297 = vmatprep.subr.mxu0 0.0
        %1298 = vmatpush1.msra.mxu0 0.0
        %1299 = vmatprep.subr.mxu0 0.0
        %1300 = vmatpush1.msra.mxu0 0.0
        %1301 = vmatprep.subr.mxu0 0.0
        %1302 = vmatpush1.msra.mxu0 0.0
        %1303 = vmatprep.subr.mxu0 0.0
        %1304 = vmatpush1.msra.mxu0 0.0
        %1305 = vmatprep.subr.mxu0 0.0
        %1306 = vmatpush1.msra.mxu0 0.0
        %1307 = vmatprep.subr.mxu0 0.0
        %1308 = vmatpush1.msra.mxu0 0.0
        %1309 = vmatprep.subr.mxu0 0.0
        %1310 = vmatpush1.msra.mxu0 0.0
        %1311 = vmatprep.subr.mxu0 0.0
        %1312 = vmatpush1.msra.mxu0 0.0
        %1313 = vmatprep.mubr.f32.mxu0 0.0
        %1314 = vmatmul.mubr.f32.gmra.mrb[0].mxu0 %v1247
        %v1315 = vpop.f32.mrb[0].mxu0
        %v1316 = vadd.f32 0.0, %v1315
        %v1317 = vpop.f32.mrb[0].mxu0
        %1318 = vdwg.mxu0
        %1319 = vrot.lane.b32.xlu0 %v732, 48
        %v1320 = vpop.permute.xlu0 %1319
        %v1323 = vsel %vm890, %v1242, 0
        %1325 = vmatprep.subr.mxu0 0.0
        %1326 = vmatpush1.msra.mxu0 %v1320
        %1327 = vmatprep.subr.mxu0 0.0
        %1328 = vmatpush1.msra.mxu0 0.0
        %1329 = vmatprep.subr.mxu0 0.0
        %1330 = vmatpush1.msra.mxu0 0.0
        %1331 = vmatprep.subr.mxu0 0.0
        %1332 = vmatpush1.msra.mxu0 0.0
        %1333 = vmatprep.subr.mxu0 0.0
        %1334 = vmatpush1.msra.mxu0 0.0
        %1335 = vmatprep.subr.mxu0 0.0
        %1336 = vmatpush1.msra.mxu0 0.0
        %1337 = vmatprep.subr.mxu0 0.0
        %1338 = vmatpush1.msra.mxu0 0.0
        %1339 = vmatprep.subr.mxu0 0.0
        %1340 = vmatpush1.msra.mxu0 0.0
        %1341 = vmatprep.subr.mxu0 0.0
        %1342 = vmatpush1.msra.mxu0 0.0
        %1343 = vmatprep.subr.mxu0 0.0
        %1344 = vmatpush1.msra.mxu0 0.0
        %1345 = vmatprep.subr.mxu0 0.0
        %1346 = vmatpush1.msra.mxu0 0.0
        %1347 = vmatprep.subr.mxu0 0.0
        %1348 = vmatpush1.msra.mxu0 0.0
        %1349 = vmatprep.subr.mxu0 0.0
        %1350 = vmatpush1.msra.mxu0 0.0
        %1351 = vmatprep.subr.mxu0 0.0
        %1352 = vmatpush1.msra.mxu0 0.0
        %1353 = vmatprep.subr.mxu0 0.0
        %1354 = vmatpush1.msra.mxu0 0.0
        %1355 = vmatprep.subr.mxu0 0.0
        %1356 = vmatpush1.msra.mxu0 0.0
        %1357 = vmatprep.subr.mxu0 0.0
        %1358 = vmatpush1.msra.mxu0 0.0
        %1359 = vmatprep.subr.mxu0 0.0
        %1360 = vmatpush1.msra.mxu0 0.0
        %1361 = vmatprep.subr.mxu0 0.0
        %1362 = vmatpush1.msra.mxu0 0.0
        %1363 = vmatprep.subr.mxu0 0.0
        %1364 = vmatpush1.msra.mxu0 0.0
        %1365 = vmatprep.subr.mxu0 0.0
        %1366 = vmatpush1.msra.mxu0 0.0
        %1367 = vmatprep.subr.mxu0 0.0
        %1368 = vmatpush1.msra.mxu0 0.0
        %1369 = vmatprep.subr.mxu0 0.0
        %1370 = vmatpush1.msra.mxu0 0.0
        %1371 = vmatprep.subr.mxu0 0.0
        %1372 = vmatpush1.msra.mxu0 0.0
        %1373 = vmatprep.subr.mxu0 0.0
        %1374 = vmatpush1.msra.mxu0 0.0
        %1375 = vmatprep.subr.mxu0 0.0
        %1376 = vmatpush1.msra.mxu0 0.0
        %1377 = vmatprep.subr.mxu0 0.0
        %1378 = vmatpush1.msra.mxu0 0.0
        %1379 = vmatprep.subr.mxu0 0.0
        %1380 = vmatpush1.msra.mxu0 0.0
        %1381 = vmatprep.subr.mxu0 0.0
        %1382 = vmatpush1.msra.mxu0 0.0
        %1383 = vmatprep.subr.mxu0 0.0
        %1384 = vmatpush1.msra.mxu0 0.0
        %1385 = vmatprep.subr.mxu0 0.0
        %1386 = vmatpush1.msra.mxu0 0.0
        %1387 = vmatprep.subr.mxu0 0.0
        %1388 = vmatpush1.msra.mxu0 0.0
        %1389 = vmatprep.mubr.f32.mxu0 0.0
        %1390 = vmatmul.mubr.f32.gmra.mrb[0].mxu0 %v1323
        %v1391 = vpop.f32.mrb[0].mxu0
        %v1392 = vadd.f32 0.0, %v1391
        %v1393 = vpop.f32.mrb[0].mxu0
        %1394 = vdwg.mxu0
        %v1396 = vsel %vm738, %v1316, 0
        %v1399 = vsel %vm738, %v1392, 0
        %1401 = vmatprep.subr.mxu0 0.0
        %1402 = vmatpush1.msra.mxu0 %v645
        %1403 = vmatprep.subr.mxu0 0.0
        %1404 = vmatpush1.msra.mxu0 %v646
        %1405 = vmatprep.subr.mxu0 0.0
        %1406 = vmatpush1.msra.mxu0 0.0
        %1407 = vmatprep.subr.mxu0 0.0
        %1408 = vmatpush1.msra.mxu0 0.0
        %1409 = vmatprep.subr.mxu0 0.0
        %1410 = vmatpush1.msra.mxu0 0.0
        %1411 = vmatprep.subr.mxu0 0.0
        %1412 = vmatpush1.msra.mxu0 0.0
        %1413 = vmatprep.subr.mxu0 0.0
        %1414 = vmatpush1.msra.mxu0 0.0
        %1415 = vmatprep.subr.mxu0 0.0
        %1416 = vmatpush1.msra.mxu0 0.0
        %1417 = vmatprep.subr.mxu0 0.0
        %1418 = vmatpush1.msra.mxu0 0.0
        %1419 = vmatprep.subr.mxu0 0.0
        %1420 = vmatpush1.msra.mxu0 0.0
        %1421 = vmatprep.subr.mxu0 0.0
        %1422 = vmatpush1.msra.mxu0 0.0
        %1423 = vmatprep.subr.mxu0 0.0
        %1424 = vmatpush1.msra.mxu0 0.0
        %1425 = vmatprep.subr.mxu0 0.0
        %1426 = vmatpush1.msra.mxu0 0.0
        %1427 = vmatprep.subr.mxu0 0.0
        %1428 = vmatpush1.msra.mxu0 0.0
        %1429 = vmatprep.subr.mxu0 0.0
        %1430 = vmatpush1.msra.mxu0 0.0
        %1431 = vmatprep.subr.mxu0 0.0
        %1432 = vmatpush1.msra.mxu0 0.0
        %1433 = vmatprep.subr.mxu0 0.0
        %1434 = vmatpush1.msra.mxu0 0.0
        %1435 = vmatprep.subr.mxu0 0.0
        %1436 = vmatpush1.msra.mxu0 0.0
        %1437 = vmatprep.subr.mxu0 0.0
        %1438 = vmatpush1.msra.mxu0 0.0
        %1439 = vmatprep.subr.mxu0 0.0
        %1440 = vmatpush1.msra.mxu0 0.0
        %1441 = vmatprep.subr.mxu0 0.0
        %1442 = vmatpush1.msra.mxu0 0.0
        %1443 = vmatprep.subr.mxu0 0.0
        %1444 = vmatpush1.msra.mxu0 0.0
        %1445 = vmatprep.subr.mxu0 0.0
        %1446 = vmatpush1.msra.mxu0 0.0
        %1447 = vmatprep.subr.mxu0 0.0
        %1448 = vmatpush1.msra.mxu0 0.0
        %1449 = vmatprep.subr.mxu0 0.0
        %1450 = vmatpush1.msra.mxu0 0.0
        %1451 = vmatprep.subr.mxu0 0.0
        %1452 = vmatpush1.msra.mxu0 0.0
        %1453 = vmatprep.subr.mxu0 0.0
        %1454 = vmatpush1.msra.mxu0 0.0
        %1455 = vmatprep.subr.mxu0 0.0
        %1456 = vmatpush1.msra.mxu0 0.0
        %1457 = vmatprep.subr.mxu0 0.0
        %1458 = vmatpush1.msra.mxu0 0.0
        %1459 = vmatprep.subr.mxu0 0.0
        %1460 = vmatpush1.msra.mxu0 0.0
        %1461 = vmatprep.subr.mxu0 0.0
        %1462 = vmatpush1.msra.mxu0 0.0
        %1463 = vmatprep.subr.mxu0 0.0
        %1464 = vmatpush1.msra.mxu0 0.0
        %1465 = vmatprep.mubr.f32.mxu0 0.0
        %1466 = vmatmul.mubr.f32.gmra.mrb[0].mxu0 %v1396
        %v1467 = vpop.f32.mrb[0].mxu0
        %v1468 = vadd.f32 0.0, %v1467
        %v1469 = vpop.f32.mrb[0].mxu0
        %1470 = vmatprep.mubr.f32.mxu0 0.0
        %1471 = vmatmul.mubr.f32.gmra.mrb[0].mxu0 %v1399
        %v1472 = vpop.f32.mrb[0].mxu0
        %v1473 = vadd.f32 0.0, %v1472
        %v1474 = vpop.f32.mrb[0].mxu0
        %1475 = vdwg.mxu0
        %v1477 = vsel %vm738, %v986, 0
        %v1480 = vsel %vm738, %v1062, 0
        %1482 = vmatprep.subr.mxu0 0.0
        %1483 = vmatpush1.msra.mxu0 %v643
        %1484 = vmatprep.subr.mxu0 0.0
        %1485 = vmatpush1.msra.mxu0 %v644
        %1486 = vmatprep.subr.mxu0 0.0
        %1487 = vmatpush1.msra.mxu0 0.0
        %1488 = vmatprep.subr.mxu0 0.0
        %1489 = vmatpush1.msra.mxu0 0.0
        %1490 = vmatprep.subr.mxu0 0.0
        %1491 = vmatpush1.msra.mxu0 0.0
        %1492 = vmatprep.subr.mxu0 0.0
        %1493 = vmatpush1.msra.mxu0 0.0
        %1494 = vmatprep.subr.mxu0 0.0
        %1495 = vmatpush1.msra.mxu0 0.0
        %1496 = vmatprep.subr.mxu0 0.0
        %1497 = vmatpush1.msra.mxu0 0.0
        %1498 = vmatprep.subr.mxu0 0.0
        %1499 = vmatpush1.msra.mxu0 0.0
        %1500 = vmatprep.subr.mxu0 0.0
        %1501 = vmatpush1.msra.mxu0 0.0
        %1502 = vmatprep.subr.mxu0 0.0
        %1503 = vmatpush1.msra.mxu0 0.0
        %1504 = vmatprep.subr.mxu0 0.0
        %1505 = vmatpush1.msra.mxu0 0.0
        %1506 = vmatprep.subr.mxu0 0.0
        %1507 = vmatpush1.msra.mxu0 0.0
        %1508 = vmatprep.subr.mxu0 0.0
        %1509 = vmatpush1.msra.mxu0 0.0
        %1510 = vmatprep.subr.mxu0 0.0
        %1511 = vmatpush1.msra.mxu0 0.0
        %1512 = vmatprep.subr.mxu0 0.0
        %1513 = vmatpush1.msra.mxu0 0.0
        %1514 = vmatprep.subr.mxu0 0.0
        %1515 = vmatpush1.msra.mxu0 0.0
        %1516 = vmatprep.subr.mxu0 0.0
        %1517 = vmatpush1.msra.mxu0 0.0
        %1518 = vmatprep.subr.mxu0 0.0
        %1519 = vmatpush1.msra.mxu0 0.0
        %1520 = vmatprep.subr.mxu0 0.0
        %1521 = vmatpush1.msra.mxu0 0.0
        %1522 = vmatprep.subr.mxu0 0.0
        %1523 = vmatpush1.msra.mxu0 0.0
        %1524 = vmatprep.subr.mxu0 0.0
        %1525 = vmatpush1.msra.mxu0 0.0
        %1526 = vmatprep.subr.mxu0 0.0
        %1527 = vmatpush1.msra.mxu0 0.0
        %1528 = vmatprep.subr.mxu0 0.0
        %1529 = vmatpush1.msra.mxu0 0.0
        %1530 = vmatprep.subr.mxu0 0.0
        %1531 = vmatpush1.msra.mxu0 0.0
        %1532 = vmatprep.subr.mxu0 0.0
        %1533 = vmatpush1.msra.mxu0 0.0
        %1534 = vmatprep.subr.mxu0 0.0
        %1535 = vmatpush1.msra.mxu0 0.0
        %1536 = vmatprep.subr.mxu0 0.0
        %1537 = vmatpush1.msra.mxu0 0.0
        %1538 = vmatprep.subr.mxu0 0.0
        %1539 = vmatpush1.msra.mxu0 0.0
        %1540 = vmatprep.subr.mxu0 0.0
        %1541 = vmatpush1.msra.mxu0 0.0
        %1542 = vmatprep.subr.mxu0 0.0
        %1543 = vmatpush1.msra.mxu0 0.0
        %1544 = vmatprep.subr.mxu0 0.0
        %1545 = vmatpush1.msra.mxu0 0.0
        %1546 = vmatprep.mubr.f32.mxu0 0.0
        %1547 = vmatmul.mubr.f32.gmra.mrb[0].mxu0 %v1477
        %v1548 = vpop.f32.mrb[0].mxu0
        %v1549 = vadd.f32 %v1468, %v1548
        %v1550 = vpop.f32.mrb[0].mxu0
        %1551 = vmatprep.mubr.f32.mxu0 0.0
        %1552 = vmatmul.mubr.f32.gmra.mrb[0].mxu0 %v1480
        %v1553 = vpop.f32.mrb[0].mxu0
        %v1554 = vadd.f32 %v1473, %v1553
        %v1555 = vpop.f32.mrb[0].mxu0
        %1556 = vdwg.mxu0
        %v1557 = vlaneseq
        %v1558 = vshrl.u32 %v1557, 7
        %v1559 = vsub.s32 0, %v1558
        %v1560 = vrot.slane %v647, %v1559
        %v1561 = vadd.f32 %v1549, %v1560
        %v1562 = vadd.f32 %v1554, %v1560
        %v1563 = vadd.f32 %v636, %v1561
        %v1564 = vadd.f32 %v637, %v1562
        %v1565 = vsel %vm598, %v1563, 0.0
        %1566 = vadd.xlane.f32.xlu0 %v1565
        %v1567 = vpop.xlane.xlu0 %1566
        %v1568 = vsel %vm598, %v1564, 0.0
        %1569 = vadd.xlane.f32.xlu0 %v1568
        %v1570 = vpop.xlane.xlu0 %1569
        %v1571 = vmul.f32 %v1567, %v605
        %v1572 = vmul.f32 %v1570, %v605
        %v1573 = vsub.f32 %v1563, %v1571
        %v1574 = vsub.f32 %v1564, %v1572
        %v1575 = vmul.f32 %v1573, %v1573
        %v1576 = vmul.f32 %v1574, %v1574
        %v1577 = vsel %vm598, %v1575, 0.0
        %1578 = vadd.xlane.f32.xlu0 %v1577
        %v1579 = vpop.xlane.xlu0 %1578
        %v1580 = vsel %vm598, %v1576, 0.0
        %1581 = vadd.xlane.f32.xlu0 %v1580
        %v1582 = vpop.xlane.xlu0 %1581
        %v1583 = vmul.f32 %v1579, %v605
        %v1584 = vmul.f32 %v1582, %v605
        %v1585 = vadd.f32 %v1583, 1e-12
        %v1586 = vadd.f32 %v1584, 1e-12
        %v1587 = vrsqrt.pop %v1585
        %v1588 = vrsqrt.pop %v1586
        %v1589 = vmul.f32 %v1573, %v1587
        %v1590 = vmul.f32 %v1574, %v1588
        %v1591 = vlaneseq
        %v1592 = vshrl.u32 %v1591, 7
        %v1593 = vsub.s32 2, %v1592
        %v1594 = vrot.slane %v647, %v1593
        %v1595 = vmul.f32 %v1589, %v1594
        %v1596 = vmul.f32 %v1590, %v1594
        %v1597 = vlaneseq
        %v1598 = vshrl.u32 %v1597, 7
        %v1599 = vsub.s32 3, %v1598
        %v1600 = vrot.slane %v647, %v1599
        %v1601 = vadd.f32 %v1595, %v1600
        %v1602 = vadd.f32 %v1596, %v1600
        %v1603 = vld [vmem:[%s7] sm:$0xff]
        %v1604 = vld [vmem:[%s7 + $0x8] sm:$0xff]
        %v1605 = vld [vmem:[%s7 + $0x10] sm:$0xff]
        %v1606 = vld [vmem:[%s7 + $0x18] sm:$0xff]
        %v1607 = vld [vmem:[%s8] sm:$0x1]
        %v1609 = vlaneseq
        %v1610 = vshrl.u32 %v1609, 7
        %v1611 = vsub.s32 0, %v1610
        %v1612 = vrot.slane %v1607, %v1611
        %v1615 = vsel %vm598, %v1601, 0
        %v1618 = vsel %vm598, %v1602, 0
        %1620 = vmatprep.subr.mxu0 0.0
        %1621 = vmatpush1.msra.mxu0 %v1603
        %1622 = vmatprep.subr.mxu0 0.0
        %1623 = vmatpush1.msra.mxu0 %v1604
        %1624 = vmatprep.subr.mxu0 0.0
        %1625 = vmatpush1.msra.mxu0 %v1605
        %1626 = vmatprep.subr.mxu0 0.0
        %1627 = vmatpush1.msra.mxu0 %v1606
        %1628 = vmatprep.subr.mxu0 0.0
        %1629 = vmatpush1.msra.mxu0 0.0
        %1630 = vmatprep.subr.mxu0 0.0
        %1631 = vmatpush1.msra.mxu0 0.0
        %1632 = vmatprep.subr.mxu0 0.0
        %1633 = vmatpush1.msra.mxu0 0.0
        %1634 = vmatprep.subr.mxu0 0.0
        %1635 = vmatpush1.msra.mxu0 0.0
        %1636 = vmatprep.subr.mxu0 0.0
        %1637 = vmatpush1.msra.mxu0 0.0
        %1638 = vmatprep.subr.mxu0 0.0
        %1639 = vmatpush1.msra.mxu0 0.0
        %1640 = vmatprep.subr.mxu0 0.0
        %1641 = vmatpush1.msra.mxu0 0.0
        %1642 = vmatprep.subr.mxu0 0.0
        %1643 = vmatpush1.msra.mxu0 0.0
        %1644 = vmatprep.subr.mxu0 0.0
        %1645 = vmatpush1.msra.mxu0 0.0
        %1646 = vmatprep.subr.mxu0 0.0
        %1647 = vmatpush1.msra.mxu0 0.0
        %1648 = vmatprep.subr.mxu0 0.0
        %1649 = vmatpush1.msra.mxu0 0.0
        %1650 = vmatprep.subr.mxu0 0.0
        %1651 = vmatpush1.msra.mxu0 0.0
        %1652 = vmatprep.subr.mxu0 0.0
        %1653 = vmatpush1.msra.mxu0 0.0
        %1654 = vmatprep.subr.mxu0 0.0
        %1655 = vmatpush1.msra.mxu0 0.0
        %1656 = vmatprep.subr.mxu0 0.0
        %1657 = vmatpush1.msra.mxu0 0.0
        %1658 = vmatprep.subr.mxu0 0.0
        %1659 = vmatpush1.msra.mxu0 0.0
        %1660 = vmatprep.subr.mxu0 0.0
        %1661 = vmatpush1.msra.mxu0 0.0
        %1662 = vmatprep.subr.mxu0 0.0
        %1663 = vmatpush1.msra.mxu0 0.0
        %1664 = vmatprep.subr.mxu0 0.0
        %1665 = vmatpush1.msra.mxu0 0.0
        %1666 = vmatprep.subr.mxu0 0.0
        %1667 = vmatpush1.msra.mxu0 0.0
        %1668 = vmatprep.subr.mxu0 0.0
        %1669 = vmatpush1.msra.mxu0 0.0
        %1670 = vmatprep.subr.mxu0 0.0
        %1671 = vmatpush1.msra.mxu0 0.0
        %1672 = vmatprep.subr.mxu0 0.0
        %1673 = vmatpush1.msra.mxu0 0.0
        %1674 = vmatprep.subr.mxu0 0.0
        %1675 = vmatpush1.msra.mxu0 0.0
        %1676 = vmatprep.subr.mxu0 0.0
        %1677 = vmatpush1.msra.mxu0 0.0
        %1678 = vmatprep.subr.mxu0 0.0
        %1679 = vmatpush1.msra.mxu0 0.0
        %1680 = vmatprep.subr.mxu0 0.0
        %1681 = vmatpush1.msra.mxu0 0.0
        %1682 = vmatprep.subr.mxu0 0.0
        %1683 = vmatpush1.msra.mxu0 0.0
        %1684 = vmatprep.mubr.f32.mxu0 0.0
        %1685 = vmatmul.mubr.f32.gmra.mrb[0].mxu0 %v1615
        %v1686 = vpop.f32.mrb[0].mxu0
        %v1687 = vadd.f32 %v1612, %v1686
        %v1688 = vpop.f32.mrb[0].mxu0
        %1689 = vmatprep.mubr.f32.mxu0 0.0
        %1690 = vmatmul.mubr.f32.gmra.mrb[0].mxu0 %v1618
        %v1691 = vpop.f32.mrb[0].mxu0
        %v1692 = vadd.f32 %v1612, %v1691
        %v1693 = vpop.f32.mrb[0].mxu0
        %1694 = vdwg.mxu0
        %v1695 = vmul.f32 %v1687, %v1687
        %v1696 = vmul.f32 %v1692, %v1692
        %v1697 = vmul.f32 %v1687, %v1695
        %v1698 = vmul.f32 %v1692, %v1696
        %v1699 = vmul.f32 %v1697, 0.044715
        %v1700 = vmul.f32 %v1698, 0.044715
        %v1701 = vadd.f32 %v1687, %v1699
        %v1702 = vadd.f32 %v1692, %v1700
        %v1703 = vmul.f32 %v1701, 0.7978846
        %v1704 = vmul.f32 %v1702, 0.7978846
        %v1705 = vtanh.pop %v1703
        %v1706 = vtanh.pop %v1704
        %v1707 = vadd.f32 %v1705, 1.0
        %v1708 = vadd.f32 %v1706, 1.0
        %v1709 = vmul.f32 %v1707, 0.5
        %v1710 = vmul.f32 %v1708, 0.5
        %v1711 = vmul.f32 %v1687, %v1709
        %v1712 = vmul.f32 %v1692, %v1710
        %v1713 = vld [vmem:[%s9] sm:$0xff]
        %v1714 = vld [vmem:[%s9 + $0x8] sm:$0xff]
        %v1715 = vld [vmem:[%s9 + $0x10] sm:$0xff]
        %v1716 = vld [vmem:[%s9 + $0x18] sm:$0xff]
        %v1717 = vld [vmem:[%s9 + $0x20] sm:$0xff]
        %v1718 = vld [vmem:[%s9 + $0x28] sm:$0xff]
        %v1719 = vld [vmem:[%s9 + $0x30] sm:$0xff]
        %v1720 = vld [vmem:[%s9 + $0x38] sm:$0xff]
        %v1721 = vlaneseq
        %v1722 = vshrl.u32 %v1721, 7
        %v1723 = vsub.s32 1, %v1722
        %v1724 = vrot.slane %v647, %v1723
        %v1726 = vsel %vm514, %v1711, 0
        %v1729 = vsel %vm514, %v1712, 0
        %1731 = vmatprep.subr.mxu0 0.0
        %1732 = vmatpush1.msra.mxu0 %v1713
        %1733 = vmatprep.subr.mxu0 0.0
        %1734 = vmatpush1.msra.mxu0 %v1714
        %1735 = vmatprep.subr.mxu0 0.0
        %1736 = vmatpush1.msra.mxu0 %v1715
        %1737 = vmatprep.subr.mxu0 0.0
        %1738 = vmatpush1.msra.mxu0 %v1716
        %1739 = vmatprep.subr.mxu0 0.0
        %1740 = vmatpush1.msra.mxu0 %v1717
        %1741 = vmatprep.subr.mxu0 0.0
        %1742 = vmatpush1.msra.mxu0 %v1718
        %1743 = vmatprep.subr.mxu0 0.0
        %1744 = vmatpush1.msra.mxu0 %v1719
        %1745 = vmatprep.subr.mxu0 0.0
        %1746 = vmatpush1.msra.mxu0 %v1720
        %1747 = vmatprep.subr.mxu0 0.0
        %1748 = vmatpush1.msra.mxu0 0.0
        %1749 = vmatprep.subr.mxu0 0.0
        %1750 = vmatpush1.msra.mxu0 0.0
        %1751 = vmatprep.subr.mxu0 0.0
        %1752 = vmatpush1.msra.mxu0 0.0
        %1753 = vmatprep.subr.mxu0 0.0
        %1754 = vmatpush1.msra.mxu0 0.0
        %1755 = vmatprep.subr.mxu0 0.0
        %1756 = vmatpush1.msra.mxu0 0.0
        %1757 = vmatprep.subr.mxu0 0.0
        %1758 = vmatpush1.msra.mxu0 0.0
        %1759 = vmatprep.subr.mxu0 0.0
        %1760 = vmatpush1.msra.mxu0 0.0
        %1761 = vmatprep.subr.mxu0 0.0
        %1762 = vmatpush1.msra.mxu0 0.0
        %1763 = vmatprep.subr.mxu0 0.0
        %1764 = vmatpush1.msra.mxu0 0.0
        %1765 = vmatprep.subr.mxu0 0.0
        %1766 = vmatpush1.msra.mxu0 0.0
        %1767 = vmatprep.subr.mxu0 0.0
        %1768 = vmatpush1.msra.mxu0 0.0
        %1769 = vmatprep.subr.mxu0 0.0
        %1770 = vmatpush1.msra.mxu0 0.0
        %1771 = vmatprep.subr.mxu0 0.0
        %1772 = vmatpush1.msra.mxu0 0.0
        %1773 = vmatprep.subr.mxu0 0.0
        %1774 = vmatpush1.msra.mxu0 0.0
        %1775 = vmatprep.subr.mxu0 0.0
        %1776 = vmatpush1.msra.mxu0 0.0
        %1777 = vmatprep.subr.mxu0 0.0
        %1778 = vmatpush1.msra.mxu0 0.0
        %1779 = vmatprep.subr.mxu0 0.0
        %1780 = vmatpush1.msra.mxu0 0.0
        %1781 = vmatprep.subr.mxu0 0.0
        %1782 = vmatpush1.msra.mxu0 0.0
        %1783 = vmatprep.subr.mxu0 0.0
        %1784 = vmatpush1.msra.mxu0 0.0
        %1785 = vmatprep.subr.mxu0 0.0
        %1786 = vmatpush1.msra.mxu0 0.0
        %1787 = vmatprep.subr.mxu0 0.0
        %1788 = vmatpush1.msra.mxu0 0.0
        %1789 = vmatprep.subr.mxu0 0.0
        %1790 = vmatpush1.msra.mxu0 0.0
        %1791 = vmatprep.subr.mxu0 0.0
        %1792 = vmatpush1.msra.mxu0 0.0
        %1793 = vmatprep.subr.mxu0 0.0
        %1794 = vmatpush1.msra.mxu0 0.0
        %1795 = vmatprep.mubr.f32.mxu0 0.0
        %1796 = vmatmul.mubr.f32.gmra.mrb[0].mxu0 %v1726
        %v1797 = vpop.f32.mrb[0].mxu0
        %v1798 = vadd.f32 %v1724, %v1797
        %v1799 = vpop.f32.mrb[0].mxu0
        %1800 = vmatprep.mubr.f32.mxu0 0.0
        %1801 = vmatmul.mubr.f32.gmra.mrb[0].mxu0 %v1729
        %v1802 = vpop.f32.mrb[0].mxu0
        %v1803 = vadd.f32 %v1724, %v1802
        %v1804 = vpop.f32.mrb[0].mxu0
        %1805 = vdwg.mxu0
        %v1806 = vadd.f32 %v1601, %v1798
        %v1807 = vadd.f32 %v1602, %v1803
        %v1808 = vsel %vm598, %v1806, 0.0
        %1809 = vadd.xlane.f32.xlu0 %v1808
        %v1810 = vpop.xlane.xlu0 %1809
        %v1811 = vsel %vm598, %v1807, 0.0
        %1812 = vadd.xlane.f32.xlu0 %v1811
        %v1813 = vpop.xlane.xlu0 %1812
        %v1814 = vmul.f32 %v1810, %v605
        %v1815 = vmul.f32 %v1813, %v605
        %v1816 = vsub.f32 %v1806, %v1814
        %v1817 = vsub.f32 %v1807, %v1815
        %v1818 = vmul.f32 %v1816, %v1816
        %v1819 = vmul.f32 %v1817, %v1817
        %v1820 = vsel %vm598, %v1818, 0.0
        %1821 = vadd.xlane.f32.xlu0 %v1820
        %v1822 = vpop.xlane.xlu0 %1821
        %v1823 = vsel %vm598, %v1819, 0.0
        %1824 = vadd.xlane.f32.xlu0 %v1823
        %v1825 = vpop.xlane.xlu0 %1824
        %v1826 = vmul.f32 %v1822, %v605
        %v1827 = vmul.f32 %v1825, %v605
        %v1828 = vadd.f32 %v1826, 1e-12
        %v1829 = vadd.f32 %v1827, 1e-12
        %v1830 = vrsqrt.pop %v1828
        %v1831 = vrsqrt.pop %v1829
        %v1832 = vmul.f32 %v1816, %v1830
        %v1833 = vmul.f32 %v1817, %v1831
        %v1834 = vlaneseq
        %v1835 = vshrl.u32 %v1834, 7
        %v1836 = vsub.s32 4, %v1835
        %v1837 = vrot.slane %v647, %v1836
        %v1838 = vmul.f32 %v1832, %v1837
        %v1839 = vmul.f32 %v1833, %v1837
        %v1840 = vlaneseq
        %v1841 = vshrl.u32 %v1840, 7
        %v1842 = vsub.s32 5, %v1841
        %v1843 = vrot.slane %v647, %v1842
        %v1844 = vadd.f32 %v1838, %v1843
        %v1845 = vadd.f32 %v1839, %v1843
        %s1846 = scalar_lea.vmem %s4, 32
        %v1847 = vld [vmem:[%s1846] sm:$0xff]
        %v1848 = vld [vmem:[%s1846 + $0x8] sm:$0xff]
        %v1849 = vld [vmem:[%s1846 + $0x10] sm:$0xff]
        %v1850 = vld [vmem:[%s1846 + $0x18] sm:$0xff]
        %s1851 = scalar_lea.vmem %s5, 1
        %v1852 = vld [vmem:[%s1851] sm:$0x1]
        %s1853 = scalar_lea.vmem %s6, 32
        %v1854 = vld [vmem:[%s1853] sm:$0xff]
        %v1855 = vld [vmem:[%s1853 + $0x8] sm:$0xff]
        %v1856 = vld [vmem:[%s1853 + $0x10] sm:$0xff]
        %v1857 = vld [vmem:[%s1853 + $0x18] sm:$0xff]
        %s1858 = scalar_lea.vmem %s10, 8
        %v1859 = vld [vmem:[%s1858] sm:$0x3f]
        %v1861 = vlaneseq
        %v1862 = vshrl.u32 %v1861, 7
        %v1863 = vsub.s32 0, %v1862
        %v1864 = vrot.slane %v1852, %v1863
        %v1867 = vsel %vm598, %v1844, 0
        %v1870 = vsel %vm598, %v1845, 0
        %1872 = vmatprep.subr.mxu0 0.0
        %1873 = vmatpush1.msra.mxu0 %v1847
        %1874 = vmatprep.subr.mxu0 0.0
        %1875 = vmatpush1.msra.mxu0 %v1848
        %1876 = vmatprep.subr.mxu0 0.0
        %1877 = vmatpush1.msra.mxu0 %v1849
        %1878 = vmatprep.subr.mxu0 0.0
        %1879 = vmatpush1.msra.mxu0 %v1850
        %1880 = vmatprep.subr.mxu0 0.0
        %1881 = vmatpush1.msra.mxu0 0.0
        %1882 = vmatprep.subr.mxu0 0.0
        %1883 = vmatpush1.msra.mxu0 0.0
        %1884 = vmatprep.subr.mxu0 0.0
        %1885 = vmatpush1.msra.mxu0 0.0
        %1886 = vmatprep.subr.mxu0 0.0
        %1887 = vmatpush1.msra.mxu0 0.0
        %1888 = vmatprep.subr.mxu0 0.0
        %1889 = vmatpush1.msra.mxu0 0.0
        %1890 = vmatprep.subr.mxu0 0.0
        %1891 = vmatpush1.msra.mxu0 0.0
        %1892 = vmatprep.subr.mxu0 0.0
        %1893 = vmatpush1.msra.mxu0 0.0
        %1894 = vmatprep.subr.mxu0 0.0
        %1895 = vmatpush1.msra.mxu0 0.0
        %1896 = vmatprep.subr.mxu0 0.0
        %1897 = vmatpush1.msra.mxu0 0.0
        %1898 = vmatprep.subr.mxu0 0.0
        %1899 = vmatpush1.msra.mxu0 0.0
        %1900 = vmatprep.subr.mxu0 0.0
        %1901 = vmatpush1.msra.mxu0 0.0
        %1902 = vmatprep.subr.mxu0 0.0
        %1903 = vmatpush1.msra.mxu0 0.0
        %1904 = vmatprep.subr.mxu0 0.0
        %1905 = vmatpush1.msra.mxu0 0.0
        %1906 = vmatprep.subr.mxu0 0.0
        %1907 = vmatpush1.msra.mxu0 0.0
        %1908 = vmatprep.subr.mxu0 0.0
        %1909 = vmatpush1.msra.mxu0 0.0
        %1910 = vmatprep.subr.mxu0 0.0
        %1911 = vmatpush1.msra.mxu0 0.0
        %1912 = vmatprep.subr.mxu0 0.0
        %1913 = vmatpush1.msra.mxu0 0.0
        %1914 = vmatprep.subr.mxu0 0.0
        %1915 = vmatpush1.msra.mxu0 0.0
        %1916 = vmatprep.subr.mxu0 0.0
        %1917 = vmatpush1.msra.mxu0 0.0
        %1918 = vmatprep.subr.mxu0 0.0
        %1919 = vmatpush1.msra.mxu0 0.0
        %1920 = vmatprep.subr.mxu0 0.0
        %1921 = vmatpush1.msra.mxu0 0.0
        %1922 = vmatprep.subr.mxu0 0.0
        %1923 = vmatpush1.msra.mxu0 0.0
        %1924 = vmatprep.subr.mxu0 0.0
        %1925 = vmatpush1.msra.mxu0 0.0
        %1926 = vmatprep.subr.mxu0 0.0
        %1927 = vmatpush1.msra.mxu0 0.0
        %1928 = vmatprep.subr.mxu0 0.0
        %1929 = vmatpush1.msra.mxu0 0.0
        %1930 = vmatprep.subr.mxu0 0.0
        %1931 = vmatpush1.msra.mxu0 0.0
        %1932 = vmatprep.subr.mxu0 0.0
        %1933 = vmatpush1.msra.mxu0 0.0
        %1934 = vmatprep.subr.mxu0 0.0
        %1935 = vmatpush1.msra.mxu0 0.0
        %1936 = vmatprep.mubr.f32.mxu0 0.0
        %1937 = vmatmul.mubr.f32.gmra.mrb[0].mxu0 %v1867
        %v1938 = vpop.f32.mrb[0].mxu0
        %v1939 = vadd.f32 %v1864, %v1938
        %v1940 = vpop.f32.mrb[0].mxu0
        %1941 = vmatprep.mubr.f32.mxu0 0.0
        %1942 = vmatmul.mubr.f32.gmra.mrb[0].mxu0 %v1870
        %v1943 = vpop.f32.mrb[0].mxu0
        %v1944 = vadd.f32 %v1864, %v1943
        %v1945 = vpop.f32.mrb[0].mxu0
        %1946 = vdwg.mxu0
        %1948 = vrot.lane.b32.xlu0 %v1939, 96
        %v1949 = vpop.permute.xlu0 %1948
        %v1950 = vsel %vm738, %v1939, 0
        %v1952 = vsel %vm738, %v1949, 0
        %1954 = vmatprep.subr.mxu0 0.0
        %1955 = vmatpush1.xpose.msra.mxu0 %v1952
        %1956 = vmatprep.subr.mxu0 0.0
        %1957 = vmatpush1.xpose.msra.mxu0 0.0
        %1958 = vmatprep.subr.mxu0 0.0
        %1959 = vmatpush1.xpose.msra.mxu0 0.0
        %1960 = vmatprep.subr.mxu0 0.0
        %1961 = vmatpush1.xpose.msra.mxu0 0.0
        %1962 = vmatprep.subr.mxu0 0.0
        %1963 = vmatpush1.xpose.msra.mxu0 0.0
        %1964 = vmatprep.subr.mxu0 0.0
        %1965 = vmatpush1.xpose.msra.mxu0 0.0
        %1966 = vmatprep.subr.mxu0 0.0
        %1967 = vmatpush1.xpose.msra.mxu0 0.0
        %1968 = vmatprep.subr.mxu0 0.0
        %1969 = vmatpush1.xpose.msra.mxu0 0.0
        %1970 = vmatprep.subr.mxu0 0.0
        %1971 = vmatpush1.xpose.msra.mxu0 0.0
        %1972 = vmatprep.subr.mxu0 0.0
        %1973 = vmatpush1.xpose.msra.mxu0 0.0
        %1974 = vmatprep.subr.mxu0 0.0
        %1975 = vmatpush1.xpose.msra.mxu0 0.0
        %1976 = vmatprep.subr.mxu0 0.0
        %1977 = vmatpush1.xpose.msra.mxu0 0.0
        %1978 = vmatprep.subr.mxu0 0.0
        %1979 = vmatpush1.xpose.msra.mxu0 0.0
        %1980 = vmatprep.subr.mxu0 0.0
        %1981 = vmatpush1.xpose.msra.mxu0 0.0
        %1982 = vmatprep.subr.mxu0 0.0
        %1983 = vmatpush1.xpose.msra.mxu0 0.0
        %1984 = vmatprep.subr.mxu0 0.0
        %1985 = vmatpush1.xpose.msra.mxu0 0.0
        %1986 = vmatprep.subr.mxu0 0.0
        %1987 = vmatpush1.xpose.msra.mxu0 0.0
        %1988 = vmatprep.subr.mxu0 0.0
        %1989 = vmatpush1.xpose.msra.mxu0 0.0
        %1990 = vmatprep.subr.mxu0 0.0
        %1991 = vmatpush1.xpose.msra.mxu0 0.0
        %1992 = vmatprep.subr.mxu0 0.0
        %1993 = vmatpush1.xpose.msra.mxu0 0.0
        %1994 = vmatprep.subr.mxu0 0.0
        %1995 = vmatpush1.xpose.msra.mxu0 0.0
        %1996 = vmatprep.subr.mxu0 0.0
        %1997 = vmatpush1.xpose.msra.mxu0 0.0
        %1998 = vmatprep.subr.mxu0 0.0
        %1999 = vmatpush1.xpose.msra.mxu0 0.0
        %2000 = vmatprep.subr.mxu0 0.0
        %2001 = vmatpush1.xpose.msra.mxu0 0.0
        %2002 = vmatprep.subr.mxu0 0.0
        %2003 = vmatpush1.xpose.msra.mxu0 0.0
        %2004 = vmatprep.subr.mxu0 0.0
        %2005 = vmatpush1.xpose.msra.mxu0 0.0
        %2006 = vmatprep.subr.mxu0 0.0
        %2007 = vmatpush1.xpose.msra.mxu0 0.0
        %2008 = vmatprep.subr.mxu0 0.0
        %2009 = vmatpush1.xpose.msra.mxu0 0.0
        %2010 = vmatprep.subr.mxu0 0.0
        %2011 = vmatpush1.xpose.msra.mxu0 0.0
        %2012 = vmatprep.subr.mxu0 0.0
        %2013 = vmatpush1.xpose.msra.mxu0 0.0
        %2014 = vmatprep.subr.mxu0 0.0
        %2015 = vmatpush1.xpose.msra.mxu0 0.0
        %2016 = vmatprep.subr.mxu0 0.0
        %2017 = vmatpush1.xpose.msra.mxu0 0.0
        %2018 = vmatprep.mubr.f32.mxu0 0.0
        %2019 = vmatmul.mubr.f32.gmra.mrb[0].mxu0 %v1950
        %v2020 = vpop.f32.mrb[0].mxu0
        %v2021 = vadd.f32 0.0, %v2020
        %v2022 = vpop.f32.mrb[0].mxu0
        %2023 = vdwg.mxu0
        %2025 = vrot.lane.b32.xlu0 %v1944, 96
        %v2026 = vpop.permute.xlu0 %2025
        %v2027 = vsel %vm738, %v1944, 0
        %v2029 = vsel %vm738, %v2026, 0
        %2031 = vmatprep.subr.mxu0 0.0
        %2032 = vmatpush1.xpose.msra.mxu0 %v2029
        %2033 = vmatprep.subr.mxu0 0.0
        %2034 = vmatpush1.xpose.msra.mxu0 0.0
        %2035 = vmatprep.subr.mxu0 0.0
        %2036 = vmatpush1.xpose.msra.mxu0 0.0
        %2037 = vmatprep.subr.mxu0 0.0
        %2038 = vmatpush1.xpose.msra.mxu0 0.0
        %2039 = vmatprep.subr.mxu0 0.0
        %2040 = vmatpush1.xpose.msra.mxu0 0.0
        %2041 = vmatprep.subr.mxu0 0.0
        %2042 = vmatpush1.xpose.msra.mxu0 0.0
        %2043 = vmatprep.subr.mxu0 0.0
        %2044 = vmatpush1.xpose.msra.mxu0 0.0
        %2045 = vmatprep.subr.mxu0 0.0
        %2046 = vmatpush1.xpose.msra.mxu0 0.0
        %2047 = vmatprep.subr.mxu0 0.0
        %2048 = vmatpush1.xpose.msra.mxu0 0.0
        %2049 = vmatprep.subr.mxu0 0.0
        %2050 = vmatpush1.xpose.msra.mxu0 0.0
        %2051 = vmatprep.subr.mxu0 0.0
        %2052 = vmatpush1.xpose.msra.mxu0 0.0
        %2053 = vmatprep.subr.mxu0 0.0
        %2054 = vmatpush1.xpose.msra.mxu0 0.0
        %2055 = vmatprep.subr.mxu0 0.0
        %2056 = vmatpush1.xpose.msra.mxu0 0.0
        %2057 = vmatprep.subr.mxu0 0.0
        %2058 = vmatpush1.xpose.msra.mxu0 0.0
        %2059 = vmatprep.subr.mxu0 0.0
        %2060 = vmatpush1.xpose.msra.mxu0 0.0
        %2061 = vmatprep.subr.mxu0 0.0
        %2062 = vmatpush1.xpose.msra.mxu0 0.0
        %2063 = vmatprep.subr.mxu0 0.0
        %2064 = vmatpush1.xpose.msra.mxu0 0.0
        %2065 = vmatprep.subr.mxu0 0.0
        %2066 = vmatpush1.xpose.msra.mxu0 0.0
        %2067 = vmatprep.subr.mxu0 0.0
        %2068 = vmatpush1.xpose.msra.mxu0 0.0
        %2069 = vmatprep.subr.mxu0 0.0
        %2070 = vmatpush1.xpose.msra.mxu0 0.0
        %2071 = vmatprep.subr.mxu0 0.0
        %2072 = vmatpush1.xpose.msra.mxu0 0.0
        %2073 = vmatprep.subr.mxu0 0.0
        %2074 = vmatpush1.xpose.msra.mxu0 0.0
        %2075 = vmatprep.subr.mxu0 0.0
        %2076 = vmatpush1.xpose.msra.mxu0 0.0
        %2077 = vmatprep.subr.mxu0 0.0
        %2078 = vmatpush1.xpose.msra.mxu0 0.0
        %2079 = vmatprep.subr.mxu0 0.0
        %2080 = vmatpush1.xpose.msra.mxu0 0.0
        %2081 = vmatprep.subr.mxu0 0.0
        %2082 = vmatpush1.xpose.msra.mxu0 0.0
        %2083 = vmatprep.subr.mxu0 0.0
        %2084 = vmatpush1.xpose.msra.mxu0 0.0
        %2085 = vmatprep.subr.mxu0 0.0
        %2086 = vmatpush1.xpose.msra.mxu0 0.0
        %2087 = vmatprep.subr.mxu0 0.0
        %2088 = vmatpush1.xpose.msra.mxu0 0.0
        %2089 = vmatprep.subr.mxu0 0.0
        %2090 = vmatpush1.xpose.msra.mxu0 0.0
        %2091 = vmatprep.subr.mxu0 0.0
        %2092 = vmatpush1.xpose.msra.mxu0 0.0
        %2093 = vmatprep.subr.mxu0 0.0
        %2094 = vmatpush1.xpose.msra.mxu0 0.0
        %2095 = vmatprep.mubr.f32.mxu0 0.0
        %2096 = vmatmul.mubr.f32.gmra.mrb[0].mxu0 %v2027
        %v2097 = vpop.f32.mrb[0].mxu0
        %v2098 = vadd.f32 0.0, %v2097
        %v2099 = vpop.f32.mrb[0].mxu0
        %2100 = vdwg.mxu0
        %v2101 = vsel %vm890, %v2021, -inf
        %2102 = vmax.xlane.f32.xlu0 %v2101
        %v2103 = vpop.xlane.xlu0 %2102
        %v2104 = vsel %vm890, %v2098, -inf
        %2105 = vmax.xlane.f32.xlu0 %v2104
        %v2106 = vpop.xlane.xlu0 %2105
        %v2107 = vsub.f32 %v2021, %v2103
        %v2108 = vsub.f32 %v2098, %v2106
        %v2109 = vmul.f32 %v2107, 1.442695
        %v2110 = vpow.pop %v2109
        %v2111 = vmul.f32 %v2108, 1.442695
        %v2112 = vpow.pop %v2111
        %v2113 = vsel %vm890, %v2110, 0.0
        %2114 = vadd.xlane.f32.xlu0 %v2113
        %v2115 = vpop.xlane.xlu0 %2114
        %v2116 = vsel %vm890, %v2112, 0.0
        %2117 = vadd.xlane.f32.xlu0 %v2116
        %v2118 = vpop.xlane.xlu0 %2117
        %v2119 = vrcp.pop %v2115
        %v2120 = vmul.f32 %v2110, %v2119
        %v2121 = vrcp.pop %v2118
        %v2122 = vmul.f32 %v2112, %v2121
        %2123 = vrot.lane.b32.xlu0 %v1939, 64
        %v2124 = vpop.permute.xlu0 %2123
        %v2127 = vsel %vm890, %v2120, 0
        %2129 = vmatprep.subr.mxu0 0.0
        %2130 = vmatpush1.msra.mxu0 %v2124
        %2131 = vmatprep.subr.mxu0 0.0
        %2132 = vmatpush1.msra.mxu0 0.0
        %2133 = vmatprep.subr.mxu0 0.0
        %2134 = vmatpush1.msra.mxu0 0.0
        %2135 = vmatprep.subr.mxu0 0.0
        %2136 = vmatpush1.msra.mxu0 0.0
        %2137 = vmatprep.subr.mxu0 0.0
        %2138 = vmatpush1.msra.mxu0 0.0
        %2139 = vmatprep.subr.mxu0 0.0
        %2140 = vmatpush1.msra.mxu0 0.0
        %2141 = vmatprep.subr.mxu0 0.0
        %2142 = vmatpush1.msra.mxu0 0.0
        %2143 = vmatprep.subr.mxu0 0.0
        %2144 = vmatpush1.msra.mxu0 0.0
        %2145 = vmatprep.subr.mxu0 0.0
        %2146 = vmatpush1.msra.mxu0 0.0
        %2147 = vmatprep.subr.mxu0 0.0
        %2148 = vmatpush1.msra.mxu0 0.0
        %2149 = vmatprep.subr.mxu0 0.0
        %2150 = vmatpush1.msra.mxu0 0.0
        %2151 = vmatprep.subr.mxu0 0.0
        %2152 = vmatpush1.msra.mxu0 0.0
        %2153 = vmatprep.subr.mxu0 0.0
        %2154 = vmatpush1.msra.mxu0 0.0
        %2155 = vmatprep.subr.mxu0 0.0
        %2156 = vmatpush1.msra.mxu0 0.0
        %2157 = vmatprep.subr.mxu0 0.0
        %2158 = vmatpush1.msra.mxu0 0.0
        %2159 = vmatprep.subr.mxu0 0.0
        %2160 = vmatpush1.msra.mxu0 0.0
        %2161 = vmatprep.subr.mxu0 0.0
        %2162 = vmatpush1.msra.mxu0 0.0
        %2163 = vmatprep.subr.mxu0 0.0
        %2164 = vmatpush1.msra.mxu0 0.0
        %2165 = vmatprep.subr.mxu0 0.0
        %2166 = vmatpush1.msra.mxu0 0.0
        %2167 = vmatprep.subr.mxu0 0.0
        %2168 = vmatpush1.msra.mxu0 0.0
        %2169 = vmatprep.subr.mxu0 0.0
        %2170 = vmatpush1.msra.mxu0 0.0
        %2171 = vmatprep.subr.mxu0 0.0
        %2172 = vmatpush1.msra.mxu0 0.0
        %2173 = vmatprep.subr.mxu0 0.0
        %2174 = vmatpush1.msra.mxu0 0.0
        %2175 = vmatprep.subr.mxu0 0.0
        %2176 = vmatpush1.msra.mxu0 0.0
        %2177 = vmatprep.subr.mxu0 0.0
        %2178 = vmatpush1.msra.mxu0 0.0
        %2179 = vmatprep.subr.mxu0 0.0
        %2180 = vmatpush1.msra.mxu0 0.0
        %2181 = vmatprep.subr.mxu0 0.0
        %2182 = vmatpush1.msra.mxu0 0.0
        %2183 = vmatprep.subr.mxu0 0.0
        %2184 = vmatpush1.msra.mxu0 0.0
        %2185 = vmatprep.subr.mxu0 0.0
        %2186 = vmatpush1.msra.mxu0 0.0
        %2187 = vmatprep.subr.mxu0 0.0
        %2188 = vmatpush1.msra.mxu0 0.0
        %2189 = vmatprep.subr.mxu0 0.0
        %2190 = vmatpush1.msra.mxu0 0.0
        %2191 = vmatprep.subr.mxu0 0.0
        %2192 = vmatpush1.msra.mxu0 0.0
        %2193 = vmatprep.mubr.f32.mxu0 0.0
        %2194 = vmatmul.mubr.f32.gmra.mrb[0].mxu0 %v2127
        %v2195 = vpop.f32.mrb[0].mxu0
        %v2196 = vadd.f32 0.0, %v2195
        %v2197 = vpop.f32.mrb[0].mxu0
        %2198 = vdwg.mxu0
        %2199 = vrot.lane.b32.xlu0 %v1944, 64
        %v2200 = vpop.permute.xlu0 %2199
        %v2203 = vsel %vm890, %v2122, 0
        %2205 = vmatprep.subr.mxu0 0.0
        %2206 = vmatpush1.msra.mxu0 %v2200
        %2207 = vmatprep.subr.mxu0 0.0
        %2208 = vmatpush1.msra.mxu0 0.0
        %2209 = vmatprep.subr.mxu0 0.0
        %2210 = vmatpush1.msra.mxu0 0.0
        %2211 = vmatprep.subr.mxu0 0.0
        %2212 = vmatpush1.msra.mxu0 0.0
        %2213 = vmatprep.subr.mxu0 0.0
        %2214 = vmatpush1.msra.mxu0 0.0
        %2215 = vmatprep.subr.mxu0 0.0
        %2216 = vmatpush1.msra.mxu0 0.0
        %2217 = vmatprep.subr.mxu0 0.0
        %2218 = vmatpush1.msra.mxu0 0.0
        %2219 = vmatprep.subr.mxu0 0.0
        %2220 = vmatpush1.msra.mxu0 0.0
        %2221 = vmatprep.subr.mxu0 0.0
        %2222 = vmatpush1.msra.mxu0 0.0
        %2223 = vmatprep.subr.mxu0 0.0
        %2224 = vmatpush1.msra.mxu0 0.0
        %2225 = vmatprep.subr.mxu0 0.0
        %2226 = vmatpush1.msra.mxu0 0.0
        %2227 = vmatprep.subr.mxu0 0.0
        %2228 = vmatpush1.msra.mxu0 0.0
        %2229 = vmatprep.subr.mxu0 0.0
        %2230 = vmatpush1.msra.mxu0 0.0
        %2231 = vmatprep.subr.mxu0 0.0
        %2232 = vmatpush1.msra.mxu0 0.0
        %2233 = vmatprep.subr.mxu0 0.0
        %2234 = vmatpush1.msra.mxu0 0.0
        %2235 = vmatprep.subr.mxu0 0.0
        %2236 = vmatpush1.msra.mxu0 0.0
        %2237 = vmatprep.subr.mxu0 0.0
        %2238 = vmatpush1.msra.mxu0 0.0
        %2239 = vmatprep.subr.mxu0 0.0
        %2240 = vmatpush1.msra.mxu0 0.0
        %2241 = vmatprep.subr.mxu0 0.0
        %2242 = vmatpush1.msra.mxu0 0.0
        %2243 = vmatprep.subr.mxu0 0.0
        %2244 = vmatpush1.msra.mxu0 0.0
        %2245 = vmatprep.subr.mxu0 0.0
        %2246 = vmatpush1.msra.mxu0 0.0
        %2247 = vmatprep.subr.mxu0 0.0
        %2248 = vmatpush1.msra.mxu0 0.0
        %2249 = vmatprep.subr.mxu0 0.0
        %2250 = vmatpush1.msra.mxu0 0.0
        %2251 = vmatprep.subr.mxu0 0.0
        %2252 = vmatpush1.msra.mxu0 0.0
        %2253 = vmatprep.subr.mxu0 0.0
        %2254 = vmatpush1.msra.mxu0 0.0
        %2255 = vmatprep.subr.mxu0 0.0
        %2256 = vmatpush1.msra.mxu0 0.0
        %2257 = vmatprep.subr.mxu0 0.0
        %2258 = vmatpush1.msra.mxu0 0.0
        %2259 = vmatprep.subr.mxu0 0.0
        %2260 = vmatpush1.msra.mxu0 0.0
        %2261 = vmatprep.subr.mxu0 0.0
        %2262 = vmatpush1.msra.mxu0 0.0
        %2263 = vmatprep.subr.mxu0 0.0
        %2264 = vmatpush1.msra.mxu0 0.0
        %2265 = vmatprep.subr.mxu0 0.0
        %2266 = vmatpush1.msra.mxu0 0.0
        %2267 = vmatprep.subr.mxu0 0.0
        %2268 = vmatpush1.msra.mxu0 0.0
        %2269 = vmatprep.mubr.f32.mxu0 0.0
        %2270 = vmatmul.mubr.f32.gmra.mrb[0].mxu0 %v2203
        %v2271 = vpop.f32.mrb[0].mxu0
        %v2272 = vadd.f32 0.0, %v2271
        %v2273 = vpop.f32.mrb[0].mxu0
        %2274 = vdwg.mxu0
        %2275 = vrot.lane.b32.xlu0 %v1939, 112
        %v2276 = vpop.permute.xlu0 %2275
        %2277 = vrot.lane.b32.xlu0 %v1939, 80
        %v2278 = vpop.permute.xlu0 %2277
        %v2279 = vsel %vm738, %v2276, 0
        %v2281 = vsel %vm738, %v2278, 0
        %2283 = vmatprep.subr.mxu0 0.0
        %2284 = vmatpush1.xpose.msra.mxu0 %v2281
        %2285 = vmatprep.subr.mxu0 0.0
        %2286 = vmatpush1.xpose.msra.mxu0 0.0
        %2287 = vmatprep.subr.mxu0 0.0
        %2288 = vmatpush1.xpose.msra.mxu0 0.0
        %2289 = vmatprep.subr.mxu0 0.0
        %2290 = vmatpush1.xpose.msra.mxu0 0.0
        %2291 = vmatprep.subr.mxu0 0.0
        %2292 = vmatpush1.xpose.msra.mxu0 0.0
        %2293 = vmatprep.subr.mxu0 0.0
        %2294 = vmatpush1.xpose.msra.mxu0 0.0
        %2295 = vmatprep.subr.mxu0 0.0
        %2296 = vmatpush1.xpose.msra.mxu0 0.0
        %2297 = vmatprep.subr.mxu0 0.0
        %2298 = vmatpush1.xpose.msra.mxu0 0.0
        %2299 = vmatprep.subr.mxu0 0.0
        %2300 = vmatpush1.xpose.msra.mxu0 0.0
        %2301 = vmatprep.subr.mxu0 0.0
        %2302 = vmatpush1.xpose.msra.mxu0 0.0
        %2303 = vmatprep.subr.mxu0 0.0
        %2304 = vmatpush1.xpose.msra.mxu0 0.0
        %2305 = vmatprep.subr.mxu0 0.0
        %2306 = vmatpush1.xpose.msra.mxu0 0.0
        %2307 = vmatprep.subr.mxu0 0.0
        %2308 = vmatpush1.xpose.msra.mxu0 0.0
        %2309 = vmatprep.subr.mxu0 0.0
        %2310 = vmatpush1.xpose.msra.mxu0 0.0
        %2311 = vmatprep.subr.mxu0 0.0
        %2312 = vmatpush1.xpose.msra.mxu0 0.0
        %2313 = vmatprep.subr.mxu0 0.0
        %2314 = vmatpush1.xpose.msra.mxu0 0.0
        %2315 = vmatprep.subr.mxu0 0.0
        %2316 = vmatpush1.xpose.msra.mxu0 0.0
        %2317 = vmatprep.subr.mxu0 0.0
        %2318 = vmatpush1.xpose.msra.mxu0 0.0
        %2319 = vmatprep.subr.mxu0 0.0
        %2320 = vmatpush1.xpose.msra.mxu0 0.0
        %2321 = vmatprep.subr.mxu0 0.0
        %2322 = vmatpush1.xpose.msra.mxu0 0.0
        %2323 = vmatprep.subr.mxu0 0.0
        %2324 = vmatpush1.xpose.msra.mxu0 0.0
        %2325 = vmatprep.subr.mxu0 0.0
        %2326 = vmatpush1.xpose.msra.mxu0 0.0
        %2327 = vmatprep.subr.mxu0 0.0
        %2328 = vmatpush1.xpose.msra.mxu0 0.0
        %2329 = vmatprep.subr.mxu0 0.0
        %2330 = vmatpush1.xpose.msra.mxu0 0.0
        %2331 = vmatprep.subr.mxu0 0.0
        %2332 = vmatpush1.xpose.msra.mxu0 0.0
        %2333 = vmatprep.subr.mxu0 0.0
        %2334 = vmatpush1.xpose.msra.mxu0 0.0
        %2335 = vmatprep.subr.mxu0 0.0
        %2336 = vmatpush1.xpose.msra.mxu0 0.0
        %2337 = vmatprep.subr.mxu0 0.0
        %2338 = vmatpush1.xpose.msra.mxu0 0.0
        %2339 = vmatprep.subr.mxu0 0.0
        %2340 = vmatpush1.xpose.msra.mxu0 0.0
        %2341 = vmatprep.subr.mxu0 0.0
        %2342 = vmatpush1.xpose.msra.mxu0 0.0
        %2343 = vmatprep.subr.mxu0 0.0
        %2344 = vmatpush1.xpose.msra.mxu0 0.0
        %2345 = vmatprep.subr.mxu0 0.0
        %2346 = vmatpush1.xpose.msra.mxu0 0.0
        %2347 = vmatprep.mubr.f32.mxu0 0.0
        %2348 = vmatmul.mubr.f32.gmra.mrb[0].mxu0 %v2279
        %v2349 = vpop.f32.mrb[0].mxu0
        %v2350 = vadd.f32 0.0, %v2349
        %v2351 = vpop.f32.mrb[0].mxu0
        %2352 = vdwg.mxu0
        %2353 = vrot.lane.b32.xlu0 %v1944, 112
        %v2354 = vpop.permute.xlu0 %2353
        %2355 = vrot.lane.b32.xlu0 %v1944, 80
        %v2356 = vpop.permute.xlu0 %2355
        %v2357 = vsel %vm738, %v2354, 0
        %v2359 = vsel %vm738, %v2356, 0
        %2361 = vmatprep.subr.mxu0 0.0
        %2362 = vmatpush1.xpose.msra.mxu0 %v2359
        %2363 = vmatprep.subr.mxu0 0.0
        %2364 = vmatpush1.xpose.msra.mxu0 0.0
        %2365 = vmatprep.subr.mxu0 0.0
        %2366 = vmatpush1.xpose.msra.mxu0 0.0
        %2367 = vmatprep.subr.mxu0 0.0
        %2368 = vmatpush1.xpose.msra.mxu0 0.0
        %2369 = vmatprep.subr.mxu0 0.0
        %2370 = vmatpush1.xpose.msra.mxu0 0.0
        %2371 = vmatprep.subr.mxu0 0.0
        %2372 = vmatpush1.xpose.msra.mxu0 0.0
        %2373 = vmatprep.subr.mxu0 0.0
        %2374 = vmatpush1.xpose.msra.mxu0 0.0
        %2375 = vmatprep.subr.mxu0 0.0
        %2376 = vmatpush1.xpose.msra.mxu0 0.0
        %2377 = vmatprep.subr.mxu0 0.0
        %2378 = vmatpush1.xpose.msra.mxu0 0.0
        %2379 = vmatprep.subr.mxu0 0.0
        %2380 = vmatpush1.xpose.msra.mxu0 0.0
        %2381 = vmatprep.subr.mxu0 0.0
        %2382 = vmatpush1.xpose.msra.mxu0 0.0
        %2383 = vmatprep.subr.mxu0 0.0
        %2384 = vmatpush1.xpose.msra.mxu0 0.0
        %2385 = vmatprep.subr.mxu0 0.0
        %2386 = vmatpush1.xpose.msra.mxu0 0.0
        %2387 = vmatprep.subr.mxu0 0.0
        %2388 = vmatpush1.xpose.msra.mxu0 0.0
        %2389 = vmatprep.subr.mxu0 0.0
        %2390 = vmatpush1.xpose.msra.mxu0 0.0
        %2391 = vmatprep.subr.mxu0 0.0
        %2392 = vmatpush1.xpose.msra.mxu0 0.0
        %2393 = vmatprep.subr.mxu0 0.0
        %2394 = vmatpush1.xpose.msra.mxu0 0.0
        %2395 = vmatprep.subr.mxu0 0.0
        %2396 = vmatpush1.xpose.msra.mxu0 0.0
        %2397 = vmatprep.subr.mxu0 0.0
        %2398 = vmatpush1.xpose.msra.mxu0 0.0
        %2399 = vmatprep.subr.mxu0 0.0
        %2400 = vmatpush1.xpose.msra.mxu0 0.0
        %2401 = vmatprep.subr.mxu0 0.0
        %2402 = vmatpush1.xpose.msra.mxu0 0.0
        %2403 = vmatprep.subr.mxu0 0.0
        %2404 = vmatpush1.xpose.msra.mxu0 0.0
        %2405 = vmatprep.subr.mxu0 0.0
        %2406 = vmatpush1.xpose.msra.mxu0 0.0
        %2407 = vmatprep.subr.mxu0 0.0
        %2408 = vmatpush1.xpose.msra.mxu0 0.0
        %2409 = vmatprep.subr.mxu0 0.0
        %2410 = vmatpush1.xpose.msra.mxu0 0.0
        %2411 = vmatprep.subr.mxu0 0.0
        %2412 = vmatpush1.xpose.msra.mxu0 0.0
        %2413 = vmatprep.subr.mxu0 0.0
        %2414 = vmatpush1.xpose.msra.mxu0 0.0
        %2415 = vmatprep.subr.mxu0 0.0
        %2416 = vmatpush1.xpose.msra.mxu0 0.0
        %2417 = vmatprep.subr.mxu0 0.0
        %2418 = vmatpush1.xpose.msra.mxu0 0.0
        %2419 = vmatprep.subr.mxu0 0.0
        %2420 = vmatpush1.xpose.msra.mxu0 0.0
        %2421 = vmatprep.subr.mxu0 0.0
        %2422 = vmatpush1.xpose.msra.mxu0 0.0
        %2423 = vmatprep.subr.mxu0 0.0
        %2424 = vmatpush1.xpose.msra.mxu0 0.0
        %2425 = vmatprep.mubr.f32.mxu0 0.0
        %2426 = vmatmul.mubr.f32.gmra.mrb[0].mxu0 %v2357
        %v2427 = vpop.f32.mrb[0].mxu0
        %v2428 = vadd.f32 0.0, %v2427
        %v2429 = vpop.f32.mrb[0].mxu0
        %2430 = vdwg.mxu0
        %v2431 = vsel %vm890, %v2350, -inf
        %2432 = vmax.xlane.f32.xlu0 %v2431
        %v2433 = vpop.xlane.xlu0 %2432
        %v2434 = vsel %vm890, %v2428, -inf
        %2435 = vmax.xlane.f32.xlu0 %v2434
        %v2436 = vpop.xlane.xlu0 %2435
        %v2437 = vsub.f32 %v2350, %v2433
        %v2438 = vsub.f32 %v2428, %v2436
        %v2439 = vmul.f32 %v2437, 1.442695
        %v2440 = vpow.pop %v2439
        %v2441 = vmul.f32 %v2438, 1.442695
        %v2442 = vpow.pop %v2441
        %v2443 = vsel %vm890, %v2440, 0.0
        %2444 = vadd.xlane.f32.xlu0 %v2443
        %v2445 = vpop.xlane.xlu0 %2444
        %v2446 = vsel %vm890, %v2442, 0.0
        %2447 = vadd.xlane.f32.xlu0 %v2446
        %v2448 = vpop.xlane.xlu0 %2447
        %v2449 = vrcp.pop %v2445
        %v2450 = vmul.f32 %v2440, %v2449
        %v2451 = vrcp.pop %v2448
        %v2452 = vmul.f32 %v2442, %v2451
        %2453 = vrot.lane.b32.xlu0 %v1939, 48
        %v2454 = vpop.permute.xlu0 %2453
        %v2457 = vsel %vm890, %v2450, 0
        %2459 = vmatprep.subr.mxu0 0.0
        %2460 = vmatpush1.msra.mxu0 %v2454
        %2461 = vmatprep.subr.mxu0 0.0
        %2462 = vmatpush1.msra.mxu0 0.0
        %2463 = vmatprep.subr.mxu0 0.0
        %2464 = vmatpush1.msra.mxu0 0.0
        %2465 = vmatprep.subr.mxu0 0.0
        %2466 = vmatpush1.msra.mxu0 0.0
        %2467 = vmatprep.subr.mxu0 0.0
        %2468 = vmatpush1.msra.mxu0 0.0
        %2469 = vmatprep.subr.mxu0 0.0
        %2470 = vmatpush1.msra.mxu0 0.0
        %2471 = vmatprep.subr.mxu0 0.0
        %2472 = vmatpush1.msra.mxu0 0.0
        %2473 = vmatprep.subr.mxu0 0.0
        %2474 = vmatpush1.msra.mxu0 0.0
        %2475 = vmatprep.subr.mxu0 0.0
        %2476 = vmatpush1.msra.mxu0 0.0
        %2477 = vmatprep.subr.mxu0 0.0
        %2478 = vmatpush1.msra.mxu0 0.0
        %2479 = vmatprep.subr.mxu0 0.0
        %2480 = vmatpush1.msra.mxu0 0.0
        %2481 = vmatprep.subr.mxu0 0.0
        %2482 = vmatpush1.msra.mxu0 0.0
        %2483 = vmatprep.subr.mxu0 0.0
        %2484 = vmatpush1.msra.mxu0 0.0
        %2485 = vmatprep.subr.mxu0 0.0
        %2486 = vmatpush1.msra.mxu0 0.0
        %2487 = vmatprep.subr.mxu0 0.0
        %2488 = vmatpush1.msra.mxu0 0.0
        %2489 = vmatprep.subr.mxu0 0.0
        %2490 = vmatpush1.msra.mxu0 0.0
        %2491 = vmatprep.subr.mxu0 0.0
        %2492 = vmatpush1.msra.mxu0 0.0
        %2493 = vmatprep.subr.mxu0 0.0
        %2494 = vmatpush1.msra.mxu0 0.0
        %2495 = vmatprep.subr.mxu0 0.0
        %2496 = vmatpush1.msra.mxu0 0.0
        %2497 = vmatprep.subr.mxu0 0.0
        %2498 = vmatpush1.msra.mxu0 0.0
        %2499 = vmatprep.subr.mxu0 0.0
        %2500 = vmatpush1.msra.mxu0 0.0
        %2501 = vmatprep.subr.mxu0 0.0
        %2502 = vmatpush1.msra.mxu0 0.0
        %2503 = vmatprep.subr.mxu0 0.0
        %2504 = vmatpush1.msra.mxu0 0.0
        %2505 = vmatprep.subr.mxu0 0.0
        %2506 = vmatpush1.msra.mxu0 0.0
        %2507 = vmatprep.subr.mxu0 0.0
        %2508 = vmatpush1.msra.mxu0 0.0
        %2509 = vmatprep.subr.mxu0 0.0
        %2510 = vmatpush1.msra.mxu0 0.0
        %2511 = vmatprep.subr.mxu0 0.0
        %2512 = vmatpush1.msra.mxu0 0.0
        %2513 = vmatprep.subr.mxu0 0.0
        %2514 = vmatpush1.msra.mxu0 0.0
        %2515 = vmatprep.subr.mxu0 0.0
        %2516 = vmatpush1.msra.mxu0 0.0
        %2517 = vmatprep.subr.mxu0 0.0
        %2518 = vmatpush1.msra.mxu0 0.0
        %2519 = vmatprep.subr.mxu0 0.0
        %2520 = vmatpush1.msra.mxu0 0.0
        %2521 = vmatprep.subr.mxu0 0.0
        %2522 = vmatpush1.msra.mxu0 0.0
        %2523 = vmatprep.mubr.f32.mxu0 0.0
        %2524 = vmatmul.mubr.f32.gmra.mrb[0].mxu0 %v2457
        %v2525 = vpop.f32.mrb[0].mxu0
        %v2526 = vadd.f32 0.0, %v2525
        %v2527 = vpop.f32.mrb[0].mxu0
        %2528 = vdwg.mxu0
        %2529 = vrot.lane.b32.xlu0 %v1944, 48
        %v2530 = vpop.permute.xlu0 %2529
        %v2533 = vsel %vm890, %v2452, 0
        %2535 = vmatprep.subr.mxu0 0.0
        %2536 = vmatpush1.msra.mxu0 %v2530
        %2537 = vmatprep.subr.mxu0 0.0
        %2538 = vmatpush1.msra.mxu0 0.0
        %2539 = vmatprep.subr.mxu0 0.0
        %2540 = vmatpush1.msra.mxu0 0.0
        %2541 = vmatprep.subr.mxu0 0.0
        %2542 = vmatpush1.msra.mxu0 0.0
        %2543 = vmatprep.subr.mxu0 0.0
        %2544 = vmatpush1.msra.mxu0 0.0
        %2545 = vmatprep.subr.mxu0 0.0
        %2546 = vmatpush1.msra.mxu0 0.0
        %2547 = vmatprep.subr.mxu0 0.0
        %2548 = vmatpush1.msra.mxu0 0.0
        %2549 = vmatprep.subr.mxu0 0.0
        %2550 = vmatpush1.msra.mxu0 0.0
        %2551 = vmatprep.subr.mxu0 0.0
        %2552 = vmatpush1.msra.mxu0 0.0
        %2553 = vmatprep.subr.mxu0 0.0
        %2554 = vmatpush1.msra.mxu0 0.0
        %2555 = vmatprep.subr.mxu0 0.0
        %2556 = vmatpush1.msra.mxu0 0.0
        %2557 = vmatprep.subr.mxu0 0.0
        %2558 = vmatpush1.msra.mxu0 0.0
        %2559 = vmatprep.subr.mxu0 0.0
        %2560 = vmatpush1.msra.mxu0 0.0
        %2561 = vmatprep.subr.mxu0 0.0
        %2562 = vmatpush1.msra.mxu0 0.0
        %2563 = vmatprep.subr.mxu0 0.0
        %2564 = vmatpush1.msra.mxu0 0.0
        %2565 = vmatprep.subr.mxu0 0.0
        %2566 = vmatpush1.msra.mxu0 0.0
        %2567 = vmatprep.subr.mxu0 0.0
        %2568 = vmatpush1.msra.mxu0 0.0
        %2569 = vmatprep.subr.mxu0 0.0
        %2570 = vmatpush1.msra.mxu0 0.0
        %2571 = vmatprep.subr.mxu0 0.0
        %2572 = vmatpush1.msra.mxu0 0.0
        %2573 = vmatprep.subr.mxu0 0.0
        %2574 = vmatpush1.msra.mxu0 0.0
        %2575 = vmatprep.subr.mxu0 0.0
        %2576 = vmatpush1.msra.mxu0 0.0
        %2577 = vmatprep.subr.mxu0 0.0
        %2578 = vmatpush1.msra.mxu0 0.0
        %2579 = vmatprep.subr.mxu0 0.0
        %2580 = vmatpush1.msra.mxu0 0.0
        %2581 = vmatprep.subr.mxu0 0.0
        %2582 = vmatpush1.msra.mxu0 0.0
        %2583 = vmatprep.subr.mxu0 0.0
        %2584 = vmatpush1.msra.mxu0 0.0
        %2585 = vmatprep.subr.mxu0 0.0
        %2586 = vmatpush1.msra.mxu0 0.0
        %2587 = vmatprep.subr.mxu0 0.0
        %2588 = vmatpush1.msra.mxu0 0.0
        %2589 = vmatprep.subr.mxu0 0.0
        %2590 = vmatpush1.msra.mxu0 0.0
        %2591 = vmatprep.subr.mxu0 0.0
        %2592 = vmatpush1.msra.mxu0 0.0
        %2593 = vmatprep.subr.mxu0 0.0
        %2594 = vmatpush1.msra.mxu0 0.0
        %2595 = vmatprep.subr.mxu0 0.0
        %2596 = vmatpush1.msra.mxu0 0.0
        %2597 = vmatprep.subr.mxu0 0.0
        %2598 = vmatpush1.msra.mxu0 0.0
        %2599 = vmatprep.mubr.f32.mxu0 0.0
        %2600 = vmatmul.mubr.f32.gmra.mrb[0].mxu0 %v2533
        %v2601 = vpop.f32.mrb[0].mxu0
        %v2602 = vadd.f32 0.0, %v2601
        %v2603 = vpop.f32.mrb[0].mxu0
        %2604 = vdwg.mxu0
        %v2606 = vsel %vm738, %v2526, 0
        %v2609 = vsel %vm738, %v2602, 0
        %2611 = vmatprep.subr.mxu0 0.0
        %2612 = vmatpush1.msra.mxu0 %v1856
        %2613 = vmatprep.subr.mxu0 0.0
        %2614 = vmatpush1.msra.mxu0 %v1857
        %2615 = vmatprep.subr.mxu0 0.0
        %2616 = vmatpush1.msra.mxu0 0.0
        %2617 = vmatprep.subr.mxu0 0.0
        %2618 = vmatpush1.msra.mxu0 0.0
        %2619 = vmatprep.subr.mxu0 0.0
        %2620 = vmatpush1.msra.mxu0 0.0
        %2621 = vmatprep.subr.mxu0 0.0
        %2622 = vmatpush1.msra.mxu0 0.0
        %2623 = vmatprep.subr.mxu0 0.0
        %2624 = vmatpush1.msra.mxu0 0.0
        %2625 = vmatprep.subr.mxu0 0.0
        %2626 = vmatpush1.msra.mxu0 0.0
        %2627 = vmatprep.subr.mxu0 0.0
        %2628 = vmatpush1.msra.mxu0 0.0
        %2629 = vmatprep.subr.mxu0 0.0
        %2630 = vmatpush1.msra.mxu0 0.0
        %2631 = vmatprep.subr.mxu0 0.0
        %2632 = vmatpush1.msra.mxu0 0.0
        %2633 = vmatprep.subr.mxu0 0.0
        %2634 = vmatpush1.msra.mxu0 0.0
        %2635 = vmatprep.subr.mxu0 0.0
        %2636 = vmatpush1.msra.mxu0 0.0
        %2637 = vmatprep.subr.mxu0 0.0
        %2638 = vmatpush1.msra.mxu0 0.0
        %2639 = vmatprep.subr.mxu0 0.0
        %2640 = vmatpush1.msra.mxu0 0.0
        %2641 = vmatprep.subr.mxu0 0.0
        %2642 = vmatpush1.msra.mxu0 0.0
        %2643 = vmatprep.subr.mxu0 0.0
        %2644 = vmatpush1.msra.mxu0 0.0
        %2645 = vmatprep.subr.mxu0 0.0
        %2646 = vmatpush1.msra.mxu0 0.0
        %2647 = vmatprep.subr.mxu0 0.0
        %2648 = vmatpush1.msra.mxu0 0.0
        %2649 = vmatprep.subr.mxu0 0.0
        %2650 = vmatpush1.msra.mxu0 0.0
        %2651 = vmatprep.subr.mxu0 0.0
        %2652 = vmatpush1.msra.mxu0 0.0
        %2653 = vmatprep.subr.mxu0 0.0
        %2654 = vmatpush1.msra.mxu0 0.0
        %2655 = vmatprep.subr.mxu0 0.0
        %2656 = vmatpush1.msra.mxu0 0.0
        %2657 = vmatprep.subr.mxu0 0.0
        %2658 = vmatpush1.msra.mxu0 0.0
        %2659 = vmatprep.subr.mxu0 0.0
        %2660 = vmatpush1.msra.mxu0 0.0
        %2661 = vmatprep.subr.mxu0 0.0
        %2662 = vmatpush1.msra.mxu0 0.0
        %2663 = vmatprep.subr.mxu0 0.0
        %2664 = vmatpush1.msra.mxu0 0.0
        %2665 = vmatprep.subr.mxu0 0.0
        %2666 = vmatpush1.msra.mxu0 0.0
        %2667 = vmatprep.subr.mxu0 0.0
        %2668 = vmatpush1.msra.mxu0 0.0
        %2669 = vmatprep.subr.mxu0 0.0
        %2670 = vmatpush1.msra.mxu0 0.0
        %2671 = vmatprep.subr.mxu0 0.0
        %2672 = vmatpush1.msra.mxu0 0.0
        %2673 = vmatprep.subr.mxu0 0.0
        %2674 = vmatpush1.msra.mxu0 0.0
        %2675 = vmatprep.mubr.f32.mxu0 0.0
        %2676 = vmatmul.mubr.f32.gmra.mrb[0].mxu0 %v2606
        %v2677 = vpop.f32.mrb[0].mxu0
        %v2678 = vadd.f32 0.0, %v2677
        %v2679 = vpop.f32.mrb[0].mxu0
        %2680 = vmatprep.mubr.f32.mxu0 0.0
        %2681 = vmatmul.mubr.f32.gmra.mrb[0].mxu0 %v2609
        %v2682 = vpop.f32.mrb[0].mxu0
        %v2683 = vadd.f32 0.0, %v2682
        %v2684 = vpop.f32.mrb[0].mxu0
        %2685 = vdwg.mxu0
        %v2687 = vsel %vm738, %v2196, 0
        %v2690 = vsel %vm738, %v2272, 0
        %2692 = vmatprep.subr.mxu0 0.0
        %2693 = vmatpush1.msra.mxu0 %v1854
        %2694 = vmatprep.subr.mxu0 0.0
        %2695 = vmatpush1.msra.mxu0 %v1855
        %2696 = vmatprep.subr.mxu0 0.0
        %2697 = vmatpush1.msra.mxu0 0.0
        %2698 = vmatprep.subr.mxu0 0.0
        %2699 = vmatpush1.msra.mxu0 0.0
        %2700 = vmatprep.subr.mxu0 0.0
        %2701 = vmatpush1.msra.mxu0 0.0
        %2702 = vmatprep.subr.mxu0 0.0
        %2703 = vmatpush1.msra.mxu0 0.0
        %2704 = vmatprep.subr.mxu0 0.0
        %2705 = vmatpush1.msra.mxu0 0.0
        %2706 = vmatprep.subr.mxu0 0.0
        %2707 = vmatpush1.msra.mxu0 0.0
        %2708 = vmatprep.subr.mxu0 0.0
        %2709 = vmatpush1.msra.mxu0 0.0
        %2710 = vmatprep.subr.mxu0 0.0
        %2711 = vmatpush1.msra.mxu0 0.0
        %2712 = vmatprep.subr.mxu0 0.0
        %2713 = vmatpush1.msra.mxu0 0.0
        %2714 = vmatprep.subr.mxu0 0.0
        %2715 = vmatpush1.msra.mxu0 0.0
        %2716 = vmatprep.subr.mxu0 0.0
        %2717 = vmatpush1.msra.mxu0 0.0
        %2718 = vmatprep.subr.mxu0 0.0
        %2719 = vmatpush1.msra.mxu0 0.0
        %2720 = vmatprep.subr.mxu0 0.0
        %2721 = vmatpush1.msra.mxu0 0.0
        %2722 = vmatprep.subr.mxu0 0.0
        %2723 = vmatpush1.msra.mxu0 0.0
        %2724 = vmatprep.subr.mxu0 0.0
        %2725 = vmatpush1.msra.mxu0 0.0
        %2726 = vmatprep.subr.mxu0 0.0
        %2727 = vmatpush1.msra.mxu0 0.0
        %2728 = vmatprep.subr.mxu0 0.0
        %2729 = vmatpush1.msra.mxu0 0.0
        %2730 = vmatprep.subr.mxu0 0.0
        %2731 = vmatpush1.msra.mxu0 0.0
        %2732 = vmatprep.subr.mxu0 0.0
        %2733 = vmatpush1.msra.mxu0 0.0
        %2734 = vmatprep.subr.mxu0 0.0
        %2735 = vmatpush1.msra.mxu0 0.0
        %2736 = vmatprep.subr.mxu0 0.0
        %2737 = vmatpush1.msra.mxu0 0.0
        %2738 = vmatprep.subr.mxu0 0.0
        %2739 = vmatpush1.msra.mxu0 0.0
        %2740 = vmatprep.subr.mxu0 0.0
        %2741 = vmatpush1.msra.mxu0 0.0
        %2742 = vmatprep.subr.mxu0 0.0
        %2743 = vmatpush1.msra.mxu0 0.0
        %2744 = vmatprep.subr.mxu0 0.0
        %2745 = vmatpush1.msra.mxu0 0.0
        %2746 = vmatprep.subr.mxu0 0.0
        %2747 = vmatpush1.msra.mxu0 0.0
        %2748 = vmatprep.subr.mxu0 0.0
        %2749 = vmatpush1.msra.mxu0 0.0
        %2750 = vmatprep.subr.mxu0 0.0
        %2751 = vmatpush1.msra.mxu0 0.0
        %2752 = vmatprep.subr.mxu0 0.0
        %2753 = vmatpush1.msra.mxu0 0.0
        %2754 = vmatprep.subr.mxu0 0.0
        %2755 = vmatpush1.msra.mxu0 0.0
        %2756 = vmatprep.mubr.f32.mxu0 0.0
        %2757 = vmatmul.mubr.f32.gmra.mrb[0].mxu0 %v2687
        %v2758 = vpop.f32.mrb[0].mxu0
        %v2759 = vadd.f32 %v2678, %v2758
        %v2760 = vpop.f32.mrb[0].mxu0
        %2761 = vmatprep.mubr.f32.mxu0 0.0
        %2762 = vmatmul.mubr.f32.gmra.mrb[0].mxu0 %v2690
        %v2763 = vpop.f32.mrb[0].mxu0
        %v2764 = vadd.f32 %v2683, %v2763
        %v2765 = vpop.f32.mrb[0].mxu0
        %2766 = vdwg.mxu0
        %v2767 = vlaneseq
        %v2768 = vshrl.u32 %v2767, 7
        %v2769 = vsub.s32 0, %v2768
        %v2770 = vrot.slane %v1859, %v2769
        %v2771 = vadd.f32 %v2759, %v2770
        %v2772 = vadd.f32 %v2764, %v2770
        %v2773 = vadd.f32 %v1844, %v2771
        %v2774 = vadd.f32 %v1845, %v2772
        %v2775 = vsel %vm598, %v2773, 0.0
        %2776 = vadd.xlane.f32.xlu0 %v2775
        %v2777 = vpop.xlane.xlu0 %2776
        %v2778 = vsel %vm598, %v2774, 0.0
        %2779 = vadd.xlane.f32.xlu0 %v2778
        %v2780 = vpop.xlane.xlu0 %2779
        %v2781 = vmul.f32 %v2777, %v605
        %v2782 = vmul.f32 %v2780, %v605
        %v2783 = vsub.f32 %v2773, %v2781
        %v2784 = vsub.f32 %v2774, %v2782
        %v2785 = vmul.f32 %v2783, %v2783
        %v2786 = vmul.f32 %v2784, %v2784
        %v2787 = vsel %vm598, %v2785, 0.0
        %2788 = vadd.xlane.f32.xlu0 %v2787
        %v2789 = vpop.xlane.xlu0 %2788
        %v2790 = vsel %vm598, %v2786, 0.0
        %2791 = vadd.xlane.f32.xlu0 %v2790
        %v2792 = vpop.xlane.xlu0 %2791
        %v2793 = vmul.f32 %v2789, %v605
        %v2794 = vmul.f32 %v2792, %v605
        %v2795 = vadd.f32 %v2793, 1e-12
        %v2796 = vadd.f32 %v2794, 1e-12
        %v2797 = vrsqrt.pop %v2795
        %v2798 = vrsqrt.pop %v2796
        %v2799 = vmul.f32 %v2783, %v2797
        %v2800 = vmul.f32 %v2784, %v2798
        %v2801 = vlaneseq
        %v2802 = vshrl.u32 %v2801, 7
        %v2803 = vsub.s32 2, %v2802
        %v2804 = vrot.slane %v1859, %v2803
        %v2805 = vmul.f32 %v2799, %v2804
        %v2806 = vmul.f32 %v2800, %v2804
        %v2807 = vlaneseq
        %v2808 = vshrl.u32 %v2807, 7
        %v2809 = vsub.s32 3, %v2808
        %v2810 = vrot.slane %v1859, %v2809
        %v2811 = vadd.f32 %v2805, %v2810
        %v2812 = vadd.f32 %v2806, %v2810
        %s2813 = scalar_lea.vmem %s7, 32
        %v2814 = vld [vmem:[%s2813] sm:$0xff]
        %v2815 = vld [vmem:[%s2813 + $0x8] sm:$0xff]
        %v2816 = vld [vmem:[%s2813 + $0x10] sm:$0xff]
        %v2817 = vld [vmem:[%s2813 + $0x18] sm:$0xff]
        %s2818 = scalar_lea.vmem %s8, 1
        %v2819 = vld [vmem:[%s2818] sm:$0x1]
        %v2821 = vlaneseq
        %v2822 = vshrl.u32 %v2821, 7
        %v2823 = vsub.s32 0, %v2822
        %v2824 = vrot.slane %v2819, %v2823
        %v2827 = vsel %vm598, %v2811, 0
        %v2830 = vsel %vm598, %v2812, 0
        %2832 = vmatprep.subr.mxu0 0.0
        %2833 = vmatpush1.msra.mxu0 %v2814
        %2834 = vmatprep.subr.mxu0 0.0
        %2835 = vmatpush1.msra.mxu0 %v2815
        %2836 = vmatprep.subr.mxu0 0.0
        %2837 = vmatpush1.msra.mxu0 %v2816
        %2838 = vmatprep.subr.mxu0 0.0
        %2839 = vmatpush1.msra.mxu0 %v2817
        %2840 = vmatprep.subr.mxu0 0.0
        %2841 = vmatpush1.msra.mxu0 0.0
        %2842 = vmatprep.subr.mxu0 0.0
        %2843 = vmatpush1.msra.mxu0 0.0
        %2844 = vmatprep.subr.mxu0 0.0
        %2845 = vmatpush1.msra.mxu0 0.0
        %2846 = vmatprep.subr.mxu0 0.0
        %2847 = vmatpush1.msra.mxu0 0.0
        %2848 = vmatprep.subr.mxu0 0.0
        %2849 = vmatpush1.msra.mxu0 0.0
        %2850 = vmatprep.subr.mxu0 0.0
        %2851 = vmatpush1.msra.mxu0 0.0
        %2852 = vmatprep.subr.mxu0 0.0
        %2853 = vmatpush1.msra.mxu0 0.0
        %2854 = vmatprep.subr.mxu0 0.0
        %2855 = vmatpush1.msra.mxu0 0.0
        %2856 = vmatprep.subr.mxu0 0.0
        %2857 = vmatpush1.msra.mxu0 0.0
        %2858 = vmatprep.subr.mxu0 0.0
        %2859 = vmatpush1.msra.mxu0 0.0
        %2860 = vmatprep.subr.mxu0 0.0
        %2861 = vmatpush1.msra.mxu0 0.0
        %2862 = vmatprep.subr.mxu0 0.0
        %2863 = vmatpush1.msra.mxu0 0.0
        %2864 = vmatprep.subr.mxu0 0.0
        %2865 = vmatpush1.msra.mxu0 0.0
        %2866 = vmatprep.subr.mxu0 0.0
        %2867 = vmatpush1.msra.mxu0 0.0
        %2868 = vmatprep.subr.mxu0 0.0
        %2869 = vmatpush1.msra.mxu0 0.0
        %2870 = vmatprep.subr.mxu0 0.0
        %2871 = vmatpush1.msra.mxu0 0.0
        %2872 = vmatprep.subr.mxu0 0.0
        %2873 = vmatpush1.msra.mxu0 0.0
        %2874 = vmatprep.subr.mxu0 0.0
        %2875 = vmatpush1.msra.mxu0 0.0
        %2876 = vmatprep.subr.mxu0 0.0
        %2877 = vmatpush1.msra.mxu0 0.0
        %2878 = vmatprep.subr.mxu0 0.0
        %2879 = vmatpush1.msra.mxu0 0.0
        %2880 = vmatprep.subr.mxu0 0.0
        %2881 = vmatpush1.msra.mxu0 0.0
        %2882 = vmatprep.subr.mxu0 0.0
        %2883 = vmatpush1.msra.mxu0 0.0
        %2884 = vmatprep.subr.mxu0 0.0
        %2885 = vmatpush1.msra.mxu0 0.0
        %2886 = vmatprep.subr.mxu0 0.0
        %2887 = vmatpush1.msra.mxu0 0.0
        %2888 = vmatprep.subr.mxu0 0.0
        %2889 = vmatpush1.msra.mxu0 0.0
        %2890 = vmatprep.subr.mxu0 0.0
        %2891 = vmatpush1.msra.mxu0 0.0
        %2892 = vmatprep.subr.mxu0 0.0
        %2893 = vmatpush1.msra.mxu0 0.0
        %2894 = vmatprep.subr.mxu0 0.0
        %2895 = vmatpush1.msra.mxu0 0.0
        %2896 = vmatprep.mubr.f32.mxu0 0.0
        %2897 = vmatmul.mubr.f32.gmra.mrb[0].mxu0 %v2827
        %v2898 = vpop.f32.mrb[0].mxu0
        %v2899 = vadd.f32 %v2824, %v2898
        %v2900 = vpop.f32.mrb[0].mxu0
        %2901 = vmatprep.mubr.f32.mxu0 0.0
        %2902 = vmatmul.mubr.f32.gmra.mrb[0].mxu0 %v2830
        %v2903 = vpop.f32.mrb[0].mxu0
        %v2904 = vadd.f32 %v2824, %v2903
        %v2905 = vpop.f32.mrb[0].mxu0
        %2906 = vdwg.mxu0
        %v2907 = vmul.f32 %v2899, %v2899
        %v2908 = vmul.f32 %v2904, %v2904
        %v2909 = vmul.f32 %v2899, %v2907
        %v2910 = vmul.f32 %v2904, %v2908
        %v2911 = vmul.f32 %v2909, 0.044715
        %v2912 = vmul.f32 %v2910, 0.044715
        %v2913 = vadd.f32 %v2899, %v2911
        %v2914 = vadd.f32 %v2904, %v2912
        %v2915 = vmul.f32 %v2913, 0.7978846
        %v2916 = vmul.f32 %v2914, 0.7978846
        %v2917 = vtanh.pop %v2915
        %v2918 = vtanh.pop %v2916
        %v2919 = vadd.f32 %v2917, 1.0
        %v2920 = vadd.f32 %v2918, 1.0
        %v2921 = vmul.f32 %v2919, 0.5
        %v2922 = vmul.f32 %v2920, 0.5
        %v2923 = vmul.f32 %v2899, %v2921
        %v2924 = vmul.f32 %v2904, %v2922
        %s2925 = scalar_lea.vmem %s9, 64
        %v2926 = vld [vmem:[%s2925] sm:$0xff]
        %v2927 = vld [vmem:[%s2925 + $0x8] sm:$0xff]
        %v2928 = vld [vmem:[%s2925 + $0x10] sm:$0xff]
        %v2929 = vld [vmem:[%s2925 + $0x18] sm:$0xff]
        %v2930 = vld [vmem:[%s2925 + $0x20] sm:$0xff]
        %v2931 = vld [vmem:[%s2925 + $0x28] sm:$0xff]
        %v2932 = vld [vmem:[%s2925 + $0x30] sm:$0xff]
        %v2933 = vld [vmem:[%s2925 + $0x38] sm:$0xff]
        %v2934 = vlaneseq
        %v2935 = vshrl.u32 %v2934, 7
        %v2936 = vsub.s32 1, %v2935
        %v2937 = vrot.slane %v1859, %v2936
        %v2939 = vsel %vm514, %v2923, 0
        %v2942 = vsel %vm514, %v2924, 0
        %2944 = vmatprep.subr.mxu0 0.0
        %2945 = vmatpush1.msra.mxu0 %v2926
        %2946 = vmatprep.subr.mxu0 0.0
        %2947 = vmatpush1.msra.mxu0 %v2927
        %2948 = vmatprep.subr.mxu0 0.0
        %2949 = vmatpush1.msra.mxu0 %v2928
        %2950 = vmatprep.subr.mxu0 0.0
        %2951 = vmatpush1.msra.mxu0 %v2929
        %2952 = vmatprep.subr.mxu0 0.0
        %2953 = vmatpush1.msra.mxu0 %v2930
        %2954 = vmatprep.subr.mxu0 0.0
        %2955 = vmatpush1.msra.mxu0 %v2931
        %2956 = vmatprep.subr.mxu0 0.0
        %2957 = vmatpush1.msra.mxu0 %v2932
        %2958 = vmatprep.subr.mxu0 0.0
        %2959 = vmatpush1.msra.mxu0 %v2933
        %2960 = vmatprep.subr.mxu0 0.0
        %2961 = vmatpush1.msra.mxu0 0.0
        %2962 = vmatprep.subr.mxu0 0.0
        %2963 = vmatpush1.msra.mxu0 0.0
        %2964 = vmatprep.subr.mxu0 0.0
        %2965 = vmatpush1.msra.mxu0 0.0
        %2966 = vmatprep.subr.mxu0 0.0
        %2967 = vmatpush1.msra.mxu0 0.0
        %2968 = vmatprep.subr.mxu0 0.0
        %2969 = vmatpush1.msra.mxu0 0.0
        %2970 = vmatprep.subr.mxu0 0.0
        %2971 = vmatpush1.msra.mxu0 0.0
        %2972 = vmatprep.subr.mxu0 0.0
        %2973 = vmatpush1.msra.mxu0 0.0
        %2974 = vmatprep.subr.mxu0 0.0
        %2975 = vmatpush1.msra.mxu0 0.0
        %2976 = vmatprep.subr.mxu0 0.0
        %2977 = vmatpush1.msra.mxu0 0.0
        %2978 = vmatprep.subr.mxu0 0.0
        %2979 = vmatpush1.msra.mxu0 0.0
        %2980 = vmatprep.subr.mxu0 0.0
        %2981 = vmatpush1.msra.mxu0 0.0
        %2982 = vmatprep.subr.mxu0 0.0
        %2983 = vmatpush1.msra.mxu0 0.0
        %2984 = vmatprep.subr.mxu0 0.0
        %2985 = vmatpush1.msra.mxu0 0.0
        %2986 = vmatprep.subr.mxu0 0.0
        %2987 = vmatpush1.msra.mxu0 0.0
        %2988 = vmatprep.subr.mxu0 0.0
        %2989 = vmatpush1.msra.mxu0 0.0
        %2990 = vmatprep.subr.mxu0 0.0
        %2991 = vmatpush1.msra.mxu0 0.0
        %2992 = vmatprep.subr.mxu0 0.0
        %2993 = vmatpush1.msra.mxu0 0.0
        %2994 = vmatprep.subr.mxu0 0.0
        %2995 = vmatpush1.msra.mxu0 0.0
        %2996 = vmatprep.subr.mxu0 0.0
        %2997 = vmatpush1.msra.mxu0 0.0
        %2998 = vmatprep.subr.mxu0 0.0
        %2999 = vmatpush1.msra.mxu0 0.0
        %3000 = vmatprep.subr.mxu0 0.0
        %3001 = vmatpush1.msra.mxu0 0.0
        %3002 = vmatprep.subr.mxu0 0.0
        %3003 = vmatpush1.msra.mxu0 0.0
        %3004 = vmatprep.subr.mxu0 0.0
        %3005 = vmatpush1.msra.mxu0 0.0
        %3006 = vmatprep.subr.mxu0 0.0
        %3007 = vmatpush1.msra.mxu0 0.0
        %3008 = vmatprep.mubr.f32.mxu0 0.0
        %3009 = vmatmul.mubr.f32.gmra.mrb[0].mxu0 %v2939
        %v3010 = vpop.f32.mrb[0].mxu0
        %v3011 = vadd.f32 %v2937, %v3010
        %v3012 = vpop.f32.mrb[0].mxu0
        %3013 = vmatprep.mubr.f32.mxu0 0.0
        %3014 = vmatmul.mubr.f32.gmra.mrb[0].mxu0 %v2942
        %v3015 = vpop.f32.mrb[0].mxu0
        %v3016 = vadd.f32 %v2937, %v3015
        %v3017 = vpop.f32.mrb[0].mxu0
        %3018 = vdwg.mxu0
        %v3019 = vadd.f32 %v2811, %v3011
        %v3020 = vadd.f32 %v2812, %v3016
        %v3021 = vsel %vm598, %v3019, 0.0
        %3022 = vadd.xlane.f32.xlu0 %v3021
        %v3023 = vpop.xlane.xlu0 %3022
        %v3024 = vsel %vm598, %v3020, 0.0
        %3025 = vadd.xlane.f32.xlu0 %v3024
        %v3026 = vpop.xlane.xlu0 %3025
        %v3027 = vmul.f32 %v3023, %v605
        %v3028 = vmul.f32 %v3026, %v605
        %v3029 = vsub.f32 %v3019, %v3027
        %v3030 = vsub.f32 %v3020, %v3028
        %v3031 = vmul.f32 %v3029, %v3029
        %v3032 = vmul.f32 %v3030, %v3030
        %v3033 = vsel %vm598, %v3031, 0.0
        %3034 = vadd.xlane.f32.xlu0 %v3033
        %v3035 = vpop.xlane.xlu0 %3034
        %v3036 = vsel %vm598, %v3032, 0.0
        %3037 = vadd.xlane.f32.xlu0 %v3036
        %v3038 = vpop.xlane.xlu0 %3037
        %v3039 = vmul.f32 %v3035, %v605
        %v3040 = vmul.f32 %v3038, %v605
        %v3041 = vadd.f32 %v3039, 1e-12
        %v3042 = vadd.f32 %v3040, 1e-12
        %v3043 = vrsqrt.pop %v3041
        %v3044 = vrsqrt.pop %v3042
        %v3045 = vmul.f32 %v3029, %v3043
        %v3046 = vmul.f32 %v3030, %v3044
        %v3047 = vlaneseq
        %v3048 = vshrl.u32 %v3047, 7
        %v3049 = vsub.s32 4, %v3048
        %v3050 = vrot.slane %v1859, %v3049
        %v3051 = vmul.f32 %v3045, %v3050
        %v3052 = vmul.f32 %v3046, %v3050
        %v3053 = vlaneseq
        %v3054 = vshrl.u32 %v3053, 7
        %v3055 = vsub.s32 5, %v3054
        %v3056 = vrot.slane %v1859, %v3055
        %v3057 = vadd.f32 %v3051, %v3056
        %v3058 = vadd.f32 %v3052, %v3056
        %v3059 = vld [vmem:[#allocation2] sm:$0x3]
        %v3062 = vrot.slane %v3058, 7
        %vm3063 = vcmask 1041409
        %v3064 = vsel %vm3063, %v3062, %v3057
        %v3066 = vadd.f32 %v3059, %v3064
        %vm3067 = vcmask 254976
        %3068 = vst.msk [vmem:[#allocation2] sm:$0x3] %vm3067, %v3066
        %p3069 = scmp.eq.s32.totalorder %s27, 1
        // Predicated region
        $region85: #{custom_bert_forward.1} parent=79 // pred_check
          %p3070 = pneg %p3069
        $region86: #{custom_bert_forward.1} parent=79 // pred_check_branch
          %3072 = sbr.rel (%p3070) target = $region88
        $region87: #{custom_bert_forward.1} parent=79 // pred_region
          %v3073 = vld [vmem:[#allocation2] sm:$0x3]
          %v3074 = vmul.f32 %v3073, 0.5
          %v3075 = vld [vmem:[%s11] sm:$0xff]
          %v3076 = vld [vmem:[%s11 + $0x8] sm:$0xff]
          %v3077 = vld [vmem:[%s11 + $0x10] sm:$0xff]
          %v3078 = vld [vmem:[%s11 + $0x18] sm:$0xff]
          %v3079 = vld [vmem:[%s12] sm:$0x1]
          %v3081 = vlaneseq
          %v3082 = vshrl.u32 %v3081, 7
          %v3083 = vsub.s32 0, %v3082
          %v3084 = vrot.slane %v3079, %v3083
          %v3087 = vsel %vm598, %v3074, 0
          %3089 = vmatprep.subr.mxu0 0.0
          %3090 = vmatpush1.msra.mxu0 %v3075
          %3091 = vmatprep.subr.mxu0 0.0
          %3092 = vmatpush1.msra.mxu0 %v3076
          %3093 = vmatprep.subr.mxu0 0.0
          %3094 = vmatpush1.msra.mxu0 %v3077
          %3095 = vmatprep.subr.mxu0 0.0
          %3096 = vmatpush1.msra.mxu0 %v3078
          %3097 = vmatprep.subr.mxu0 0.0
          %3098 = vmatpush1.msra.mxu0 0.0
          %3099 = vmatprep.subr.mxu0 0.0
          %3100 = vmatpush1.msra.mxu0 0.0
          %3101 = vmatprep.subr.mxu0 0.0
          %3102 = vmatpush1.msra.mxu0 0.0
          %3103 = vmatprep.subr.mxu0 0.0
          %3104 = vmatpush1.msra.mxu0 0.0
          %3105 = vmatprep.subr.mxu0 0.0
          %3106 = vmatpush1.msra.mxu0 0.0
          %3107 = vmatprep.subr.mxu0 0.0
          %3108 = vmatpush1.msra.mxu0 0.0
          %3109 = vmatprep.subr.mxu0 0.0
          %3110 = vmatpush1.msra.mxu0 0.0
          %3111 = vmatprep.subr.mxu0 0.0
          %3112 = vmatpush1.msra.mxu0 0.0
          %3113 = vmatprep.subr.mxu0 0.0
          %3114 = vmatpush1.msra.mxu0 0.0
          %3115 = vmatprep.subr.mxu0 0.0
          %3116 = vmatpush1.msra.mxu0 0.0
          %3117 = vmatprep.subr.mxu0 0.0
          %3118 = vmatpush1.msra.mxu0 0.0
          %3119 = vmatprep.subr.mxu0 0.0
          %3120 = vmatpush1.msra.mxu0 0.0
          %3121 = vmatprep.subr.mxu0 0.0
          %3122 = vmatpush1.msra.mxu0 0.0
          %3123 = vmatprep.subr.mxu0 0.0
          %3124 = vmatpush1.msra.mxu0 0.0
          %3125 = vmatprep.subr.mxu0 0.0
          %3126 = vmatpush1.msra.mxu0 0.0
          %3127 = vmatprep.subr.mxu0 0.0
          %3128 = vmatpush1.msra.mxu0 0.0
          %3129 = vmatprep.subr.mxu0 0.0
          %3130 = vmatpush1.msra.mxu0 0.0
          %3131 = vmatprep.subr.mxu0 0.0
          %3132 = vmatpush1.msra.mxu0 0.0
          %3133 = vmatprep.subr.mxu0 0.0
          %3134 = vmatpush1.msra.mxu0 0.0
          %3135 = vmatprep.subr.mxu0 0.0
          %3136 = vmatpush1.msra.mxu0 0.0
          %3137 = vmatprep.subr.mxu0 0.0
          %3138 = vmatpush1.msra.mxu0 0.0
          %3139 = vmatprep.subr.mxu0 0.0
          %3140 = vmatpush1.msra.mxu0 0.0
          %3141 = vmatprep.subr.mxu0 0.0
          %3142 = vmatpush1.msra.mxu0 0.0
          %3143 = vmatprep.subr.mxu0 0.0
          %3144 = vmatpush1.msra.mxu0 0.0
          %3145 = vmatprep.subr.mxu0 0.0
          %3146 = vmatpush1.msra.mxu0 0.0
          %3147 = vmatprep.subr.mxu0 0.0
          %3148 = vmatpush1.msra.mxu0 0.0
          %3149 = vmatprep.subr.mxu0 0.0
          %3150 = vmatpush1.msra.mxu0 0.0
          %3151 = vmatprep.subr.mxu0 0.0
          %3152 = vmatpush1.msra.mxu0 0.0
          %3153 = vmatprep.mubr.f32.mxu0 0.0
          %3154 = vmatmul.mubr.f32.gmra.mrb[0].mxu0 %v3087
          %v3155 = vpop.f32.mrb[0].mxu0
          %v3156 = vadd.f32 %v3084, %v3155
          %v3157 = vpop.f32.mrb[0].mxu0
          %3158 = vdwg.mxu0
          %v3159 = vld [vmem:[%s13] sm:$0xff]
          %v3160 = vld [vmem:[%s13 + $0x8] sm:$0xff]
          %v3161 = vld [vmem:[%s14] sm:$0x1]
          %v3163 = vlaneseq
          %v3164 = vshrl.u32 %v3163, 7
          %v3165 = vsub.s32 0, %v3164
          %v3166 = vrot.slane %v3161, %v3165
          %v3169 = vsel %vm738, %v3156, 0
          %3171 = vmatprep.subr.mxu0 0.0
          %3172 = vmatpush1.msra.mxu0 %v3159
          %3173 = vmatprep.subr.mxu0 0.0
          %3174 = vmatpush1.msra.mxu0 %v3160
          %3175 = vmatprep.subr.mxu0 0.0
          %3176 = vmatpush1.msra.mxu0 0.0
          %3177 = vmatprep.subr.mxu0 0.0
          %3178 = vmatpush1.msra.mxu0 0.0
          %3179 = vmatprep.subr.mxu0 0.0
          %3180 = vmatpush1.msra.mxu0 0.0
          %3181 = vmatprep.subr.mxu0 0.0
          %3182 = vmatpush1.msra.mxu0 0.0
          %3183 = vmatprep.subr.mxu0 0.0
          %3184 = vmatpush1.msra.mxu0 0.0
          %3185 = vmatprep.subr.mxu0 0.0
          %3186 = vmatpush1.msra.mxu0 0.0
          %3187 = vmatprep.subr.mxu0 0.0
          %3188 = vmatpush1.msra.mxu0 0.0
          %3189 = vmatprep.subr.mxu0 0.0
          %3190 = vmatpush1.msra.mxu0 0.0
          %3191 = vmatprep.subr.mxu0 0.0
          %3192 = vmatpush1.msra.mxu0 0.0
          %3193 = vmatprep.subr.mxu0 0.0
          %3194 = vmatpush1.msra.mxu0 0.0
          %3195 = vmatprep.subr.mxu0 0.0
          %3196 = vmatpush1.msra.mxu0 0.0
          %3197 = vmatprep.subr.mxu0 0.0
          %3198 = vmatpush1.msra.mxu0 0.0
          %3199 = vmatprep.subr.mxu0 0.0
          %3200 = vmatpush1.msra.mxu0 0.0
          %3201 = vmatprep.subr.mxu0 0.0
          %3202 = vmatpush1.msra.mxu0 0.0
          %3203 = vmatprep.subr.mxu0 0.0
          %3204 = vmatpush1.msra.mxu0 0.0
          %3205 = vmatprep.subr.mxu0 0.0
          %3206 = vmatpush1.msra.mxu0 0.0
          %3207 = vmatprep.subr.mxu0 0.0
          %3208 = vmatpush1.msra.mxu0 0.0
          %3209 = vmatprep.subr.mxu0 0.0
          %3210 = vmatpush1.msra.mxu0 0.0
          %3211 = vmatprep.subr.mxu0 0.0
          %3212 = vmatpush1.msra.mxu0 0.0
          %3213 = vmatprep.subr.mxu0 0.0
          %3214 = vmatpush1.msra.mxu0 0.0
          %3215 = vmatprep.subr.mxu0 0.0
          %3216 = vmatpush1.msra.mxu0 0.0
          %3217 = vmatprep.subr.mxu0 0.0
          %3218 = vmatpush1.msra.mxu0 0.0
          %3219 = vmatprep.subr.mxu0 0.0
          %3220 = vmatpush1.msra.mxu0 0.0
          %3221 = vmatprep.subr.mxu0 0.0
          %3222 = vmatpush1.msra.mxu0 0.0
          %3223 = vmatprep.subr.mxu0 0.0
          %3224 = vmatpush1.msra.mxu0 0.0
          %3225 = vmatprep.subr.mxu0 0.0
          %3226 = vmatpush1.msra.mxu0 0.0
          %3227 = vmatprep.subr.mxu0 0.0
          %3228 = vmatpush1.msra.mxu0 0.0
          %3229 = vmatprep.subr.mxu0 0.0
          %3230 = vmatpush1.msra.mxu0 0.0
          %3231 = vmatprep.subr.mxu0 0.0
          %3232 = vmatpush1.msra.mxu0 0.0
          %3233 = vmatprep.subr.mxu0 0.0
          %3234 = vmatpush1.msra.mxu0 0.0
          %3235 = vmatprep.mubr.f32.mxu0 0.0
          %3236 = vmatmul.mubr.f32.gmra.mrb[0].mxu0 %v3169
          %v3237 = vpop.f32.mrb[0].mxu0
          %v3238 = vadd.f32 %v3166, %v3237
          %v3239 = vpop.f32.mrb[0].mxu0
          %3240 = vdwg.mxu0
          %3241 = vst [vmem:[#allocation3] sm:$0x3] %v3238
        $region88: #{custom_bert_forward.1} parent=79 // pred_fallthru
          _
        // Predicated region
        $region89: #{custom_bert_forward.1} parent=79 // pred_check
          %p3242 = pneg %p360
        $region90: #{custom_bert_forward.1} parent=79 // pred_check_branch
          %3244 = sbr.rel (%p3242) target = $region92
        $region91: #{custom_bert_forward.1} parent=79 // pred_region
          %s3246 = ssub.s32 32, 32
          %3247 = vsyncadd [#allocation4], %s3246
          %s3249 = sshll.u32 [#allocation3], 4
          %s3250 = int_to_ptr.vmem [resolvable:$true] %s3249
          %3252 = dma.vmem_to_hbm [thread:$0]  %s3250, 32, %s15, [#allocation4]
        $region92: #{custom_bert_forward.1} parent=79 // pred_fallthru
          _
        // Predicated region
        $region93: #{custom_bert_forward.1} parent=79 // pred_check
          %p3253 = pneg %p360
        $region94: #{custom_bert_forward.1} parent=79 // pred_check_branch
          %3255 = sbr.rel (%p3253) target = $region96
        $region95: #{custom_bert_forward.1} parent=79 // pred_region
          %3256 = dma.done [#allocation4], 32
        $region96: #{custom_bert_forward.1} parent=79 // pred_fallthru
          _
      $region80: #{custom_bert_forward.1} parent=5 // pred_fallthru
        _
      %p3257 = scmp.le.s32.totalorder 2, %s22
      // Predicated region
      $region97: #{custom_bert_forward.1} parent=5 // pred_check
        %p3258 = pneg %p3257
      $region98: #{custom_bert_forward.1} parent=5 // pred_check_branch
        %3260 = sbr.rel (%p3258) target = $region100
      $region99: #{custom_bert_forward.1} parent=5 // pred_region
        %s3261 = ssub.s32 %s22, 2
      $region100: #{custom_bert_forward.1} parent=5 // pred_fallthru
        _
    $region6: #{custom_bert_forward.1} parent=1 // loop_footer
      %s26 = sadd.s32 1, %s22
    $region7: #{custom_bert_forward.1} parent=1 // loop_footer_branch
      %21 = sbr.rel target = $region3
    $region8: #{custom_bert_forward.1} parent=1 // loop_exit
      _
    %3262 = vsyncpa [#allocation4], 1
    %s3263 = scalar_lea.sflag [#allocation4], 1
    %3264 = vsyncpa %s3263, 1

</llo_original>
